<compile_context>
chip_gen: v5e
topology: v5e:2x2
jax: 0.10.0
libtpu: 0.0.40
codegen_flags: <defaults>
</compile_context>

<pallas_src>
import jax
import jax.numpy as jnp
from jax.experimental import pallas as pl
from jax.experimental.pallas import tpu as pltpu

H = 7
W = 7
HW = H * W                    # 49
C_OUT = 2048
BN_EPS = 1e-5

GROUP = 128                   # channels per output row -> lane width GROUP*HW
ROWS = C_OUT // GROUP         # 16
ROW_W = GROUP * HW            # 6272 = 49 * 128, multiple of 128 (lane dense)
TILE_N = 8                    # samples per grid step


def _csz_kernel(x_ref, a_ref, b_ref, o_ref):
    # x_ref: (TILE_N, ROW_W)        spatial values replicated per channel group
    # a_ref: (ROWS, ROW_W)          folded conv*BN scale, NCHW-flat order
    # b_ref: (ROWS, ROW_W)          folded BN bias,        NCHW-flat order
    # o_ref: (TILE_N, ROWS, ROW_W)  row-major == NCHW (TILE_N, 2048, 49)
    a = a_ref[...]
    b = b_ref[...]
    for t in range(TILE_N):                        # static unroll over samples
        xt = x_ref[pl.ds(t, 1), :]                 # (1, ROW_W) sublane row
        o_ref[t] = jnp.maximum(xt * a + b, 0.0)    # sublane-broadcast FMA + ReLU


def change_scene_size(x, w, gamma, beta, running_mean, running_var):
    """x: any shape whose total size is a multiple of 7*7 (torch .view(-1,1,7,7)).
    Returns NCHW output of shape (N, 2048, 7, 7), matching the PyTorch module."""
    x = x.astype(jnp.float32)
    x_flat = x.reshape(-1)                         # row-major == torch .view order
    m = x_flat.shape[0]
    assert m % HW == 0, "input size must be a multiple of 7*7"
    n = m // HW

    # Fold Conv2d(1, 2048, 1, bias=False) + BatchNorm2d (running stats) once.
    scale = gamma.astype(jnp.float32) * jax.lax.rsqrt(
        running_var.astype(jnp.float32) + BN_EPS)
    a = w.reshape(C_OUT).astype(jnp.float32) * scale
    b = beta.astype(jnp.float32) - running_mean.astype(jnp.float32) * scale
    # NCHW-flat expansion: element (g, c_in_group*49 + s) carries channel
    # c = g*128 + c_in_group.  jnp.repeat(a, 49)[c*49 + s] == a[c].
    a2 = jnp.repeat(a, HW).reshape(ROWS, ROW_W)
    b2 = jnp.repeat(b, HW).reshape(ROWS, ROW_W)

    # Pad batch to a multiple of TILE_N; padded rows are sliced off afterwards.
    n_pad = ((n + TILE_N - 1) // TILE_N) * TILE_N
    x2 = jnp.zeros((n_pad, HW), jnp.float32).at[:n].set(x_flat.reshape(n, HW))
    # Replicate the 49 spatial values once per channel group so the kernel's
    # lane axis is the dense NCHW-flat index (c % GROUP)*49 + s.
    x_rep = jnp.tile(x2, (1, GROUP))               # (n_pad, ROW_W)

    out = pl.pallas_call(
        _csz_kernel,
        out_shape=jax.ShapeDtypeStruct((n_pad, ROWS, ROW_W), jnp.float32),
        grid_spec=pltpu.PrefetchScalarGridSpec(
            num_scalar_prefetch=0,
            grid=(n_pad // TILE_N,),
            in_specs=[
                pl.BlockSpec((TILE_N, ROW_W), lambda i: (i, 0)),
                pl.BlockSpec((ROWS, ROW_W), lambda i: (0, 0)),
                pl.BlockSpec((ROWS, ROW_W), lambda i: (0, 0)),
            ],
            out_specs=pl.BlockSpec((TILE_N, ROWS, ROW_W), lambda i: (i, 0, 0)),
        ),
        compiler_params=pltpu.CompilerParams(
            dimension_semantics=("parallel",),
            vmem_limit_bytes=32 * 1024 * 1024,
        ),
    )(x_rep, a2, b2)

    # (N, 16, 6272) row-major == (N, 2048, 49) row-major -> plain reshape to NCHW.
    return out[:n].reshape(n, C_OUT, H, W)


def reference(x, w, gamma, beta, running_mean, running_var):
    x4 = x.astype(jnp.float32).reshape(-1, 1, H, W)
    conv = x4 * w.reshape(1, C_OUT, 1, 1)            # 1x1 conv, 1 in-channel
    scale = gamma * jax.lax.rsqrt(running_var + BN_EPS)
    bn = ((conv - running_mean.reshape(1, C_OUT, 1, 1))
          * scale.reshape(1, C_OUT, 1, 1)
          + beta.reshape(1, C_OUT, 1, 1))
    return jnp.maximum(bn, 0.0)


if __name__ == "__main__":
    key = jax.random.PRNGKey(0)
    k_x, k_w, k_g, k_b, k_m, k_v = jax.random.split(key, 6)

    batch = 2
    x = jax.random.normal(k_x, (batch, HW), jnp.float32)   # view(-1,1,7,7) compatible

    # deterministic synthetic parameters (Conv2d(1,2048,1,bias=False) + BatchNorm2d(2048))
    w = jax.random.normal(k_w, (C_OUT,), jnp.float32) * 0.1
    gamma = 1.0 + 0.1 * jax.random.normal(k_g, (C_OUT,), jnp.float32)
    beta = 0.1 * jax.random.normal(k_b, (C_OUT,), jnp.float32)
    running_mean = 0.05 * jax.random.normal(k_m, (C_OUT,), jnp.float32)
    running_var = 1.0 + 0.1 * jax.random.uniform(k_v, (C_OUT,), jnp.float32)

    out = change_scene_size(x, w, gamma, beta, running_mean, running_var)
    out = jax.block_until_ready(out)

    ref = reference(x, w, gamma, beta, running_mean, running_var)
    assert out.shape == (batch, C_OUT, H, W), out.shape
    assert jnp.allclose(out, ref, atol=1e-5, rtol=1e-5)

    print("KERNEL_OK")
</pallas_src>

<mosaic_0001>
module attributes {stable_mosaic.version = 11 : i64} {
  func.func @_csz_kernel(%arg0: i32, %arg1: memref<8x6272xf32, #tpu.memory_space<vmem>>, %arg2: memref<16x6272xf32, #tpu.memory_space<vmem>>, %arg3: memref<16x6272xf32, #tpu.memory_space<vmem>>, %arg4: memref<8x16x6272xf32, #tpu.memory_space<vmem>>) attributes {dimension_semantics = [#tpu.dimension_semantics<parallel>], iteration_bounds = array<i64: 1>, scalar_prefetch = 0 : i64, scratch_operands = 0 : i64, tpu.core_type = #tpu.core_type<tc>, window_params = [{transform_indices = @transform_0, window_bounds = array<i64: 8, 6272>}, {pipeline_mode = #tpu.pipeline_mode<synchronous>, transform_indices = @transform_1, window_bounds = array<i64: 16, 6272>}, {pipeline_mode = #tpu.pipeline_mode<synchronous>, transform_indices = @transform_2, window_bounds = array<i64: 16, 6272>}, {transform_indices = @transform_3, window_bounds = array<i64: 8, 16, 6272>}]} {
    %c0 = arith.constant 0 : index
    %c0_0 = arith.constant 0 : index
    %0 = vector.load %arg2[%c0, %c0_0] : memref<16x6272xf32, #tpu.memory_space<vmem>>, vector<16x6272xf32>
    %c0_1 = arith.constant 0 : index
    %c0_2 = arith.constant 0 : index
    %1 = vector.load %arg3[%c0_1, %c0_2] : memref<16x6272xf32, #tpu.memory_space<vmem>>, vector<16x6272xf32>
    %c0_3 = arith.constant 0 : index
    %c0_4 = arith.constant 0 : index
    %2 = vector.load %arg1[%c0_3, %c0_4] : memref<8x6272xf32, #tpu.memory_space<vmem>>, vector<1x6272xf32>
    %3 = vector.broadcast %2 : vector<1x6272xf32> to vector<16x6272xf32>
    %4 = arith.mulf %3, %0 : vector<16x6272xf32>
    %5 = arith.addf %4, %1 : vector<16x6272xf32>
    %cst = arith.constant 0.000000e+00 : f32
    %6 = vector.broadcast %cst : f32 to vector<16x6272xf32>
    %7 = arith.maximumf %5, %6 : vector<16x6272xf32>
    %c0_5 = arith.constant 0 : index
    %c0_6 = arith.constant 0 : index
    %c0_7 = arith.constant 0 : index
    %8 = vector.load %arg4[%c0_5, %c0_6, %c0_7] : memref<8x16x6272xf32, #tpu.memory_space<vmem>>, vector<1x16x6272xf32>
    %9 = vector.shape_cast %8 : vector<1x16x6272xf32> to vector<16x6272xf32>
    %10 = vector.shape_cast %7 : vector<16x6272xf32> to vector<1x16x6272xf32>
    tpu.vector_store %arg4[%c0_5, %c0_6, %c0_7], %10 {strides = array<i32>} : memref<8x16x6272xf32, #tpu.memory_space<vmem>>, vector<1x16x6272xf32>,
    %c1 = arith.constant 1 : index
    %c0_8 = arith.constant 0 : index
    %11 = vector.load %arg1[%c1, %c0_8] : memref<8x6272xf32, #tpu.memory_space<vmem>>, vector<1x6272xf32>
    %12 = vector.broadcast %11 : vector<1x6272xf32> to vector<16x6272xf32>
    %13 = arith.mulf %12, %0 : vector<16x6272xf32>
    %14 = arith.addf %13, %1 : vector<16x6272xf32>
    %cst_9 = arith.constant 0.000000e+00 : f32
    %15 = vector.broadcast %cst_9 : f32 to vector<16x6272xf32>
    %16 = arith.maximumf %14, %15 : vector<16x6272xf32>
    %c1_10 = arith.constant 1 : index
    %c0_11 = arith.constant 0 : index
    %c0_12 = arith.constant 0 : index
    %17 = vector.load %arg4[%c1_10, %c0_11, %c0_12] : memref<8x16x6272xf32, #tpu.memory_space<vmem>>, vector<1x16x6272xf32>
    %18 = vector.shape_cast %17 : vector<1x16x6272xf32> to vector<16x6272xf32>
    %19 = vector.shape_cast %16 : vector<16x6272xf32> to vector<1x16x6272xf32>
    tpu.vector_store %arg4[%c1_10, %c0_11, %c0_12], %19 {strides = array<i32>} : memref<8x16x6272xf32, #tpu.memory_space<vmem>>, vector<1x16x6272xf32>,
    %c2 = arith.constant 2 : index
    %c0_13 = arith.constant 0 : index
    %20 = vector.load %arg1[%c2, %c0_13] : memref<8x6272xf32, #tpu.memory_space<vmem>>, vector<1x6272xf32>
    %21 = vector.broadcast %20 : vector<1x6272xf32> to vector<16x6272xf32>
    %22 = arith.mulf %21, %0 : vector<16x6272xf32>
    %23 = arith.addf %22, %1 : vector<16x6272xf32>
    %cst_14 = arith.constant 0.000000e+00 : f32
    %24 = vector.broadcast %cst_14 : f32 to vector<16x6272xf32>
    %25 = arith.maximumf %23, %24 : vector<16x6272xf32>
    %c2_15 = arith.constant 2 : index
    %c0_16 = arith.constant 0 : index
    %c0_17 = arith.constant 0 : index
    %26 = vector.load %arg4[%c2_15, %c0_16, %c0_17] : memref<8x16x6272xf32, #tpu.memory_space<vmem>>, vector<1x16x6272xf32>
    %27 = vector.shape_cast %26 : vector<1x16x6272xf32> to vector<16x6272xf32>
    %28 = vector.shape_cast %25 : vector<16x6272xf32> to vector<1x16x6272xf32>
    tpu.vector_store %arg4[%c2_15, %c0_16, %c0_17], %28 {strides = array<i32>} : memref<8x16x6272xf32, #tpu.memory_space<vmem>>, vector<1x16x6272xf32>,
    %c3 = arith.constant 3 : index
    %c0_18 = arith.constant 0 : index
    %29 = vector.load %arg1[%c3, %c0_18] : memref<8x6272xf32, #tpu.memory_space<vmem>>, vector<1x6272xf32>
    %30 = vector.broadcast %29 : vector<1x6272xf32> to vector<16x6272xf32>
    %31 = arith.mulf %30, %0 : vector<16x6272xf32>
    %32 = arith.addf %31, %1 : vector<16x6272xf32>
    %cst_19 = arith.constant 0.000000e+00 : f32
    %33 = vector.broadcast %cst_19 : f32 to vector<16x6272xf32>
    %34 = arith.maximumf %32, %33 : vector<16x6272xf32>
    %c3_20 = arith.constant 3 : index
    %c0_21 = arith.constant 0 : index
    %c0_22 = arith.constant 0 : index
    %35 = vector.load %arg4[%c3_20, %c0_21, %c0_22] : memref<8x16x6272xf32, #tpu.memory_space<vmem>>, vector<1x16x6272xf32>
    %36 = vector.shape_cast %35 : vector<1x16x6272xf32> to vector<16x6272xf32>
    %37 = vector.shape_cast %34 : vector<16x6272xf32> to vector<1x16x6272xf32>
    tpu.vector_store %arg4[%c3_20, %c0_21, %c0_22], %37 {strides = array<i32>} : memref<8x16x6272xf32, #tpu.memory_space<vmem>>, vector<1x16x6272xf32>,
    %c4 = arith.constant 4 : index
    %c0_23 = arith.constant 0 : index
    %38 = vector.load %arg1[%c4, %c0_23] : memref<8x6272xf32, #tpu.memory_space<vmem>>, vector<1x6272xf32>
    %39 = vector.broadcast %38 : vector<1x6272xf32> to vector<16x6272xf32>
    %40 = arith.mulf %39, %0 : vector<16x6272xf32>
    %41 = arith.addf %40, %1 : vector<16x6272xf32>
    %cst_24 = arith.constant 0.000000e+00 : f32
    %42 = vector.broadcast %cst_24 : f32 to vector<16x6272xf32>
    %43 = arith.maximumf %41, %42 : vector<16x6272xf32>
    %c4_25 = arith.constant 4 : index
    %c0_26 = arith.constant 0 : index
    %c0_27 = arith.constant 0 : index
    %44 = vector.load %arg4[%c4_25, %c0_26, %c0_27] : memref<8x16x6272xf32, #tpu.memory_space<vmem>>, vector<1x16x6272xf32>
    %45 = vector.shape_cast %44 : vector<1x16x6272xf32> to vector<16x6272xf32>
    %46 = vector.shape_cast %43 : vector<16x6272xf32> to vector<1x16x6272xf32>
    tpu.vector_store %arg4[%c4_25, %c0_26, %c0_27], %46 {strides = array<i32>} : memref<8x16x6272xf32, #tpu.memory_space<vmem>>, vector<1x16x6272xf32>,
    %c5 = arith.constant 5 : index
    %c0_28 = arith.constant 0 : index
    %47 = vector.load %arg1[%c5, %c0_28] : memref<8x6272xf32, #tpu.memory_space<vmem>>, vector<1x6272xf32>
    %48 = vector.broadcast %47 : vector<1x6272xf32> to vector<16x6272xf32>
    %49 = arith.mulf %48, %0 : vector<16x6272xf32>
    %50 = arith.addf %49, %1 : vector<16x6272xf32>
    %cst_29 = arith.constant 0.000000e+00 : f32
    %51 = vector.broadcast %cst_29 : f32 to vector<16x6272xf32>
    %52 = arith.maximumf %50, %51 : vector<16x6272xf32>
    %c5_30 = arith.constant 5 : index
    %c0_31 = arith.constant 0 : index
    %c0_32 = arith.constant 0 : index
    %53 = vector.load %arg4[%c5_30, %c0_31, %c0_32] : memref<8x16x6272xf32, #tpu.memory_space<vmem>>, vector<1x16x6272xf32>
    %54 = vector.shape_cast %53 : vector<1x16x6272xf32> to vector<16x6272xf32>
    %55 = vector.shape_cast %52 : vector<16x6272xf32> to vector<1x16x6272xf32>
    tpu.vector_store %arg4[%c5_30, %c0_31, %c0_32], %55 {strides = array<i32>} : memref<8x16x6272xf32, #tpu.memory_space<vmem>>, vector<1x16x6272xf32>,
    %c6 = arith.constant 6 : index
    %c0_33 = arith.constant 0 : index
    %56 = vector.load %arg1[%c6, %c0_33] : memref<8x6272xf32, #tpu.memory_space<vmem>>, vector<1x6272xf32>
    %57 = vector.broadcast %56 : vector<1x6272xf32> to vector<16x6272xf32>
    %58 = arith.mulf %57, %0 : vector<16x6272xf32>
    %59 = arith.addf %58, %1 : vector<16x6272xf32>
    %cst_34 = arith.constant 0.000000e+00 : f32
    %60 = vector.broadcast %cst_34 : f32 to vector<16x6272xf32>
    %61 = arith.maximumf %59, %60 : vector<16x6272xf32>
    %c6_35 = arith.constant 6 : index
    %c0_36 = arith.constant 0 : index
    %c0_37 = arith.constant 0 : index
    %62 = vector.load %arg4[%c6_35, %c0_36, %c0_37] : memref<8x16x6272xf32, #tpu.memory_space<vmem>>, vector<1x16x6272xf32>
    %63 = vector.shape_cast %62 : vector<1x16x6272xf32> to vector<16x6272xf32>
    %64 = vector.shape_cast %61 : vector<16x6272xf32> to vector<1x16x6272xf32>
    tpu.vector_store %arg4[%c6_35, %c0_36, %c0_37], %64 {strides = array<i32>} : memref<8x16x6272xf32, #tpu.memory_space<vmem>>, vector<1x16x6272xf32>,
    %c7 = arith.constant 7 : index
    %c0_38 = arith.constant 0 : index
    %65 = vector.load %arg1[%c7, %c0_38] : memref<8x6272xf32, #tpu.memory_space<vmem>>, vector<1x6272xf32>
    %66 = vector.broadcast %65 : vector<1x6272xf32> to vector<16x6272xf32>
    %67 = arith.mulf %66, %0 : vector<16x6272xf32>
    %68 = arith.addf %67, %1 : vector<16x6272xf32>
    %cst_39 = arith.constant 0.000000e+00 : f32
    %69 = vector.broadcast %cst_39 : f32 to vector<16x6272xf32>
    %70 = arith.maximumf %68, %69 : vector<16x6272xf32>
    %c7_40 = arith.constant 7 : index
    %c0_41 = arith.constant 0 : index
    %c0_42 = arith.constant 0 : index
    %71 = vector.load %arg4[%c7_40, %c0_41, %c0_42] : memref<8x16x6272xf32, #tpu.memory_space<vmem>>, vector<1x16x6272xf32>
    %72 = vector.shape_cast %71 : vector<1x16x6272xf32> to vector<16x6272xf32>
    %73 = vector.shape_cast %70 : vector<16x6272xf32> to vector<1x16x6272xf32>
    tpu.vector_store %arg4[%c7_40, %c0_41, %c0_42], %73 {strides = array<i32>} : memref<8x16x6272xf32, #tpu.memory_space<vmem>>, vector<1x16x6272xf32>,
    return
  }
  func.func @transform_0(%arg0: i32) -> (i32, i32) {
    %c0_i32 = arith.constant 0 : i32
    %c0_i32_0 = arith.constant 0 : i32
    return %arg0, %c0_i32 : i32, i32
  }
  func.func @transform_1(%arg0: i32) -> (i32, i32) {
    %c0_i32 = arith.constant 0 : i32
    %c0_i32_0 = arith.constant 0 : i32
    %c0_i32_1 = arith.constant 0 : i32
    return %c0_i32, %c0_i32_0 : i32, i32
  }
  func.func @transform_2(%arg0: i32) -> (i32, i32) {
    %c0_i32 = arith.constant 0 : i32
    %c0_i32_0 = arith.constant 0 : i32
    %c0_i32_1 = arith.constant 0 : i32
    return %c0_i32, %c0_i32_0 : i32, i32
  }
  func.func @transform_3(%arg0: i32) -> (i32, i32, i32) {
    %c0_i32 = arith.constant 0 : i32
    %c0_i32_0 = arith.constant 0 : i32
    %c0_i32_1 = arith.constant 0 : i32
    return %arg0, %c0_i32, %c0_i32_0 : i32, i32, i32
  }
}

</mosaic_0001>

<llo_original>
// kernel: tpu_custom_call.1
$region0: #{tpu_custom_call.1}
  #allocation0 [shape = 'u32[]', space=smem, size = 0x4, offset = 0x4, fixed_abs, tag = 'smem constant byte address 0x4 - core index']
  #allocation1 [shape = 'u32[72,128]{1,0:T(1,128)}', space=vmem, size = 0x9000, scoped, tag = 'internal scratch']
  %s0 = inlined_call_operand.hbm [shape: f32[8,6272], index: 0, kind: input, shape index: {}]
  %s1 = inlined_call_operand.hbm [shape: f32[16,6272], index: 1, kind: input, shape index: {}]
  %s2 = inlined_call_operand.hbm [shape: f32[16,6272], index: 2, kind: input, shape index: {}]
  %s3 = inlined_call_operand.hbm [shape: f32[8,16,6272], index: 3, kind: output, shape index: {}]
  %s4 = sld [smem:[#allocation0]]
  $region34: #{tpu_custom_call.1} parent=0
    _
  %s6 = ssub.s32 1, %s4
  %s7 = scalar_select 0, %s6, %s4
  $region1: #{tpu_custom_call.1} parent=0
    #allocation2 [shape = 'u8[200704]{0}', space=vmem, size = 0x31000, scoped, tag = 'input window, operand 0, single buffered']
    #allocation3 [shape = 's32[1]{0}', space=sflag, size = 0x4, scoped, tag = 'scoped memory for tpu_custom_call.1']
    #allocation4 [shape = 's32[1]{0}', space=sflag, size = 0x4, scoped, tag = 'scoped memory for tpu_custom_call.1']
    #allocation5 [shape = 'u8[401408]{0}', space=vmem, size = 0x62000, scoped, tag = 'input window, operand 1, single buffered']
    #allocation6 [shape = 's32[1]{0}', space=sflag, size = 0x4, scoped, tag = 'scoped memory for tpu_custom_call.1']
    #allocation7 [shape = 'u8[401408]{0}', space=vmem, size = 0x62000, scoped, tag = 'input window, operand 2, single buffered']
    #allocation8 [shape = 'u8[3211264]{0}', space=vmem, size = 0x310000, scoped, tag = 'output window, operand 0, single buffered']
    %8 = vsyncpa [#allocation3], 0
    %9 = vsyncpa [#allocation6], 0
    %10 = vsyncpa [#allocation4], 0
    // Predicated region
    $region2: #{tpu_custom_call.1} parent=1 // pred_check
      _
    $region3: #{tpu_custom_call.1} parent=1 // pred_check_branch
      %12 = sbr.rel (0) target = $region5
    $region4: #{tpu_custom_call.1} parent=1 // pred_region
      %14 = vsyncadd [#allocation3], 0
      %s16 = sshll.u32 %s0, 4
      %s17 = int_to_ptr.hbm [resolvable:$true] %s16
      %s18 = sshll.u32 [#allocation2], 4
      %s19 = int_to_ptr.vmem [resolvable:$true] %s18
      %21 = dma.hbm_to_vmem [thread:$0]  %s17, 6272, %s19, [#allocation3]
    $region5: #{tpu_custom_call.1} parent=1 // pred_fallthru
      _
    // Predicated region
    $region6: #{tpu_custom_call.1} parent=1 // pred_check
      _
    $region7: #{tpu_custom_call.1} parent=1 // pred_check_branch
      %23 = sbr.rel (0) target = $region9
    $region8: #{tpu_custom_call.1} parent=1 // pred_region
      %25 = vsyncadd [#allocation6], 0
      %s26 = sshll.u32 %s1, 4
      %s27 = int_to_ptr.hbm [resolvable:$true] %s26
      %s28 = sshll.u32 [#allocation5], 4
      %s29 = int_to_ptr.vmem [resolvable:$true] %s28
      %34 = dma.hbm_to_vmem [thread:$0]  %s27, 12544, %s29, [#allocation6], 6272, 6272, 392
    $region9: #{tpu_custom_call.1} parent=1 // pred_fallthru
      _
    // Predicated region
    $region10: #{tpu_custom_call.1} parent=1 // pred_check
      _
    $region11: #{tpu_custom_call.1} parent=1 // pred_check_branch
      %36 = sbr.rel (0) target = $region13
    $region12: #{tpu_custom_call.1} parent=1 // pred_region
      %38 = vsyncadd [#allocation6], 0
      %s39 = sshll.u32 %s2, 4
      %s40 = int_to_ptr.hbm [resolvable:$true] %s39
      %s41 = sshll.u32 [#allocation7], 4
      %s42 = int_to_ptr.vmem [resolvable:$true] %s41
      %47 = dma.hbm_to_vmem [thread:$0]  %s40, 12544, %s42, [#allocation6], 6272, 6272, 392
    $region13: #{tpu_custom_call.1} parent=1 // pred_fallthru
      _
    // Predicated region
    $region14: #{tpu_custom_call.1} parent=1 // pred_check
      _
    $region15: #{tpu_custom_call.1} parent=1 // pred_check_branch
      %49 = sbr.rel (0) target = $region17
    $region16: #{tpu_custom_call.1} parent=1 // pred_region
      %51 = dma.done [#allocation3], 6272
    $region17: #{tpu_custom_call.1} parent=1 // pred_fallthru
      _
    // Predicated region
    $region18: #{tpu_custom_call.1} parent=1 // pred_check
      _
    $region19: #{tpu_custom_call.1} parent=1 // pred_check_branch
      %53 = sbr.rel (0) target = $region21
    $region20: #{tpu_custom_call.1} parent=1 // pred_region
      %55 = dma.done [#allocation6], 12544
    $region21: #{tpu_custom_call.1} parent=1 // pred_fallthru
      _
    // Predicated region
    $region22: #{tpu_custom_call.1} parent=1 // pred_check
      _
    $region23: #{tpu_custom_call.1} parent=1 // pred_check_branch
      %57 = sbr.rel (0) target = $region25
    $region24: #{tpu_custom_call.1} parent=1 // pred_region
      %59 = dma.done [#allocation6], 12544
    $region25: #{tpu_custom_call.1} parent=1 // pred_fallthru
      _
    %v60 = vld [vmem:[#allocation5] sm:$0xff]
    %v61 = vld [vmem:[#allocation5 + $0x8] sm:$0xff]
    %v62 = vld [vmem:[#allocation5 + $0x10] sm:$0xff]
    %v63 = vld [vmem:[#allocation5 + $0x18] sm:$0xff]
    %v64 = vld [vmem:[#allocation5 + $0x20] sm:$0xff]
    %v65 = vld [vmem:[#allocation5 + $0x28] sm:$0xff]
    %v66 = vld [vmem:[#allocation5 + $0x30] sm:$0xff]
    %v67 = vld [vmem:[#allocation5 + $0x38] sm:$0xff]
    %v68 = vld [vmem:[#allocation5 + $0x40] sm:$0xff]
    %v69 = vld [vmem:[#allocation5 + $0x48] sm:$0xff]
    %v70 = vld [vmem:[#allocation5 + $0x50] sm:$0xff]
    %v71 = vld [vmem:[#allocation5 + $0x58] sm:$0xff]
    %v72 = vld [vmem:[#allocation5 + $0x60] sm:$0xff]
    %v73 = vld [vmem:[#allocation5 + $0x68] sm:$0xff]
    %v74 = vld [vmem:[#allocation5 + $0x70] sm:$0xff]
    %v75 = vld [vmem:[#allocation5 + $0x78] sm:$0xff]
    %v76 = vld [vmem:[#allocation5 + $0x80] sm:$0xff]
    %v77 = vld [vmem:[#allocation5 + $0x88] sm:$0xff]
    %v78 = vld [vmem:[#allocation5 + $0x90] sm:$0xff]
    %v79 = vld [vmem:[#allocation5 + $0x98] sm:$0xff]
    %v80 = vld [vmem:[#allocation5 + $0xa0] sm:$0xff]
    %v81 = vld [vmem:[#allocation5 + $0xa8] sm:$0xff]
    %v82 = vld [vmem:[#allocation5 + $0xb0] sm:$0xff]
    %v83 = vld [vmem:[#allocation5 + $0xb8] sm:$0xff]
    %v84 = vld [vmem:[#allocation5 + $0xc0] sm:$0xff]
    %v85 = vld [vmem:[#allocation5 + $0xc8] sm:$0xff]
    %v86 = vld [vmem:[#allocation5 + $0xd0] sm:$0xff]
    %v87 = vld [vmem:[#allocation5 + $0xd8] sm:$0xff]
    %v88 = vld [vmem:[#allocation5 + $0xe0] sm:$0xff]
    %v89 = vld [vmem:[#allocation5 + $0xe8] sm:$0xff]
    %v90 = vld [vmem:[#allocation5 + $0xf0] sm:$0xff]
    %v91 = vld [vmem:[#allocation5 + $0xf8] sm:$0xff]
    %v92 = vld [vmem:[#allocation5 + $0x100] sm:$0xff]
    %v93 = vld [vmem:[#allocation5 + $0x108] sm:$0xff]
    %v94 = vld [vmem:[#allocation5 + $0x110] sm:$0xff]
    %v95 = vld [vmem:[#allocation5 + $0x118] sm:$0xff]
    %v96 = vld [vmem:[#allocation5 + $0x120] sm:$0xff]
    %v97 = vld [vmem:[#allocation5 + $0x128] sm:$0xff]
    %v98 = vld [vmem:[#allocation5 + $0x130] sm:$0xff]
    %v99 = vld [vmem:[#allocation5 + $0x138] sm:$0xff]
    %v100 = vld [vmem:[#allocation5 + $0x140] sm:$0xff]
    %v101 = vld [vmem:[#allocation5 + $0x148] sm:$0xff]
    %v102 = vld [vmem:[#allocation5 + $0x150] sm:$0xff]
    %v103 = vld [vmem:[#allocation5 + $0x158] sm:$0xff]
    %v104 = vld [vmem:[#allocation5 + $0x160] sm:$0xff]
    %v105 = vld [vmem:[#allocation5 + $0x168] sm:$0xff]
    %v106 = vld [vmem:[#allocation5 + $0x170] sm:$0xff]
    %v107 = vld [vmem:[#allocation5 + $0x178] sm:$0xff]
    %v108 = vld [vmem:[#allocation5 + $0x180] sm:$0xff]
    %v109 = vld [vmem:[#allocation5 + $0x188] sm:$0xff]
    %v110 = vld [vmem:[#allocation5 + $0x190] sm:$0xff]
    %v111 = vld [vmem:[#allocation5 + $0x198] sm:$0xff]
    %v112 = vld [vmem:[#allocation5 + $0x1a0] sm:$0xff]
    %v113 = vld [vmem:[#allocation5 + $0x1a8] sm:$0xff]
    %v114 = vld [vmem:[#allocation5 + $0x1b0] sm:$0xff]
    %v115 = vld [vmem:[#allocation5 + $0x1b8] sm:$0xff]
    %v116 = vld [vmem:[#allocation5 + $0x1c0] sm:$0xff]
    %v117 = vld [vmem:[#allocation5 + $0x1c8] sm:$0xff]
    %v118 = vld [vmem:[#allocation5 + $0x1d0] sm:$0xff]
    %v119 = vld [vmem:[#allocation5 + $0x1d8] sm:$0xff]
    %v120 = vld [vmem:[#allocation5 + $0x1e0] sm:$0xff]
    %v121 = vld [vmem:[#allocation5 + $0x1e8] sm:$0xff]
    %v122 = vld [vmem:[#allocation5 + $0x1f0] sm:$0xff]
    %v123 = vld [vmem:[#allocation5 + $0x1f8] sm:$0xff]
    %v124 = vld [vmem:[#allocation5 + $0x200] sm:$0xff]
    %v125 = vld [vmem:[#allocation5 + $0x208] sm:$0xff]
    %v126 = vld [vmem:[#allocation5 + $0x210] sm:$0xff]
    %v127 = vld [vmem:[#allocation5 + $0x218] sm:$0xff]
    %v128 = vld [vmem:[#allocation5 + $0x220] sm:$0xff]
    %v129 = vld [vmem:[#allocation5 + $0x228] sm:$0xff]
    %v130 = vld [vmem:[#allocation5 + $0x230] sm:$0xff]
    %v131 = vld [vmem:[#allocation5 + $0x238] sm:$0xff]
    %v132 = vld [vmem:[#allocation5 + $0x240] sm:$0xff]
    %v133 = vld [vmem:[#allocation5 + $0x248] sm:$0xff]
    %v134 = vld [vmem:[#allocation5 + $0x250] sm:$0xff]
    %v135 = vld [vmem:[#allocation5 + $0x258] sm:$0xff]
    %v136 = vld [vmem:[#allocation5 + $0x260] sm:$0xff]
    %v137 = vld [vmem:[#allocation5 + $0x268] sm:$0xff]
    %v138 = vld [vmem:[#allocation5 + $0x270] sm:$0xff]
    %v139 = vld [vmem:[#allocation5 + $0x278] sm:$0xff]
    %v140 = vld [vmem:[#allocation5 + $0x280] sm:$0xff]
    %v141 = vld [vmem:[#allocation5 + $0x288] sm:$0xff]
    %v142 = vld [vmem:[#allocation5 + $0x290] sm:$0xff]
    %v143 = vld [vmem:[#allocation5 + $0x298] sm:$0xff]
    %v144 = vld [vmem:[#allocation5 + $0x2a0] sm:$0xff]
    %v145 = vld [vmem:[#allocation5 + $0x2a8] sm:$0xff]
    %v146 = vld [vmem:[#allocation5 + $0x2b0] sm:$0xff]
    %v147 = vld [vmem:[#allocation5 + $0x2b8] sm:$0xff]
    %v148 = vld [vmem:[#allocation5 + $0x2c0] sm:$0xff]
    %v149 = vld [vmem:[#allocation5 + $0x2c8] sm:$0xff]
    %v150 = vld [vmem:[#allocation5 + $0x2d0] sm:$0xff]
    %v151 = vld [vmem:[#allocation5 + $0x2d8] sm:$0xff]
    %v152 = vld [vmem:[#allocation5 + $0x2e0] sm:$0xff]
    %v153 = vld [vmem:[#allocation5 + $0x2e8] sm:$0xff]
    %v154 = vld [vmem:[#allocation5 + $0x2f0] sm:$0xff]
    %v155 = vld [vmem:[#allocation5 + $0x2f8] sm:$0xff]
    %v156 = vld [vmem:[#allocation5 + $0x300] sm:$0xff]
    %v157 = vld [vmem:[#allocation5 + $0x308] sm:$0xff]
    %v158 = vld [vmem:[#allocation7] sm:$0xff]
    %v159 = vld [vmem:[#allocation7 + $0x8] sm:$0xff]
    %v160 = vld [vmem:[#allocation7 + $0x10] sm:$0xff]
    %v161 = vld [vmem:[#allocation7 + $0x18] sm:$0xff]
    %v162 = vld [vmem:[#allocation7 + $0x20] sm:$0xff]
    %v163 = vld [vmem:[#allocation7 + $0x28] sm:$0xff]
    %v164 = vld [vmem:[#allocation7 + $0x30] sm:$0xff]
    %v165 = vld [vmem:[#allocation7 + $0x38] sm:$0xff]
    %v166 = vld [vmem:[#allocation7 + $0x40] sm:$0xff]
    %v167 = vld [vmem:[#allocation7 + $0x48] sm:$0xff]
    %v168 = vld [vmem:[#allocation7 + $0x50] sm:$0xff]
    %v169 = vld [vmem:[#allocation7 + $0x58] sm:$0xff]
    %v170 = vld [vmem:[#allocation7 + $0x60] sm:$0xff]
    %v171 = vld [vmem:[#allocation7 + $0x68] sm:$0xff]
    %v172 = vld [vmem:[#allocation7 + $0x70] sm:$0xff]
    %v173 = vld [vmem:[#allocation7 + $0x78] sm:$0xff]
    %v174 = vld [vmem:[#allocation7 + $0x80] sm:$0xff]
    %v175 = vld [vmem:[#allocation7 + $0x88] sm:$0xff]
    %v176 = vld [vmem:[#allocation7 + $0x90] sm:$0xff]
    %v177 = vld [vmem:[#allocation7 + $0x98] sm:$0xff]
    %v178 = vld [vmem:[#allocation7 + $0xa0] sm:$0xff]
    %v179 = vld [vmem:[#allocation7 + $0xa8] sm:$0xff]
    %v180 = vld [vmem:[#allocation7 + $0xb0] sm:$0xff]
    %v181 = vld [vmem:[#allocation7 + $0xb8] sm:$0xff]
    %v182 = vld [vmem:[#allocation7 + $0xc0] sm:$0xff]
    %v183 = vld [vmem:[#allocation7 + $0xc8] sm:$0xff]
    %v184 = vld [vmem:[#allocation7 + $0xd0] sm:$0xff]
    %v185 = vld [vmem:[#allocation7 + $0xd8] sm:$0xff]
    %v186 = vld [vmem:[#allocation7 + $0xe0] sm:$0xff]
    %v187 = vld [vmem:[#allocation7 + $0xe8] sm:$0xff]
    %v188 = vld [vmem:[#allocation7 + $0xf0] sm:$0xff]
    %v189 = vld [vmem:[#allocation7 + $0xf8] sm:$0xff]
    %v190 = vld [vmem:[#allocation7 + $0x100] sm:$0xff]
    %v191 = vld [vmem:[#allocation7 + $0x108] sm:$0xff]
    %v192 = vld [vmem:[#allocation7 + $0x110] sm:$0xff]
    %v193 = vld [vmem:[#allocation7 + $0x118] sm:$0xff]
    %v194 = vld [vmem:[#allocation7 + $0x120] sm:$0xff]
    %v195 = vld [vmem:[#allocation7 + $0x128] sm:$0xff]
    %v196 = vld [vmem:[#allocation7 + $0x130] sm:$0xff]
    %v197 = vld [vmem:[#allocation7 + $0x138] sm:$0xff]
    %v198 = vld [vmem:[#allocation7 + $0x140] sm:$0xff]
    %v199 = vld [vmem:[#allocation7 + $0x148] sm:$0xff]
    %v200 = vld [vmem:[#allocation7 + $0x150] sm:$0xff]
    %v201 = vld [vmem:[#allocation7 + $0x158] sm:$0xff]
    %v202 = vld [vmem:[#allocation7 + $0x160] sm:$0xff]
    %v203 = vld [vmem:[#allocation7 + $0x168] sm:$0xff]
    %v204 = vld [vmem:[#allocation7 + $0x170] sm:$0xff]
    %v205 = vld [vmem:[#allocation7 + $0x178] sm:$0xff]
    %v206 = vld [vmem:[#allocation7 + $0x180] sm:$0xff]
    %v207 = vld [vmem:[#allocation7 + $0x188] sm:$0xff]
    %v208 = vld [vmem:[#allocation7 + $0x190] sm:$0xff]
    %v209 = vld [vmem:[#allocation7 + $0x198] sm:$0xff]
    %v210 = vld [vmem:[#allocation7 + $0x1a0] sm:$0xff]
    %v211 = vld [vmem:[#allocation7 + $0x1a8] sm:$0xff]
    %v212 = vld [vmem:[#allocation7 + $0x1b0] sm:$0xff]
    %v213 = vld [vmem:[#allocation7 + $0x1b8] sm:$0xff]
    %v214 = vld [vmem:[#allocation7 + $0x1c0] sm:$0xff]
    %v215 = vld [vmem:[#allocation7 + $0x1c8] sm:$0xff]
    %v216 = vld [vmem:[#allocation7 + $0x1d0] sm:$0xff]
    %v217 = vld [vmem:[#allocation7 + $0x1d8] sm:$0xff]
    %v218 = vld [vmem:[#allocation7 + $0x1e0] sm:$0xff]
    %v219 = vld [vmem:[#allocation7 + $0x1e8] sm:$0xff]
    %v220 = vld [vmem:[#allocation7 + $0x1f0] sm:$0xff]
    %v221 = vld [vmem:[#allocation7 + $0x1f8] sm:$0xff]
    %v222 = vld [vmem:[#allocation7 + $0x200] sm:$0xff]
    %v223 = vld [vmem:[#allocation7 + $0x208] sm:$0xff]
    %v224 = vld [vmem:[#allocation7 + $0x210] sm:$0xff]
    %v225 = vld [vmem:[#allocation7 + $0x218] sm:$0xff]
    %v226 = vld [vmem:[#allocation7 + $0x220] sm:$0xff]
    %v227 = vld [vmem:[#allocation7 + $0x228] sm:$0xff]
    %v228 = vld [vmem:[#allocation7 + $0x230] sm:$0xff]
    %v229 = vld [vmem:[#allocation7 + $0x238] sm:$0xff]
    %v230 = vld [vmem:[#allocation7 + $0x240] sm:$0xff]
    %v231 = vld [vmem:[#allocation7 + $0x248] sm:$0xff]
    %v232 = vld [vmem:[#allocation7 + $0x250] sm:$0xff]
    %v233 = vld [vmem:[#allocation7 + $0x258] sm:$0xff]
    %v234 = vld [vmem:[#allocation7 + $0x260] sm:$0xff]
    %v235 = vld [vmem:[#allocation7 + $0x268] sm:$0xff]
    %v236 = vld [vmem:[#allocation7 + $0x270] sm:$0xff]
    %v237 = vld [vmem:[#allocation7 + $0x278] sm:$0xff]
    %v238 = vld [vmem:[#allocation7 + $0x280] sm:$0xff]
    %v239 = vld [vmem:[#allocation7 + $0x288] sm:$0xff]
    %v240 = vld [vmem:[#allocation7 + $0x290] sm:$0xff]
    %v241 = vld [vmem:[#allocation7 + $0x298] sm:$0xff]
    %v242 = vld [vmem:[#allocation7 + $0x2a0] sm:$0xff]
    %v243 = vld [vmem:[#allocation7 + $0x2a8] sm:$0xff]
    %v244 = vld [vmem:[#allocation7 + $0x2b0] sm:$0xff]
    %v245 = vld [vmem:[#allocation7 + $0x2b8] sm:$0xff]
    %v246 = vld [vmem:[#allocation7 + $0x2c0] sm:$0xff]
    %v247 = vld [vmem:[#allocation7 + $0x2c8] sm:$0xff]
    %v248 = vld [vmem:[#allocation7 + $0x2d0] sm:$0xff]
    %v249 = vld [vmem:[#allocation7 + $0x2d8] sm:$0xff]
    %v250 = vld [vmem:[#allocation7 + $0x2e0] sm:$0xff]
    %v251 = vld [vmem:[#allocation7 + $0x2e8] sm:$0xff]
    %v252 = vld [vmem:[#allocation7 + $0x2f0] sm:$0xff]
    %v253 = vld [vmem:[#allocation7 + $0x2f8] sm:$0xff]
    %v254 = vld [vmem:[#allocation7 + $0x300] sm:$0xff]
    %v255 = vld [vmem:[#allocation7 + $0x308] sm:$0xff]
    %v256 = vld [vmem:[#allocation2] ss:$8 sm:$0xf]
    %v257 = vld [vmem:[#allocation2] ss:$8 sm:$0xf0]
    %v258 = vor.u32 %v256, %v257
    %s259 = scalar_lea.vmem [#allocation2], 64
    %v260 = vld [vmem:[%s259] ss:$8 sm:$0xf]
    %v261 = vld [vmem:[%s259] ss:$8 sm:$0xf0]
    %v262 = vor.u32 %v260, %v261
    %s263 = scalar_lea.vmem [#allocation2], 128
    %v264 = vld [vmem:[%s263] ss:$8 sm:$0xf]
    %v265 = vld [vmem:[%s263] ss:$8 sm:$0xf0]
    %v266 = vor.u32 %v264, %v265
    %s267 = scalar_lea.vmem [#allocation2], 192
    %v268 = vld [vmem:[%s267] ss:$8 sm:$0xf]
    %v269 = vld [vmem:[%s267] ss:$8 sm:$0xf0]
    %v270 = vor.u32 %v268, %v269
    %s271 = scalar_lea.vmem [#allocation2], 256
    %v272 = vld [vmem:[%s271] ss:$8 sm:$0xf]
    %v273 = vld [vmem:[%s271] ss:$8 sm:$0xf0]
    %v274 = vor.u32 %v272, %v273
    %s275 = scalar_lea.vmem [#allocation2], 320
    %v276 = vld [vmem:[%s275] ss:$8 sm:$0xf]
    %v277 = vld [vmem:[%s275] ss:$8 sm:$0xf0]
    %v278 = vor.u32 %v276, %v277
    %s279 = scalar_lea.vmem [#allocation2], 384
    %v280 = vld [vmem:[%s279] ss:$8 sm:$0x1]
    %v288 = vperm.slane %v258, 0
    %v289 = vperm.slane %v258, 1
    %v290 = vperm.slane %v258, 2
    %v291 = vperm.slane %v258, 3
    %v292 = vperm.slane %v258, 4
    %v293 = vperm.slane %v258, 5
    %v294 = vperm.slane %v258, 6
    %v295 = vperm.slane %v258, 7
    %v296 = vperm.slane %v262, 0
    %v297 = vperm.slane %v262, 1
    %v298 = vperm.slane %v262, 2
    %v299 = vperm.slane %v262, 3
    %v300 = vperm.slane %v262, 4
    %v301 = vperm.slane %v262, 5
    %v302 = vperm.slane %v262, 6
    %v303 = vperm.slane %v262, 7
    %v304 = vperm.slane %v266, 0
    %v305 = vperm.slane %v266, 1
    %v306 = vperm.slane %v266, 2
    %v307 = vperm.slane %v266, 3
    %v308 = vperm.slane %v266, 4
    %v309 = vperm.slane %v266, 5
    %v310 = vperm.slane %v266, 6
    %v311 = vperm.slane %v266, 7
    %v312 = vperm.slane %v270, 0
    %v313 = vperm.slane %v270, 1
    %v314 = vperm.slane %v270, 2
    %v315 = vperm.slane %v270, 3
    %v316 = vperm.slane %v270, 4
    %v317 = vperm.slane %v270, 5
    %v318 = vperm.slane %v270, 6
    %v319 = vperm.slane %v270, 7
    %v320 = vperm.slane %v274, 0
    %v321 = vperm.slane %v274, 1
    %v322 = vperm.slane %v274, 2
    %v323 = vperm.slane %v274, 3
    %v324 = vperm.slane %v274, 4
    %v325 = vperm.slane %v274, 5
    %v326 = vperm.slane %v274, 6
    %v327 = vperm.slane %v274, 7
    %v328 = vperm.slane %v278, 0
    %v329 = vperm.slane %v278, 1
    %v330 = vperm.slane %v278, 2
    %v331 = vperm.slane %v278, 3
    %v332 = vperm.slane %v278, 4
    %v333 = vperm.slane %v278, 5
    %v334 = vperm.slane %v278, 6
    %v335 = vperm.slane %v278, 7
    %v336 = vperm.slane %v280, 0
    %v386 = vmul.f32 %v288, %v60
    %v387 = vmul.f32 %v289, %v61
    %v388 = vmul.f32 %v290, %v62
    %v389 = vmul.f32 %v291, %v63
    %v390 = vmul.f32 %v292, %v64
    %v391 = vmul.f32 %v293, %v65
    %v392 = vmul.f32 %v294, %v66
    %v393 = vmul.f32 %v295, %v67
    %v394 = vmul.f32 %v296, %v68
    %v395 = vmul.f32 %v297, %v69
    %v396 = vmul.f32 %v298, %v70
    %v397 = vmul.f32 %v299, %v71
    %v398 = vmul.f32 %v300, %v72
    %v399 = vmul.f32 %v301, %v73
    %v400 = vmul.f32 %v302, %v74
    %v401 = vmul.f32 %v303, %v75
    %v402 = vmul.f32 %v304, %v76
    %v403 = vmul.f32 %v305, %v77
    %v404 = vmul.f32 %v306, %v78
    %v405 = vmul.f32 %v307, %v79
    %v406 = vmul.f32 %v308, %v80
    %v407 = vmul.f32 %v309, %v81
    %v408 = vmul.f32 %v310, %v82
    %v409 = vmul.f32 %v311, %v83
    %v410 = vmul.f32 %v312, %v84
    %v411 = vmul.f32 %v313, %v85
    %v412 = vmul.f32 %v314, %v86
    %v413 = vmul.f32 %v315, %v87
    %v414 = vmul.f32 %v316, %v88
    %v415 = vmul.f32 %v317, %v89
    %v416 = vmul.f32 %v318, %v90
    %v417 = vmul.f32 %v319, %v91
    %v418 = vmul.f32 %v320, %v92
    %v419 = vmul.f32 %v321, %v93
    %v420 = vmul.f32 %v322, %v94
    %v421 = vmul.f32 %v323, %v95
    %v422 = vmul.f32 %v324, %v96
    %v423 = vmul.f32 %v325, %v97
    %v424 = vmul.f32 %v326, %v98
    %v425 = vmul.f32 %v327, %v99
    %v426 = vmul.f32 %v328, %v100
    %v427 = vmul.f32 %v329, %v101
    %v428 = vmul.f32 %v330, %v102
    %v429 = vmul.f32 %v331, %v103
    %v430 = vmul.f32 %v332, %v104
    %v431 = vmul.f32 %v333, %v105
    %v432 = vmul.f32 %v334, %v106
    %v433 = vmul.f32 %v335, %v107
    %v434 = vmul.f32 %v336, %v108
    %v435 = vmul.f32 %v288, %v109
    %v436 = vmul.f32 %v289, %v110
    %v437 = vmul.f32 %v290, %v111
    %v438 = vmul.f32 %v291, %v112
    %v439 = vmul.f32 %v292, %v113
    %v440 = vmul.f32 %v293, %v114
    %v441 = vmul.f32 %v294, %v115
    %v442 = vmul.f32 %v295, %v116
    %v443 = vmul.f32 %v296, %v117
    %v444 = vmul.f32 %v297, %v118
    %v445 = vmul.f32 %v298, %v119
    %v446 = vmul.f32 %v299, %v120
    %v447 = vmul.f32 %v300, %v121
    %v448 = vmul.f32 %v301, %v122
    %v449 = vmul.f32 %v302, %v123
    %v450 = vmul.f32 %v303, %v124
    %v451 = vmul.f32 %v304, %v125
    %v452 = vmul.f32 %v305, %v126
    %v453 = vmul.f32 %v306, %v127
    %v454 = vmul.f32 %v307, %v128
    %v455 = vmul.f32 %v308, %v129
    %v456 = vmul.f32 %v309, %v130
    %v457 = vmul.f32 %v310, %v131
    %v458 = vmul.f32 %v311, %v132
    %v459 = vmul.f32 %v312, %v133
    %v460 = vmul.f32 %v313, %v134
    %v461 = vmul.f32 %v314, %v135
    %v462 = vmul.f32 %v315, %v136
    %v463 = vmul.f32 %v316, %v137
    %v464 = vmul.f32 %v317, %v138
    %v465 = vmul.f32 %v318, %v139
    %v466 = vmul.f32 %v319, %v140
    %v467 = vmul.f32 %v320, %v141
    %v468 = vmul.f32 %v321, %v142
    %v469 = vmul.f32 %v322, %v143
    %v470 = vmul.f32 %v323, %v144
    %v471 = vmul.f32 %v324, %v145
    %v472 = vmul.f32 %v325, %v146
    %v473 = vmul.f32 %v326, %v147
    %v474 = vmul.f32 %v327, %v148
    %v475 = vmul.f32 %v328, %v149
    %v476 = vmul.f32 %v329, %v150
    %v477 = vmul.f32 %v330, %v151
    %v478 = vmul.f32 %v331, %v152
    %v479 = vmul.f32 %v332, %v153
    %v480 = vmul.f32 %v333, %v154
    %v481 = vmul.f32 %v334, %v155
    %v482 = vmul.f32 %v335, %v156
    %v483 = vmul.f32 %v336, %v157
    %v484 = vadd.f32 %v386, %v158
    %v485 = vadd.f32 %v387, %v159
    %v486 = vadd.f32 %v388, %v160
    %v487 = vadd.f32 %v389, %v161
    %v488 = vadd.f32 %v390, %v162
    %v489 = vadd.f32 %v391, %v163
    %v490 = vadd.f32 %v392, %v164
    %v491 = vadd.f32 %v393, %v165
    %v492 = vadd.f32 %v394, %v166
    %v493 = vadd.f32 %v395, %v167
    %v494 = vadd.f32 %v396, %v168
    %v495 = vadd.f32 %v397, %v169
    %v496 = vadd.f32 %v398, %v170
    %v497 = vadd.f32 %v399, %v171
    %v498 = vadd.f32 %v400, %v172
    %v499 = vadd.f32 %v401, %v173
    %v500 = vadd.f32 %v402, %v174
    %v501 = vadd.f32 %v403, %v175
    %v502 = vadd.f32 %v404, %v176
    %v503 = vadd.f32 %v405, %v177
    %v504 = vadd.f32 %v406, %v178
    %v505 = vadd.f32 %v407, %v179
    %v506 = vadd.f32 %v408, %v180
    %v507 = vadd.f32 %v409, %v181
    %v508 = vadd.f32 %v410, %v182
    %v509 = vadd.f32 %v411, %v183
    %v510 = vadd.f32 %v412, %v184
    %v511 = vadd.f32 %v413, %v185
    %v512 = vadd.f32 %v414, %v186
    %v513 = vadd.f32 %v415, %v187
    %v514 = vadd.f32 %v416, %v188
    %v515 = vadd.f32 %v417, %v189
    %v516 = vadd.f32 %v418, %v190
    %v517 = vadd.f32 %v419, %v191
    %v518 = vadd.f32 %v420, %v192
    %v519 = vadd.f32 %v421, %v193
    %v520 = vadd.f32 %v422, %v194
    %v521 = vadd.f32 %v423, %v195
    %v522 = vadd.f32 %v424, %v196
    %v523 = vadd.f32 %v425, %v197
    %v524 = vadd.f32 %v426, %v198
    %v525 = vadd.f32 %v427, %v199
    %v526 = vadd.f32 %v428, %v200
    %v527 = vadd.f32 %v429, %v201
    %v528 = vadd.f32 %v430, %v202
    %v529 = vadd.f32 %v431, %v203
    %v530 = vadd.f32 %v432, %v204
    %v531 = vadd.f32 %v433, %v205
    %v532 = vadd.f32 %v434, %v206
    %v533 = vadd.f32 %v435, %v207
    %v534 = vadd.f32 %v436, %v208
    %v535 = vadd.f32 %v437, %v209
    %v536 = vadd.f32 %v438, %v210
    %v537 = vadd.f32 %v439, %v211
    %v538 = vadd.f32 %v440, %v212
    %v539 = vadd.f32 %v441, %v213
    %v540 = vadd.f32 %v442, %v214
    %v541 = vadd.f32 %v443, %v215
    %v542 = vadd.f32 %v444, %v216
    %v543 = vadd.f32 %v445, %v217
    %v544 = vadd.f32 %v446, %v218
    %v545 = vadd.f32 %v447, %v219
    %v546 = vadd.f32 %v448, %v220
    %v547 = vadd.f32 %v449, %v221
    %v548 = vadd.f32 %v450, %v222
    %v549 = vadd.f32 %v451, %v223
    %v550 = vadd.f32 %v452, %v224
    %v551 = vadd.f32 %v453, %v225
    %v552 = vadd.f32 %v454, %v226
    %v553 = vadd.f32 %v455, %v227
    %v554 = vadd.f32 %v456, %v228
    %v555 = vadd.f32 %v457, %v229
    %v556 = vadd.f32 %v458, %v230
    %v557 = vadd.f32 %v459, %v231
    %v558 = vadd.f32 %v460, %v232
    %v559 = vadd.f32 %v461, %v233
    %v560 = vadd.f32 %v462, %v234
    %v561 = vadd.f32 %v463, %v235
    %v562 = vadd.f32 %v464, %v236
    %v563 = vadd.f32 %v465, %v237
    %v564 = vadd.f32 %v466, %v238
    %v565 = vadd.f32 %v467, %v239
    %v566 = vadd.f32 %v468, %v240
    %v567 = vadd.f32 %v469, %v241
    %v568 = vadd.f32 %v470, %v242
    %v569 = vadd.f32 %v471, %v243
    %v570 = vadd.f32 %v472, %v244
    %v571 = vadd.f32 %v473, %v245
    %v572 = vadd.f32 %v474, %v246
    %v573 = vadd.f32 %v475, %v247
    %v574 = vadd.f32 %v476, %v248
    %v575 = vadd.f32 %v477, %v249
    %v576 = vadd.f32 %v478, %v250
    %v577 = vadd.f32 %v479, %v251
    %v578 = vadd.f32 %v480, %v252
    %v579 = vadd.f32 %v481, %v253
    %v580 = vadd.f32 %v482, %v254
    %v581 = vadd.f32 %v483, %v255
    %v582 = vmax.f32 %v484, 0.0
    %v583 = vmax.f32 %v485, 0.0
    %v584 = vmax.f32 %v486, 0.0
    %v585 = vmax.f32 %v487, 0.0
    %v586 = vmax.f32 %v488, 0.0
    %v587 = vmax.f32 %v489, 0.0
    %v588 = vmax.f32 %v490, 0.0
    %v589 = vmax.f32 %v491, 0.0
    %v590 = vmax.f32 %v492, 0.0
    %v591 = vmax.f32 %v493, 0.0
    %v592 = vmax.f32 %v494, 0.0
    %v593 = vmax.f32 %v495, 0.0
    %v594 = vmax.f32 %v496, 0.0
    %v595 = vmax.f32 %v497, 0.0
    %v596 = vmax.f32 %v498, 0.0
    %v597 = vmax.f32 %v499, 0.0
    %v598 = vmax.f32 %v500, 0.0
    %v599 = vmax.f32 %v501, 0.0
    %v600 = vmax.f32 %v502, 0.0
    %v601 = vmax.f32 %v503, 0.0
    %v602 = vmax.f32 %v504, 0.0
    %v603 = vmax.f32 %v505, 0.0
    %v604 = vmax.f32 %v506, 0.0
    %v605 = vmax.f32 %v507, 0.0
    %v606 = vmax.f32 %v508, 0.0
    %v607 = vmax.f32 %v509, 0.0
    %v608 = vmax.f32 %v510, 0.0
    %v609 = vmax.f32 %v511, 0.0
    %v610 = vmax.f32 %v512, 0.0
    %v611 = vmax.f32 %v513, 0.0
    %v612 = vmax.f32 %v514, 0.0
    %v613 = vmax.f32 %v515, 0.0
    %v614 = vmax.f32 %v516, 0.0
    %v615 = vmax.f32 %v517, 0.0
    %v616 = vmax.f32 %v518, 0.0
    %v617 = vmax.f32 %v519, 0.0
    %v618 = vmax.f32 %v520, 0.0
    %v619 = vmax.f32 %v521, 0.0
    %v620 = vmax.f32 %v522, 0.0
    %v621 = vmax.f32 %v523, 0.0
    %v622 = vmax.f32 %v524, 0.0
    %v623 = vmax.f32 %v525, 0.0
    %v624 = vmax.f32 %v526, 0.0
    %v625 = vmax.f32 %v527, 0.0
    %v626 = vmax.f32 %v528, 0.0
    %v627 = vmax.f32 %v529, 0.0
    %v628 = vmax.f32 %v530, 0.0
    %v629 = vmax.f32 %v531, 0.0
    %v630 = vmax.f32 %v532, 0.0
    %v631 = vmax.f32 %v533, 0.0
    %v632 = vmax.f32 %v534, 0.0
    %v633 = vmax.f32 %v535, 0.0
    %v634 = vmax.f32 %v536, 0.0
    %v635 = vmax.f32 %v537, 0.0
    %v636 = vmax.f32 %v538, 0.0
    %v637 = vmax.f32 %v539, 0.0
    %v638 = vmax.f32 %v540, 0.0
    %v639 = vmax.f32 %v541, 0.0
    %v640 = vmax.f32 %v542, 0.0
    %v641 = vmax.f32 %v543, 0.0
    %v642 = vmax.f32 %v544, 0.0
    %v643 = vmax.f32 %v545, 0.0
    %v644 = vmax.f32 %v546, 0.0
    %v645 = vmax.f32 %v547, 0.0
    %v646 = vmax.f32 %v548, 0.0
    %v647 = vmax.f32 %v549, 0.0
    %v648 = vmax.f32 %v550, 0.0
    %v649 = vmax.f32 %v551, 0.0
    %v650 = vmax.f32 %v552, 0.0
    %v651 = vmax.f32 %v553, 0.0
    %v652 = vmax.f32 %v554, 0.0
    %v653 = vmax.f32 %v555, 0.0
    %v654 = vmax.f32 %v556, 0.0
    %v655 = vmax.f32 %v557, 0.0
    %v656 = vmax.f32 %v558, 0.0
    %v657 = vmax.f32 %v559, 0.0
    %v658 = vmax.f32 %v560, 0.0
    %v659 = vmax.f32 %v561, 0.0
    %v660 = vmax.f32 %v562, 0.0
    %v661 = vmax.f32 %v563, 0.0
    %v662 = vmax.f32 %v564, 0.0
    %v663 = vmax.f32 %v565, 0.0
    %v664 = vmax.f32 %v566, 0.0
    %v665 = vmax.f32 %v567, 0.0
    %v666 = vmax.f32 %v568, 0.0
    %v667 = vmax.f32 %v569, 0.0
    %v668 = vmax.f32 %v570, 0.0
    %v669 = vmax.f32 %v571, 0.0
    %v670 = vmax.f32 %v572, 0.0
    %v671 = vmax.f32 %v573, 0.0
    %v672 = vmax.f32 %v574, 0.0
    %v673 = vmax.f32 %v575, 0.0
    %v674 = vmax.f32 %v576, 0.0
    %v675 = vmax.f32 %v577, 0.0
    %v676 = vmax.f32 %v578, 0.0
    %v677 = vmax.f32 %v579, 0.0
    %v678 = vmax.f32 %v580, 0.0
    %v679 = vmax.f32 %v581, 0.0
    %680 = vst [vmem:[#allocation8] sm:$0xff] %v582
    %681 = vst [vmem:[#allocation8 + $0x8] sm:$0xff] %v583
    %682 = vst [vmem:[#allocation8 + $0x10] sm:$0xff] %v584
    %683 = vst [vmem:[#allocation8 + $0x18] sm:$0xff] %v585
    %684 = vst [vmem:[#allocation8 + $0x20] sm:$0xff] %v586
    %685 = vst [vmem:[#allocation8 + $0x28] sm:$0xff] %v587
    %686 = vst [vmem:[#allocation8 + $0x30] sm:$0xff] %v588
    %687 = vst [vmem:[#allocation8 + $0x38] sm:$0xff] %v589
    %688 = vst [vmem:[#allocation8 + $0x40] sm:$0xff] %v590
    %689 = vst [vmem:[#allocation8 + $0x48] sm:$0xff] %v591
    %690 = vst [vmem:[#allocation8 + $0x50] sm:$0xff] %v592
    %691 = vst [vmem:[#allocation8 + $0x58] sm:$0xff] %v593
    %692 = vst [vmem:[#allocation8 + $0x60] sm:$0xff] %v594
    %693 = vst [vmem:[#allocation8 + $0x68] sm:$0xff] %v595
    %694 = vst [vmem:[#allocation8 + $0x70] sm:$0xff] %v596
    %695 = vst [vmem:[#allocation8 + $0x78] sm:$0xff] %v597
    %696 = vst [vmem:[#allocation8 + $0x80] sm:$0xff] %v598
    %697 = vst [vmem:[#allocation8 + $0x88] sm:$0xff] %v599
    %698 = vst [vmem:[#allocation8 + $0x90] sm:$0xff] %v600
    %699 = vst [vmem:[#allocation8 + $0x98] sm:$0xff] %v601
    %700 = vst [vmem:[#allocation8 + $0xa0] sm:$0xff] %v602
    %701 = vst [vmem:[#allocation8 + $0xa8] sm:$0xff] %v603
    %702 = vst [vmem:[#allocation8 + $0xb0] sm:$0xff] %v604
    %703 = vst [vmem:[#allocation8 + $0xb8] sm:$0xff] %v605
    %704 = vst [vmem:[#allocation8 + $0xc0] sm:$0xff] %v606
    %705 = vst [vmem:[#allocation8 + $0xc8] sm:$0xff] %v607
    %706 = vst [vmem:[#allocation8 + $0xd0] sm:$0xff] %v608
    %707 = vst [vmem:[#allocation8 + $0xd8] sm:$0xff] %v609
    %708 = vst [vmem:[#allocation8 + $0xe0] sm:$0xff] %v610
    %709 = vst [vmem:[#allocation8 + $0xe8] sm:$0xff] %v611
    %710 = vst [vmem:[#allocation8 + $0xf0] sm:$0xff] %v612
    %711 = vst [vmem:[#allocation8 + $0xf8] sm:$0xff] %v613
    %712 = vst [vmem:[#allocation8 + $0x100] sm:$0xff] %v614
    %713 = vst [vmem:[#allocation8 + $0x108] sm:$0xff] %v615
    %714 = vst [vmem:[#allocation8 + $0x110] sm:$0xff] %v616
    %715 = vst [vmem:[#allocation8 + $0x118] sm:$0xff] %v617
    %716 = vst [vmem:[#allocation8 + $0x120] sm:$0xff] %v618
    %717 = vst [vmem:[#allocation8 + $0x128] sm:$0xff] %v619
    %718 = vst [vmem:[#allocation8 + $0x130] sm:$0xff] %v620
    %719 = vst [vmem:[#allocation8 + $0x138] sm:$0xff] %v621
    %720 = vst [vmem:[#allocation8 + $0x140] sm:$0xff] %v622
    %721 = vst [vmem:[#allocation8 + $0x148] sm:$0xff] %v623
    %722 = vst [vmem:[#allocation8 + $0x150] sm:$0xff] %v624
    %723 = vst [vmem:[#allocation8 + $0x158] sm:$0xff] %v625
    %724 = vst [vmem:[#allocation8 + $0x160] sm:$0xff] %v626
    %725 = vst [vmem:[#allocation8 + $0x168] sm:$0xff] %v627
    %726 = vst [vmem:[#allocation8 + $0x170] sm:$0xff] %v628
    %727 = vst [vmem:[#allocation8 + $0x178] sm:$0xff] %v629
    %728 = vst [vmem:[#allocation8 + $0x180] sm:$0xff] %v630
    %729 = vst [vmem:[#allocation8 + $0x188] sm:$0xff] %v631
    %730 = vst [vmem:[#allocation8 + $0x190] sm:$0xff] %v632
    %731 = vst [vmem:[#allocation8 + $0x198] sm:$0xff] %v633
    %732 = vst [vmem:[#allocation8 + $0x1a0] sm:$0xff] %v634
    %733 = vst [vmem:[#allocation8 + $0x1a8] sm:$0xff] %v635
    %734 = vst [vmem:[#allocation8 + $0x1b0] sm:$0xff] %v636
    %735 = vst [vmem:[#allocation8 + $0x1b8] sm:$0xff] %v637
    %736 = vst [vmem:[#allocation8 + $0x1c0] sm:$0xff] %v638
    %737 = vst [vmem:[#allocation8 + $0x1c8] sm:$0xff] %v639
    %738 = vst [vmem:[#allocation8 + $0x1d0] sm:$0xff] %v640
    %739 = vst [vmem:[#allocation8 + $0x1d8] sm:$0xff] %v641
    %740 = vst [vmem:[#allocation8 + $0x1e0] sm:$0xff] %v642
    %741 = vst [vmem:[#allocation8 + $0x1e8] sm:$0xff] %v643
    %742 = vst [vmem:[#allocation8 + $0x1f0] sm:$0xff] %v644
    %743 = vst [vmem:[#allocation8 + $0x1f8] sm:$0xff] %v645
    %744 = vst [vmem:[#allocation8 + $0x200] sm:$0xff] %v646
    %745 = vst [vmem:[#allocation8 + $0x208] sm:$0xff] %v647
    %746 = vst [vmem:[#allocation8 + $0x210] sm:$0xff] %v648
    %747 = vst [vmem:[#allocation8 + $0x218] sm:$0xff] %v649
    %748 = vst [vmem:[#allocation8 + $0x220] sm:$0xff] %v650
    %749 = vst [vmem:[#allocation8 + $0x228] sm:$0xff] %v651
    %750 = vst [vmem:[#allocation8 + $0x230] sm:$0xff] %v652
    %751 = vst [vmem:[#allocation8 + $0x238] sm:$0xff] %v653
    %752 = vst [vmem:[#allocation8 + $0x240] sm:$0xff] %v654
    %753 = vst [vmem:[#allocation8 + $0x248] sm:$0xff] %v655
    %754 = vst [vmem:[#allocation8 + $0x250] sm:$0xff] %v656
    %755 = vst [vmem:[#allocation8 + $0x258] sm:$0xff] %v657
    %756 = vst [vmem:[#allocation8 + $0x260] sm:$0xff] %v658
    %757 = vst [vmem:[#allocation8 + $0x268] sm:$0xff] %v659
    %758 = vst [vmem:[#allocation8 + $0x270] sm:$0xff] %v660
    %759 = vst [vmem:[#allocation8 + $0x278] sm:$0xff] %v661
    %760 = vst [vmem:[#allocation8 + $0x280] sm:$0xff] %v662
    %761 = vst [vmem:[#allocation8 + $0x288] sm:$0xff] %v663
    %762 = vst [vmem:[#allocation8 + $0x290] sm:$0xff] %v664
    %763 = vst [vmem:[#allocation8 + $0x298] sm:$0xff] %v665
    %764 = vst [vmem:[#allocation8 + $0x2a0] sm:$0xff] %v666
    %765 = vst [vmem:[#allocation8 + $0x2a8] sm:$0xff] %v667
    %766 = vst [vmem:[#allocation8 + $0x2b0] sm:$0xff] %v668
    %767 = vst [vmem:[#allocation8 + $0x2b8] sm:$0xff] %v669
    %768 = vst [vmem:[#allocation8 + $0x2c0] sm:$0xff] %v670
    %769 = vst [vmem:[#allocation8 + $0x2c8] sm:$0xff] %v671
    %770 = vst [vmem:[#allocation8 + $0x2d0] sm:$0xff] %v672
    %771 = vst [vmem:[#allocation8 + $0x2d8] sm:$0xff] %v673
    %772 = vst [vmem:[#allocation8 + $0x2e0] sm:$0xff] %v674
    %773 = vst [vmem:[#allocation8 + $0x2e8] sm:$0xff] %v675
    %774 = vst [vmem:[#allocation8 + $0x2f0] sm:$0xff] %v676
    %775 = vst [vmem:[#allocation8 + $0x2f8] sm:$0xff] %v677
    %776 = vst [vmem:[#allocation8 + $0x300] sm:$0xff] %v678
    %777 = vst [vmem:[#allocation8 + $0x308] sm:$0xff] %v679
    %s778 = scalar_lea.vmem [#allocation2], 1
    %v779 = vld [vmem:[%s778] ss:$8 sm:$0xf]
    %v780 = vld [vmem:[%s778] ss:$8 sm:$0xf0]
    %v781 = vor.u32 %v779, %v780
    %s782 = scalar_lea.vmem [#allocation2], 65
    %v783 = vld [vmem:[%s782] ss:$8 sm:$0xf]
    %v784 = vld [vmem:[%s782] ss:$8 sm:$0xf0]
    %v785 = vor.u32 %v783, %v784
    %s786 = scalar_lea.vmem [#allocation2], 129
    %v787 = vld [vmem:[%s786] ss:$8 sm:$0xf]
    %v788 = vld [vmem:[%s786] ss:$8 sm:$0xf0]
    %v789 = vor.u32 %v787, %v788
    %s790 = scalar_lea.vmem [#allocation2], 193
    %v791 = vld [vmem:[%s790] ss:$8 sm:$0xf]
    %v792 = vld [vmem:[%s790] ss:$8 sm:$0xf0]
    %v793 = vor.u32 %v791, %v792
    %s794 = scalar_lea.vmem [#allocation2], 257
    %v795 = vld [vmem:[%s794] ss:$8 sm:$0xf]
    %v796 = vld [vmem:[%s794] ss:$8 sm:$0xf0]
    %v797 = vor.u32 %v795, %v796
    %s798 = scalar_lea.vmem [#allocation2], 321
    %v799 = vld [vmem:[%s798] ss:$8 sm:$0xf]
    %v800 = vld [vmem:[%s798] ss:$8 sm:$0xf0]
    %v801 = vor.u32 %v799, %v800
    %s802 = scalar_lea.vmem [#allocation2], 385
    %v803 = vld [vmem:[%s802] ss:$8 sm:$0x1]
    %v811 = vperm.slane %v781, 0
    %v812 = vperm.slane %v781, 1
    %v813 = vperm.slane %v781, 2
    %v814 = vperm.slane %v781, 3
    %v815 = vperm.slane %v781, 4
    %v816 = vperm.slane %v781, 5
    %v817 = vperm.slane %v781, 6
    %v818 = vperm.slane %v781, 7
    %v819 = vperm.slane %v785, 0
    %v820 = vperm.slane %v785, 1
    %v821 = vperm.slane %v785, 2
    %v822 = vperm.slane %v785, 3
    %v823 = vperm.slane %v785, 4
    %v824 = vperm.slane %v785, 5
    %v825 = vperm.slane %v785, 6
    %v826 = vperm.slane %v785, 7
    %v827 = vperm.slane %v789, 0
    %v828 = vperm.slane %v789, 1
    %v829 = vperm.slane %v789, 2
    %v830 = vperm.slane %v789, 3
    %v831 = vperm.slane %v789, 4
    %v832 = vperm.slane %v789, 5
    %v833 = vperm.slane %v789, 6
    %v834 = vperm.slane %v789, 7
    %v835 = vperm.slane %v793, 0
    %v836 = vperm.slane %v793, 1
    %v837 = vperm.slane %v793, 2
    %v838 = vperm.slane %v793, 3
    %v839 = vperm.slane %v793, 4
    %v840 = vperm.slane %v793, 5
    %v841 = vperm.slane %v793, 6
    %v842 = vperm.slane %v793, 7
    %v843 = vperm.slane %v797, 0
    %v844 = vperm.slane %v797, 1
    %v845 = vperm.slane %v797, 2
    %v846 = vperm.slane %v797, 3
    %v847 = vperm.slane %v797, 4
    %v848 = vperm.slane %v797, 5
    %v849 = vperm.slane %v797, 6
    %v850 = vperm.slane %v797, 7
    %v851 = vperm.slane %v801, 0
    %v852 = vperm.slane %v801, 1
    %v853 = vperm.slane %v801, 2
    %v854 = vperm.slane %v801, 3
    %v855 = vperm.slane %v801, 4
    %v856 = vperm.slane %v801, 5
    %v857 = vperm.slane %v801, 6
    %v858 = vperm.slane %v801, 7
    %v859 = vperm.slane %v803, 0
    %v909 = vmul.f32 %v811, %v60
    %v910 = vmul.f32 %v812, %v61
    %v911 = vmul.f32 %v813, %v62
    %v912 = vmul.f32 %v814, %v63
    %v913 = vmul.f32 %v815, %v64
    %v914 = vmul.f32 %v816, %v65
    %v915 = vmul.f32 %v817, %v66
    %v916 = vmul.f32 %v818, %v67
    %v917 = vmul.f32 %v819, %v68
    %v918 = vmul.f32 %v820, %v69
    %v919 = vmul.f32 %v821, %v70
    %v920 = vmul.f32 %v822, %v71
    %v921 = vmul.f32 %v823, %v72
    %v922 = vmul.f32 %v824, %v73
    %v923 = vmul.f32 %v825, %v74
    %v924 = vmul.f32 %v826, %v75
    %v925 = vmul.f32 %v827, %v76
    %v926 = vmul.f32 %v828, %v77
    %v927 = vmul.f32 %v829, %v78
    %v928 = vmul.f32 %v830, %v79
    %v929 = vmul.f32 %v831, %v80
    %v930 = vmul.f32 %v832, %v81
    %v931 = vmul.f32 %v833, %v82
    %v932 = vmul.f32 %v834, %v83
    %v933 = vmul.f32 %v835, %v84
    %v934 = vmul.f32 %v836, %v85
    %v935 = vmul.f32 %v837, %v86
    %v936 = vmul.f32 %v838, %v87
    %v937 = vmul.f32 %v839, %v88
    %v938 = vmul.f32 %v840, %v89
    %v939 = vmul.f32 %v841, %v90
    %v940 = vmul.f32 %v842, %v91
    %v941 = vmul.f32 %v843, %v92
    %v942 = vmul.f32 %v844, %v93
    %v943 = vmul.f32 %v845, %v94
    %v944 = vmul.f32 %v846, %v95
    %v945 = vmul.f32 %v847, %v96
    %v946 = vmul.f32 %v848, %v97
    %v947 = vmul.f32 %v849, %v98
    %v948 = vmul.f32 %v850, %v99
    %v949 = vmul.f32 %v851, %v100
    %v950 = vmul.f32 %v852, %v101
    %v951 = vmul.f32 %v853, %v102
    %v952 = vmul.f32 %v854, %v103
    %v953 = vmul.f32 %v855, %v104
    %v954 = vmul.f32 %v856, %v105
    %v955 = vmul.f32 %v857, %v106
    %v956 = vmul.f32 %v858, %v107
    %v957 = vmul.f32 %v859, %v108
    %v958 = vmul.f32 %v811, %v109
    %v959 = vmul.f32 %v812, %v110
    %v960 = vmul.f32 %v813, %v111
    %v961 = vmul.f32 %v814, %v112
    %v962 = vmul.f32 %v815, %v113
    %v963 = vmul.f32 %v816, %v114
    %v964 = vmul.f32 %v817, %v115
    %v965 = vmul.f32 %v818, %v116
    %v966 = vmul.f32 %v819, %v117
    %v967 = vmul.f32 %v820, %v118
    %v968 = vmul.f32 %v821, %v119
    %v969 = vmul.f32 %v822, %v120
    %v970 = vmul.f32 %v823, %v121
    %v971 = vmul.f32 %v824, %v122
    %v972 = vmul.f32 %v825, %v123
    %v973 = vmul.f32 %v826, %v124
    %v974 = vmul.f32 %v827, %v125
    %v975 = vmul.f32 %v828, %v126
    %v976 = vmul.f32 %v829, %v127
    %v977 = vmul.f32 %v830, %v128
    %v978 = vmul.f32 %v831, %v129
    %v979 = vmul.f32 %v832, %v130
    %v980 = vmul.f32 %v833, %v131
    %v981 = vmul.f32 %v834, %v132
    %v982 = vmul.f32 %v835, %v133
    %v983 = vmul.f32 %v836, %v134
    %v984 = vmul.f32 %v837, %v135
    %v985 = vmul.f32 %v838, %v136
    %v986 = vmul.f32 %v839, %v137
    %v987 = vmul.f32 %v840, %v138
    %v988 = vmul.f32 %v841, %v139
    %v989 = vmul.f32 %v842, %v140
    %v990 = vmul.f32 %v843, %v141
    %v991 = vmul.f32 %v844, %v142
    %v992 = vmul.f32 %v845, %v143
    %v993 = vmul.f32 %v846, %v144
    %v994 = vmul.f32 %v847, %v145
    %v995 = vmul.f32 %v848, %v146
    %v996 = vmul.f32 %v849, %v147
    %v997 = vmul.f32 %v850, %v148
    %v998 = vmul.f32 %v851, %v149
    %v999 = vmul.f32 %v852, %v150
    %v1000 = vmul.f32 %v853, %v151
    %v1001 = vmul.f32 %v854, %v152
    %v1002 = vmul.f32 %v855, %v153
    %v1003 = vmul.f32 %v856, %v154
    %v1004 = vmul.f32 %v857, %v155
    %v1005 = vmul.f32 %v858, %v156
    %v1006 = vmul.f32 %v859, %v157
    %v1007 = vadd.f32 %v909, %v158
    %v1008 = vadd.f32 %v910, %v159
    %v1009 = vadd.f32 %v911, %v160
    %v1010 = vadd.f32 %v912, %v161
    %v1011 = vadd.f32 %v913, %v162
    %v1012 = vadd.f32 %v914, %v163
    %v1013 = vadd.f32 %v915, %v164
    %v1014 = vadd.f32 %v916, %v165
    %v1015 = vadd.f32 %v917, %v166
    %v1016 = vadd.f32 %v918, %v167
    %v1017 = vadd.f32 %v919, %v168
    %v1018 = vadd.f32 %v920, %v169
    %v1019 = vadd.f32 %v921, %v170
    %v1020 = vadd.f32 %v922, %v171
    %v1021 = vadd.f32 %v923, %v172
    %v1022 = vadd.f32 %v924, %v173
    %v1023 = vadd.f32 %v925, %v174
    %v1024 = vadd.f32 %v926, %v175
    %v1025 = vadd.f32 %v927, %v176
    %v1026 = vadd.f32 %v928, %v177
    %v1027 = vadd.f32 %v929, %v178
    %v1028 = vadd.f32 %v930, %v179
    %v1029 = vadd.f32 %v931, %v180
    %v1030 = vadd.f32 %v932, %v181
    %v1031 = vadd.f32 %v933, %v182
    %v1032 = vadd.f32 %v934, %v183
    %v1033 = vadd.f32 %v935, %v184
    %v1034 = vadd.f32 %v936, %v185
    %v1035 = vadd.f32 %v937, %v186
    %v1036 = vadd.f32 %v938, %v187
    %v1037 = vadd.f32 %v939, %v188
    %v1038 = vadd.f32 %v940, %v189
    %v1039 = vadd.f32 %v941, %v190
    %v1040 = vadd.f32 %v942, %v191
    %v1041 = vadd.f32 %v943, %v192
    %v1042 = vadd.f32 %v944, %v193
    %v1043 = vadd.f32 %v945, %v194
    %v1044 = vadd.f32 %v946, %v195
    %v1045 = vadd.f32 %v947, %v196
    %v1046 = vadd.f32 %v948, %v197
    %v1047 = vadd.f32 %v949, %v198
    %v1048 = vadd.f32 %v950, %v199
    %v1049 = vadd.f32 %v951, %v200
    %v1050 = vadd.f32 %v952, %v201
    %v1051 = vadd.f32 %v953, %v202
    %v1052 = vadd.f32 %v954, %v203
    %v1053 = vadd.f32 %v955, %v204
    %v1054 = vadd.f32 %v956, %v205
    %v1055 = vadd.f32 %v957, %v206
    %v1056 = vadd.f32 %v958, %v207
    %v1057 = vadd.f32 %v959, %v208
    %v1058 = vadd.f32 %v960, %v209
    %v1059 = vadd.f32 %v961, %v210
    %v1060 = vadd.f32 %v962, %v211
    %v1061 = vadd.f32 %v963, %v212
    %v1062 = vadd.f32 %v964, %v213
    %v1063 = vadd.f32 %v965, %v214
    %v1064 = vadd.f32 %v966, %v215
    %v1065 = vadd.f32 %v967, %v216
    %v1066 = vadd.f32 %v968, %v217
    %v1067 = vadd.f32 %v969, %v218
    %v1068 = vadd.f32 %v970, %v219
    %v1069 = vadd.f32 %v971, %v220
    %v1070 = vadd.f32 %v972, %v221
    %v1071 = vadd.f32 %v973, %v222
    %v1072 = vadd.f32 %v974, %v223
    %v1073 = vadd.f32 %v975, %v224
    %v1074 = vadd.f32 %v976, %v225
    %v1075 = vadd.f32 %v977, %v226
    %v1076 = vadd.f32 %v978, %v227
    %v1077 = vadd.f32 %v979, %v228
    %v1078 = vadd.f32 %v980, %v229
    %v1079 = vadd.f32 %v981, %v230
    %v1080 = vadd.f32 %v982, %v231
    %v1081 = vadd.f32 %v983, %v232
    %v1082 = vadd.f32 %v984, %v233
    %v1083 = vadd.f32 %v985, %v234
    %v1084 = vadd.f32 %v986, %v235
    %v1085 = vadd.f32 %v987, %v236
    %v1086 = vadd.f32 %v988, %v237
    %v1087 = vadd.f32 %v989, %v238
    %v1088 = vadd.f32 %v990, %v239
    %v1089 = vadd.f32 %v991, %v240
    %v1090 = vadd.f32 %v992, %v241
    %v1091 = vadd.f32 %v993, %v242
    %v1092 = vadd.f32 %v994, %v243
    %v1093 = vadd.f32 %v995, %v244
    %v1094 = vadd.f32 %v996, %v245
    %v1095 = vadd.f32 %v997, %v246
    %v1096 = vadd.f32 %v998, %v247
    %v1097 = vadd.f32 %v999, %v248
    %v1098 = vadd.f32 %v1000, %v249
    %v1099 = vadd.f32 %v1001, %v250
    %v1100 = vadd.f32 %v1002, %v251
    %v1101 = vadd.f32 %v1003, %v252
    %v1102 = vadd.f32 %v1004, %v253
    %v1103 = vadd.f32 %v1005, %v254
    %v1104 = vadd.f32 %v1006, %v255
    %v1105 = vmax.f32 %v1007, 0.0
    %v1106 = vmax.f32 %v1008, 0.0
    %v1107 = vmax.f32 %v1009, 0.0
    %v1108 = vmax.f32 %v1010, 0.0
    %v1109 = vmax.f32 %v1011, 0.0
    %v1110 = vmax.f32 %v1012, 0.0
    %v1111 = vmax.f32 %v1013, 0.0
    %v1112 = vmax.f32 %v1014, 0.0
    %v1113 = vmax.f32 %v1015, 0.0
    %v1114 = vmax.f32 %v1016, 0.0
    %v1115 = vmax.f32 %v1017, 0.0
    %v1116 = vmax.f32 %v1018, 0.0
    %v1117 = vmax.f32 %v1019, 0.0
    %v1118 = vmax.f32 %v1020, 0.0
    %v1119 = vmax.f32 %v1021, 0.0
    %v1120 = vmax.f32 %v1022, 0.0
    %v1121 = vmax.f32 %v1023, 0.0
    %v1122 = vmax.f32 %v1024, 0.0
    %v1123 = vmax.f32 %v1025, 0.0
    %v1124 = vmax.f32 %v1026, 0.0
    %v1125 = vmax.f32 %v1027, 0.0
    %v1126 = vmax.f32 %v1028, 0.0
    %v1127 = vmax.f32 %v1029, 0.0
    %v1128 = vmax.f32 %v1030, 0.0
    %v1129 = vmax.f32 %v1031, 0.0
    %v1130 = vmax.f32 %v1032, 0.0
    %v1131 = vmax.f32 %v1033, 0.0
    %v1132 = vmax.f32 %v1034, 0.0
    %v1133 = vmax.f32 %v1035, 0.0
    %v1134 = vmax.f32 %v1036, 0.0
    %v1135 = vmax.f32 %v1037, 0.0
    %v1136 = vmax.f32 %v1038, 0.0
    %v1137 = vmax.f32 %v1039, 0.0
    %v1138 = vmax.f32 %v1040, 0.0
    %v1139 = vmax.f32 %v1041, 0.0
    %v1140 = vmax.f32 %v1042, 0.0
    %v1141 = vmax.f32 %v1043, 0.0
    %v1142 = vmax.f32 %v1044, 0.0
    %v1143 = vmax.f32 %v1045, 0.0
    %v1144 = vmax.f32 %v1046, 0.0
    %v1145 = vmax.f32 %v1047, 0.0
    %v1146 = vmax.f32 %v1048, 0.0
    %v1147 = vmax.f32 %v1049, 0.0
    %v1148 = vmax.f32 %v1050, 0.0
    %v1149 = vmax.f32 %v1051, 0.0
    %v1150 = vmax.f32 %v1052, 0.0
    %v1151 = vmax.f32 %v1053, 0.0
    %v1152 = vmax.f32 %v1054, 0.0
    %v1153 = vmax.f32 %v1055, 0.0
    %v1154 = vmax.f32 %v1056, 0.0
    %v1155 = vmax.f32 %v1057, 0.0
    %v1156 = vmax.f32 %v1058, 0.0
    %v1157 = vmax.f32 %v1059, 0.0
    %v1158 = vmax.f32 %v1060, 0.0
    %v1159 = vmax.f32 %v1061, 0.0
    %v1160 = vmax.f32 %v1062, 0.0
    %v1161 = vmax.f32 %v1063, 0.0
    %v1162 = vmax.f32 %v1064, 0.0
    %v1163 = vmax.f32 %v1065, 0.0
    %v1164 = vmax.f32 %v1066, 0.0
    %v1165 = vmax.f32 %v1067, 0.0
    %v1166 = vmax.f32 %v1068, 0.0
    %v1167 = vmax.f32 %v1069, 0.0
    %v1168 = vmax.f32 %v1070, 0.0
    %v1169 = vmax.f32 %v1071, 0.0
    %v1170 = vmax.f32 %v1072, 0.0
    %v1171 = vmax.f32 %v1073, 0.0
    %v1172 = vmax.f32 %v1074, 0.0
    %v1173 = vmax.f32 %v1075, 0.0
    %v1174 = vmax.f32 %v1076, 0.0
    %v1175 = vmax.f32 %v1077, 0.0
    %v1176 = vmax.f32 %v1078, 0.0
    %v1177 = vmax.f32 %v1079, 0.0
    %v1178 = vmax.f32 %v1080, 0.0
    %v1179 = vmax.f32 %v1081, 0.0
    %v1180 = vmax.f32 %v1082, 0.0
    %v1181 = vmax.f32 %v1083, 0.0
    %v1182 = vmax.f32 %v1084, 0.0
    %v1183 = vmax.f32 %v1085, 0.0
    %v1184 = vmax.f32 %v1086, 0.0
    %v1185 = vmax.f32 %v1087, 0.0
    %v1186 = vmax.f32 %v1088, 0.0
    %v1187 = vmax.f32 %v1089, 0.0
    %v1188 = vmax.f32 %v1090, 0.0
    %v1189 = vmax.f32 %v1091, 0.0
    %v1190 = vmax.f32 %v1092, 0.0
    %v1191 = vmax.f32 %v1093, 0.0
    %v1192 = vmax.f32 %v1094, 0.0
    %v1193 = vmax.f32 %v1095, 0.0
    %v1194 = vmax.f32 %v1096, 0.0
    %v1195 = vmax.f32 %v1097, 0.0
    %v1196 = vmax.f32 %v1098, 0.0
    %v1197 = vmax.f32 %v1099, 0.0
    %v1198 = vmax.f32 %v1100, 0.0
    %v1199 = vmax.f32 %v1101, 0.0
    %v1200 = vmax.f32 %v1102, 0.0
    %v1201 = vmax.f32 %v1103, 0.0
    %v1202 = vmax.f32 %v1104, 0.0
    %s1203 = scalar_lea.vmem [#allocation8], 784
    %1204 = vst [vmem:[%s1203] sm:$0xff] %v1105
    %1205 = vst [vmem:[%s1203 + $0x8] sm:$0xff] %v1106
    %1206 = vst [vmem:[%s1203 + $0x10] sm:$0xff] %v1107
    %1207 = vst [vmem:[%s1203 + $0x18] sm:$0xff] %v1108
    %1208 = vst [vmem:[%s1203 + $0x20] sm:$0xff] %v1109
    %1209 = vst [vmem:[%s1203 + $0x28] sm:$0xff] %v1110
    %1210 = vst [vmem:[%s1203 + $0x30] sm:$0xff] %v1111
    %1211 = vst [vmem:[%s1203 + $0x38] sm:$0xff] %v1112
    %1212 = vst [vmem:[%s1203 + $0x40] sm:$0xff] %v1113
    %1213 = vst [vmem:[%s1203 + $0x48] sm:$0xff] %v1114
    %1214 = vst [vmem:[%s1203 + $0x50] sm:$0xff] %v1115
    %1215 = vst [vmem:[%s1203 + $0x58] sm:$0xff] %v1116
    %1216 = vst [vmem:[%s1203 + $0x60] sm:$0xff] %v1117
    %1217 = vst [vmem:[%s1203 + $0x68] sm:$0xff] %v1118
    %1218 = vst [vmem:[%s1203 + $0x70] sm:$0xff] %v1119
    %1219 = vst [vmem:[%s1203 + $0x78] sm:$0xff] %v1120
    %1220 = vst [vmem:[%s1203 + $0x80] sm:$0xff] %v1121
    %1221 = vst [vmem:[%s1203 + $0x88] sm:$0xff] %v1122
    %1222 = vst [vmem:[%s1203 + $0x90] sm:$0xff] %v1123
    %1223 = vst [vmem:[%s1203 + $0x98] sm:$0xff] %v1124
    %1224 = vst [vmem:[%s1203 + $0xa0] sm:$0xff] %v1125
    %1225 = vst [vmem:[%s1203 + $0xa8] sm:$0xff] %v1126
    %1226 = vst [vmem:[%s1203 + $0xb0] sm:$0xff] %v1127
    %1227 = vst [vmem:[%s1203 + $0xb8] sm:$0xff] %v1128
    %1228 = vst [vmem:[%s1203 + $0xc0] sm:$0xff] %v1129
    %1229 = vst [vmem:[%s1203 + $0xc8] sm:$0xff] %v1130
    %1230 = vst [vmem:[%s1203 + $0xd0] sm:$0xff] %v1131
    %1231 = vst [vmem:[%s1203 + $0xd8] sm:$0xff] %v1132
    %1232 = vst [vmem:[%s1203 + $0xe0] sm:$0xff] %v1133
    %1233 = vst [vmem:[%s1203 + $0xe8] sm:$0xff] %v1134
    %1234 = vst [vmem:[%s1203 + $0xf0] sm:$0xff] %v1135
    %1235 = vst [vmem:[%s1203 + $0xf8] sm:$0xff] %v1136
    %1236 = vst [vmem:[%s1203 + $0x100] sm:$0xff] %v1137
    %1237 = vst [vmem:[%s1203 + $0x108] sm:$0xff] %v1138
    %1238 = vst [vmem:[%s1203 + $0x110] sm:$0xff] %v1139
    %1239 = vst [vmem:[%s1203 + $0x118] sm:$0xff] %v1140
    %1240 = vst [vmem:[%s1203 + $0x120] sm:$0xff] %v1141
    %1241 = vst [vmem:[%s1203 + $0x128] sm:$0xff] %v1142
    %1242 = vst [vmem:[%s1203 + $0x130] sm:$0xff] %v1143
    %1243 = vst [vmem:[%s1203 + $0x138] sm:$0xff] %v1144
    %1244 = vst [vmem:[%s1203 + $0x140] sm:$0xff] %v1145
    %1245 = vst [vmem:[%s1203 + $0x148] sm:$0xff] %v1146
    %1246 = vst [vmem:[%s1203 + $0x150] sm:$0xff] %v1147
    %1247 = vst [vmem:[%s1203 + $0x158] sm:$0xff] %v1148
    %1248 = vst [vmem:[%s1203 + $0x160] sm:$0xff] %v1149
    %1249 = vst [vmem:[%s1203 + $0x168] sm:$0xff] %v1150
    %1250 = vst [vmem:[%s1203 + $0x170] sm:$0xff] %v1151
    %1251 = vst [vmem:[%s1203 + $0x178] sm:$0xff] %v1152
    %1252 = vst [vmem:[%s1203 + $0x180] sm:$0xff] %v1153
    %1253 = vst [vmem:[%s1203 + $0x188] sm:$0xff] %v1154
    %1254 = vst [vmem:[%s1203 + $0x190] sm:$0xff] %v1155
    %1255 = vst [vmem:[%s1203 + $0x198] sm:$0xff] %v1156
    %1256 = vst [vmem:[%s1203 + $0x1a0] sm:$0xff] %v1157
    %1257 = vst [vmem:[%s1203 + $0x1a8] sm:$0xff] %v1158
    %1258 = vst [vmem:[%s1203 + $0x1b0] sm:$0xff] %v1159
    %1259 = vst [vmem:[%s1203 + $0x1b8] sm:$0xff] %v1160
    %1260 = vst [vmem:[%s1203 + $0x1c0] sm:$0xff] %v1161
    %1261 = vst [vmem:[%s1203 + $0x1c8] sm:$0xff] %v1162
    %1262 = vst [vmem:[%s1203 + $0x1d0] sm:$0xff] %v1163
    %1263 = vst [vmem:[%s1203 + $0x1d8] sm:$0xff] %v1164
    %1264 = vst [vmem:[%s1203 + $0x1e0] sm:$0xff] %v1165
    %1265 = vst [vmem:[%s1203 + $0x1e8] sm:$0xff] %v1166
    %1266 = vst [vmem:[%s1203 + $0x1f0] sm:$0xff] %v1167
    %1267 = vst [vmem:[%s1203 + $0x1f8] sm:$0xff] %v1168
    %1268 = vst [vmem:[%s1203 + $0x200] sm:$0xff] %v1169
    %1269 = vst [vmem:[%s1203 + $0x208] sm:$0xff] %v1170
    %1270 = vst [vmem:[%s1203 + $0x210] sm:$0xff] %v1171
    %1271 = vst [vmem:[%s1203 + $0x218] sm:$0xff] %v1172
    %1272 = vst [vmem:[%s1203 + $0x220] sm:$0xff] %v1173
    %1273 = vst [vmem:[%s1203 + $0x228] sm:$0xff] %v1174
    %1274 = vst [vmem:[%s1203 + $0x230] sm:$0xff] %v1175
    %1275 = vst [vmem:[%s1203 + $0x238] sm:$0xff] %v1176
    %1276 = vst [vmem:[%s1203 + $0x240] sm:$0xff] %v1177
    %1277 = vst [vmem:[%s1203 + $0x248] sm:$0xff] %v1178
    %1278 = vst [vmem:[%s1203 + $0x250] sm:$0xff] %v1179
    %1279 = vst [vmem:[%s1203 + $0x258] sm:$0xff] %v1180
    %1280 = vst [vmem:[%s1203 + $0x260] sm:$0xff] %v1181
    %1281 = vst [vmem:[%s1203 + $0x268] sm:$0xff] %v1182
    %1282 = vst [vmem:[%s1203 + $0x270] sm:$0xff] %v1183
    %1283 = vst [vmem:[%s1203 + $0x278] sm:$0xff] %v1184
    %1284 = vst [vmem:[%s1203 + $0x280] sm:$0xff] %v1185
    %1285 = vst [vmem:[%s1203 + $0x288] sm:$0xff] %v1186
    %1286 = vst [vmem:[%s1203 + $0x290] sm:$0xff] %v1187
    %1287 = vst [vmem:[%s1203 + $0x298] sm:$0xff] %v1188
    %1288 = vst [vmem:[%s1203 + $0x2a0] sm:$0xff] %v1189
    %1289 = vst [vmem:[%s1203 + $0x2a8] sm:$0xff] %v1190
    %1290 = vst [vmem:[%s1203 + $0x2b0] sm:$0xff] %v1191
    %1291 = vst [vmem:[%s1203 + $0x2b8] sm:$0xff] %v1192
    %1292 = vst [vmem:[%s1203 + $0x2c0] sm:$0xff] %v1193
    %1293 = vst [vmem:[%s1203 + $0x2c8] sm:$0xff] %v1194
    %1294 = vst [vmem:[%s1203 + $0x2d0] sm:$0xff] %v1195
    %1295 = vst [vmem:[%s1203 + $0x2d8] sm:$0xff] %v1196
    %1296 = vst [vmem:[%s1203 + $0x2e0] sm:$0xff] %v1197
    %1297 = vst [vmem:[%s1203 + $0x2e8] sm:$0xff] %v1198
    %1298 = vst [vmem:[%s1203 + $0x2f0] sm:$0xff] %v1199
    %1299 = vst [vmem:[%s1203 + $0x2f8] sm:$0xff] %v1200
    %1300 = vst [vmem:[%s1203 + $0x300] sm:$0xff] %v1201
    %1301 = vst [vmem:[%s1203 + $0x308] sm:$0xff] %v1202
    %s1302 = scalar_lea.vmem [#allocation2], 2
    %v1303 = vld [vmem:[%s1302] ss:$8 sm:$0xf]
    %v1304 = vld [vmem:[%s1302] ss:$8 sm:$0xf0]
    %v1305 = vor.u32 %v1303, %v1304
    %s1306 = scalar_lea.vmem [#allocation2], 66
    %v1307 = vld [vmem:[%s1306] ss:$8 sm:$0xf]
    %v1308 = vld [vmem:[%s1306] ss:$8 sm:$0xf0]
    %v1309 = vor.u32 %v1307, %v1308
    %s1310 = scalar_lea.vmem [#allocation2], 130
    %v1311 = vld [vmem:[%s1310] ss:$8 sm:$0xf]
    %v1312 = vld [vmem:[%s1310] ss:$8 sm:$0xf0]
    %v1313 = vor.u32 %v1311, %v1312
    %s1314 = scalar_lea.vmem [#allocation2], 194
    %v1315 = vld [vmem:[%s1314] ss:$8 sm:$0xf]
    %v1316 = vld [vmem:[%s1314] ss:$8 sm:$0xf0]
    %v1317 = vor.u32 %v1315, %v1316
    %s1318 = scalar_lea.vmem [#allocation2], 258
    %v1319 = vld [vmem:[%s1318] ss:$8 sm:$0xf]
    %v1320 = vld [vmem:[%s1318] ss:$8 sm:$0xf0]
    %v1321 = vor.u32 %v1319, %v1320
    %s1322 = scalar_lea.vmem [#allocation2], 322
    %v1323 = vld [vmem:[%s1322] ss:$8 sm:$0xf]
    %v1324 = vld [vmem:[%s1322] ss:$8 sm:$0xf0]
    %v1325 = vor.u32 %v1323, %v1324
    %s1326 = scalar_lea.vmem [#allocation2], 386
    %v1327 = vld [vmem:[%s1326] ss:$8 sm:$0x1]
    %v1335 = vperm.slane %v1305, 0
    %v1336 = vperm.slane %v1305, 1
    %v1337 = vperm.slane %v1305, 2
    %v1338 = vperm.slane %v1305, 3
    %v1339 = vperm.slane %v1305, 4
    %v1340 = vperm.slane %v1305, 5
    %v1341 = vperm.slane %v1305, 6
    %v1342 = vperm.slane %v1305, 7
    %v1343 = vperm.slane %v1309, 0
    %v1344 = vperm.slane %v1309, 1
    %v1345 = vperm.slane %v1309, 2
    %v1346 = vperm.slane %v1309, 3
    %v1347 = vperm.slane %v1309, 4
    %v1348 = vperm.slane %v1309, 5
    %v1349 = vperm.slane %v1309, 6
    %v1350 = vperm.slane %v1309, 7
    %v1351 = vperm.slane %v1313, 0
    %v1352 = vperm.slane %v1313, 1
    %v1353 = vperm.slane %v1313, 2
    %v1354 = vperm.slane %v1313, 3
    %v1355 = vperm.slane %v1313, 4
    %v1356 = vperm.slane %v1313, 5
    %v1357 = vperm.slane %v1313, 6
    %v1358 = vperm.slane %v1313, 7
    %v1359 = vperm.slane %v1317, 0
    %v1360 = vperm.slane %v1317, 1
    %v1361 = vperm.slane %v1317, 2
    %v1362 = vperm.slane %v1317, 3
    %v1363 = vperm.slane %v1317, 4
    %v1364 = vperm.slane %v1317, 5
    %v1365 = vperm.slane %v1317, 6
    %v1366 = vperm.slane %v1317, 7
    %v1367 = vperm.slane %v1321, 0
    %v1368 = vperm.slane %v1321, 1
    %v1369 = vperm.slane %v1321, 2
    %v1370 = vperm.slane %v1321, 3
    %v1371 = vperm.slane %v1321, 4
    %v1372 = vperm.slane %v1321, 5
    %v1373 = vperm.slane %v1321, 6
    %v1374 = vperm.slane %v1321, 7
    %v1375 = vperm.slane %v1325, 0
    %v1376 = vperm.slane %v1325, 1
    %v1377 = vperm.slane %v1325, 2
    %v1378 = vperm.slane %v1325, 3
    %v1379 = vperm.slane %v1325, 4
    %v1380 = vperm.slane %v1325, 5
    %v1381 = vperm.slane %v1325, 6
    %v1382 = vperm.slane %v1325, 7
    %v1383 = vperm.slane %v1327, 0
    %v1433 = vmul.f32 %v1335, %v60
    %v1434 = vmul.f32 %v1336, %v61
    %v1435 = vmul.f32 %v1337, %v62
    %v1436 = vmul.f32 %v1338, %v63
    %v1437 = vmul.f32 %v1339, %v64
    %v1438 = vmul.f32 %v1340, %v65
    %v1439 = vmul.f32 %v1341, %v66
    %v1440 = vmul.f32 %v1342, %v67
    %v1441 = vmul.f32 %v1343, %v68
    %v1442 = vmul.f32 %v1344, %v69
    %v1443 = vmul.f32 %v1345, %v70
    %v1444 = vmul.f32 %v1346, %v71
    %v1445 = vmul.f32 %v1347, %v72
    %v1446 = vmul.f32 %v1348, %v73
    %v1447 = vmul.f32 %v1349, %v74
    %v1448 = vmul.f32 %v1350, %v75
    %v1449 = vmul.f32 %v1351, %v76
    %v1450 = vmul.f32 %v1352, %v77
    %v1451 = vmul.f32 %v1353, %v78
    %v1452 = vmul.f32 %v1354, %v79
    %v1453 = vmul.f32 %v1355, %v80
    %v1454 = vmul.f32 %v1356, %v81
    %v1455 = vmul.f32 %v1357, %v82
    %v1456 = vmul.f32 %v1358, %v83
    %v1457 = vmul.f32 %v1359, %v84
    %v1458 = vmul.f32 %v1360, %v85
    %v1459 = vmul.f32 %v1361, %v86
    %v1460 = vmul.f32 %v1362, %v87
    %v1461 = vmul.f32 %v1363, %v88
    %v1462 = vmul.f32 %v1364, %v89
    %v1463 = vmul.f32 %v1365, %v90
    %v1464 = vmul.f32 %v1366, %v91
    %v1465 = vmul.f32 %v1367, %v92
    %v1466 = vmul.f32 %v1368, %v93
    %v1467 = vmul.f32 %v1369, %v94
    %v1468 = vmul.f32 %v1370, %v95
    %v1469 = vmul.f32 %v1371, %v96
    %v1470 = vmul.f32 %v1372, %v97
    %v1471 = vmul.f32 %v1373, %v98
    %v1472 = vmul.f32 %v1374, %v99
    %v1473 = vmul.f32 %v1375, %v100
    %v1474 = vmul.f32 %v1376, %v101
    %v1475 = vmul.f32 %v1377, %v102
    %v1476 = vmul.f32 %v1378, %v103
    %v1477 = vmul.f32 %v1379, %v104
    %v1478 = vmul.f32 %v1380, %v105
    %v1479 = vmul.f32 %v1381, %v106
    %v1480 = vmul.f32 %v1382, %v107
    %v1481 = vmul.f32 %v1383, %v108
    %v1482 = vmul.f32 %v1335, %v109
    %v1483 = vmul.f32 %v1336, %v110
    %v1484 = vmul.f32 %v1337, %v111
    %v1485 = vmul.f32 %v1338, %v112
    %v1486 = vmul.f32 %v1339, %v113
    %v1487 = vmul.f32 %v1340, %v114
    %v1488 = vmul.f32 %v1341, %v115
    %v1489 = vmul.f32 %v1342, %v116
    %v1490 = vmul.f32 %v1343, %v117
    %v1491 = vmul.f32 %v1344, %v118
    %v1492 = vmul.f32 %v1345, %v119
    %v1493 = vmul.f32 %v1346, %v120
    %v1494 = vmul.f32 %v1347, %v121
    %v1495 = vmul.f32 %v1348, %v122
    %v1496 = vmul.f32 %v1349, %v123
    %v1497 = vmul.f32 %v1350, %v124
    %v1498 = vmul.f32 %v1351, %v125
    %v1499 = vmul.f32 %v1352, %v126
    %v1500 = vmul.f32 %v1353, %v127
    %v1501 = vmul.f32 %v1354, %v128
    %v1502 = vmul.f32 %v1355, %v129
    %v1503 = vmul.f32 %v1356, %v130
    %v1504 = vmul.f32 %v1357, %v131
    %v1505 = vmul.f32 %v1358, %v132
    %v1506 = vmul.f32 %v1359, %v133
    %v1507 = vmul.f32 %v1360, %v134
    %v1508 = vmul.f32 %v1361, %v135
    %v1509 = vmul.f32 %v1362, %v136
    %v1510 = vmul.f32 %v1363, %v137
    %v1511 = vmul.f32 %v1364, %v138
    %v1512 = vmul.f32 %v1365, %v139
    %v1513 = vmul.f32 %v1366, %v140
    %v1514 = vmul.f32 %v1367, %v141
    %v1515 = vmul.f32 %v1368, %v142
    %v1516 = vmul.f32 %v1369, %v143
    %v1517 = vmul.f32 %v1370, %v144
    %v1518 = vmul.f32 %v1371, %v145
    %v1519 = vmul.f32 %v1372, %v146
    %v1520 = vmul.f32 %v1373, %v147
    %v1521 = vmul.f32 %v1374, %v148
    %v1522 = vmul.f32 %v1375, %v149
    %v1523 = vmul.f32 %v1376, %v150
    %v1524 = vmul.f32 %v1377, %v151
    %v1525 = vmul.f32 %v1378, %v152
    %v1526 = vmul.f32 %v1379, %v153
    %v1527 = vmul.f32 %v1380, %v154
    %v1528 = vmul.f32 %v1381, %v155
    %v1529 = vmul.f32 %v1382, %v156
    %v1530 = vmul.f32 %v1383, %v157
    %v1531 = vadd.f32 %v1433, %v158
    %v1532 = vadd.f32 %v1434, %v159
    %v1533 = vadd.f32 %v1435, %v160
    %v1534 = vadd.f32 %v1436, %v161
    %v1535 = vadd.f32 %v1437, %v162
    %v1536 = vadd.f32 %v1438, %v163
    %v1537 = vadd.f32 %v1439, %v164
    %v1538 = vadd.f32 %v1440, %v165
    %v1539 = vadd.f32 %v1441, %v166
    %v1540 = vadd.f32 %v1442, %v167
    %v1541 = vadd.f32 %v1443, %v168
    %v1542 = vadd.f32 %v1444, %v169
    %v1543 = vadd.f32 %v1445, %v170
    %v1544 = vadd.f32 %v1446, %v171
    %v1545 = vadd.f32 %v1447, %v172
    %v1546 = vadd.f32 %v1448, %v173
    %v1547 = vadd.f32 %v1449, %v174
    %v1548 = vadd.f32 %v1450, %v175
    %v1549 = vadd.f32 %v1451, %v176
    %v1550 = vadd.f32 %v1452, %v177
    %v1551 = vadd.f32 %v1453, %v178
    %v1552 = vadd.f32 %v1454, %v179
    %v1553 = vadd.f32 %v1455, %v180
    %v1554 = vadd.f32 %v1456, %v181
    %v1555 = vadd.f32 %v1457, %v182
    %v1556 = vadd.f32 %v1458, %v183
    %v1557 = vadd.f32 %v1459, %v184
    %v1558 = vadd.f32 %v1460, %v185
    %v1559 = vadd.f32 %v1461, %v186
    %v1560 = vadd.f32 %v1462, %v187
    %v1561 = vadd.f32 %v1463, %v188
    %v1562 = vadd.f32 %v1464, %v189
    %v1563 = vadd.f32 %v1465, %v190
    %v1564 = vadd.f32 %v1466, %v191
    %v1565 = vadd.f32 %v1467, %v192
    %v1566 = vadd.f32 %v1468, %v193
    %v1567 = vadd.f32 %v1469, %v194
    %v1568 = vadd.f32 %v1470, %v195
    %v1569 = vadd.f32 %v1471, %v196
    %v1570 = vadd.f32 %v1472, %v197
    %v1571 = vadd.f32 %v1473, %v198
    %v1572 = vadd.f32 %v1474, %v199
    %v1573 = vadd.f32 %v1475, %v200
    %v1574 = vadd.f32 %v1476, %v201
    %v1575 = vadd.f32 %v1477, %v202
    %v1576 = vadd.f32 %v1478, %v203
    %v1577 = vadd.f32 %v1479, %v204
    %v1578 = vadd.f32 %v1480, %v205
    %v1579 = vadd.f32 %v1481, %v206
    %v1580 = vadd.f32 %v1482, %v207
    %v1581 = vadd.f32 %v1483, %v208
    %v1582 = vadd.f32 %v1484, %v209
    %v1583 = vadd.f32 %v1485, %v210
    %v1584 = vadd.f32 %v1486, %v211
    %v1585 = vadd.f32 %v1487, %v212
    %v1586 = vadd.f32 %v1488, %v213
    %v1587 = vadd.f32 %v1489, %v214
    %v1588 = vadd.f32 %v1490, %v215
    %v1589 = vadd.f32 %v1491, %v216
    %v1590 = vadd.f32 %v1492, %v217
    %v1591 = vadd.f32 %v1493, %v218
    %v1592 = vadd.f32 %v1494, %v219
    %v1593 = vadd.f32 %v1495, %v220
    %v1594 = vadd.f32 %v1496, %v221
    %v1595 = vadd.f32 %v1497, %v222
    %v1596 = vadd.f32 %v1498, %v223
    %v1597 = vadd.f32 %v1499, %v224
    %v1598 = vadd.f32 %v1500, %v225
    %v1599 = vadd.f32 %v1501, %v226
    %v1600 = vadd.f32 %v1502, %v227
    %v1601 = vadd.f32 %v1503, %v228
    %v1602 = vadd.f32 %v1504, %v229
    %v1603 = vadd.f32 %v1505, %v230
    %v1604 = vadd.f32 %v1506, %v231
    %v1605 = vadd.f32 %v1507, %v232
    %v1606 = vadd.f32 %v1508, %v233
    %v1607 = vadd.f32 %v1509, %v234
    %v1608 = vadd.f32 %v1510, %v235
    %v1609 = vadd.f32 %v1511, %v236
    %v1610 = vadd.f32 %v1512, %v237
    %v1611 = vadd.f32 %v1513, %v238
    %v1612 = vadd.f32 %v1514, %v239
    %v1613 = vadd.f32 %v1515, %v240
    %v1614 = vadd.f32 %v1516, %v241
    %v1615 = vadd.f32 %v1517, %v242
    %v1616 = vadd.f32 %v1518, %v243
    %v1617 = vadd.f32 %v1519, %v244
    %v1618 = vadd.f32 %v1520, %v245
    %v1619 = vadd.f32 %v1521, %v246
    %v1620 = vadd.f32 %v1522, %v247
    %v1621 = vadd.f32 %v1523, %v248
    %v1622 = vadd.f32 %v1524, %v249
    %v1623 = vadd.f32 %v1525, %v250
    %v1624 = vadd.f32 %v1526, %v251
    %v1625 = vadd.f32 %v1527, %v252
    %v1626 = vadd.f32 %v1528, %v253
    %v1627 = vadd.f32 %v1529, %v254
    %v1628 = vadd.f32 %v1530, %v255
    %v1629 = vmax.f32 %v1531, 0.0
    %v1630 = vmax.f32 %v1532, 0.0
    %v1631 = vmax.f32 %v1533, 0.0
    %v1632 = vmax.f32 %v1534, 0.0
    %v1633 = vmax.f32 %v1535, 0.0
    %v1634 = vmax.f32 %v1536, 0.0
    %v1635 = vmax.f32 %v1537, 0.0
    %v1636 = vmax.f32 %v1538, 0.0
    %v1637 = vmax.f32 %v1539, 0.0
    %v1638 = vmax.f32 %v1540, 0.0
    %v1639 = vmax.f32 %v1541, 0.0
    %v1640 = vmax.f32 %v1542, 0.0
    %v1641 = vmax.f32 %v1543, 0.0
    %v1642 = vmax.f32 %v1544, 0.0
    %v1643 = vmax.f32 %v1545, 0.0
    %v1644 = vmax.f32 %v1546, 0.0
    %v1645 = vmax.f32 %v1547, 0.0
    %v1646 = vmax.f32 %v1548, 0.0
    %v1647 = vmax.f32 %v1549, 0.0
    %v1648 = vmax.f32 %v1550, 0.0
    %v1649 = vmax.f32 %v1551, 0.0
    %v1650 = vmax.f32 %v1552, 0.0
    %v1651 = vmax.f32 %v1553, 0.0
    %v1652 = vmax.f32 %v1554, 0.0
    %v1653 = vmax.f32 %v1555, 0.0
    %v1654 = vmax.f32 %v1556, 0.0
    %v1655 = vmax.f32 %v1557, 0.0
    %v1656 = vmax.f32 %v1558, 0.0
    %v1657 = vmax.f32 %v1559, 0.0
    %v1658 = vmax.f32 %v1560, 0.0
    %v1659 = vmax.f32 %v1561, 0.0
    %v1660 = vmax.f32 %v1562, 0.0
    %v1661 = vmax.f32 %v1563, 0.0
    %v1662 = vmax.f32 %v1564, 0.0
    %v1663 = vmax.f32 %v1565, 0.0
    %v1664 = vmax.f32 %v1566, 0.0
    %v1665 = vmax.f32 %v1567, 0.0
    %v1666 = vmax.f32 %v1568, 0.0
    %v1667 = vmax.f32 %v1569, 0.0
    %v1668 = vmax.f32 %v1570, 0.0
    %v1669 = vmax.f32 %v1571, 0.0
    %v1670 = vmax.f32 %v1572, 0.0
    %v1671 = vmax.f32 %v1573, 0.0
    %v1672 = vmax.f32 %v1574, 0.0
    %v1673 = vmax.f32 %v1575, 0.0
    %v1674 = vmax.f32 %v1576, 0.0
    %v1675 = vmax.f32 %v1577, 0.0
    %v1676 = vmax.f32 %v1578, 0.0
    %v1677 = vmax.f32 %v1579, 0.0
    %v1678 = vmax.f32 %v1580, 0.0
    %v1679 = vmax.f32 %v1581, 0.0
    %v1680 = vmax.f32 %v1582, 0.0
    %v1681 = vmax.f32 %v1583, 0.0
    %v1682 = vmax.f32 %v1584, 0.0
    %v1683 = vmax.f32 %v1585, 0.0
    %v1684 = vmax.f32 %v1586, 0.0
    %v1685 = vmax.f32 %v1587, 0.0
    %v1686 = vmax.f32 %v1588, 0.0
    %v1687 = vmax.f32 %v1589, 0.0
    %v1688 = vmax.f32 %v1590, 0.0
    %v1689 = vmax.f32 %v1591, 0.0
    %v1690 = vmax.f32 %v1592, 0.0
    %v1691 = vmax.f32 %v1593, 0.0
    %v1692 = vmax.f32 %v1594, 0.0
    %v1693 = vmax.f32 %v1595, 0.0
    %v1694 = vmax.f32 %v1596, 0.0
    %v1695 = vmax.f32 %v1597, 0.0
    %v1696 = vmax.f32 %v1598, 0.0
    %v1697 = vmax.f32 %v1599, 0.0
    %v1698 = vmax.f32 %v1600, 0.0
    %v1699 = vmax.f32 %v1601, 0.0
    %v1700 = vmax.f32 %v1602, 0.0
    %v1701 = vmax.f32 %v1603, 0.0
    %v1702 = vmax.f32 %v1604, 0.0
    %v1703 = vmax.f32 %v1605, 0.0
    %v1704 = vmax.f32 %v1606, 0.0
    %v1705 = vmax.f32 %v1607, 0.0
    %v1706 = vmax.f32 %v1608, 0.0
    %v1707 = vmax.f32 %v1609, 0.0
    %v1708 = vmax.f32 %v1610, 0.0
    %v1709 = vmax.f32 %v1611, 0.0
    %v1710 = vmax.f32 %v1612, 0.0
    %v1711 = vmax.f32 %v1613, 0.0
    %v1712 = vmax.f32 %v1614, 0.0
    %v1713 = vmax.f32 %v1615, 0.0
    %v1714 = vmax.f32 %v1616, 0.0
    %v1715 = vmax.f32 %v1617, 0.0
    %v1716 = vmax.f32 %v1618, 0.0
    %v1717 = vmax.f32 %v1619, 0.0
    %v1718 = vmax.f32 %v1620, 0.0
    %v1719 = vmax.f32 %v1621, 0.0
    %v1720 = vmax.f32 %v1622, 0.0
    %v1721 = vmax.f32 %v1623, 0.0
    %v1722 = vmax.f32 %v1624, 0.0
    %v1723 = vmax.f32 %v1625, 0.0
    %v1724 = vmax.f32 %v1626, 0.0
    %v1725 = vmax.f32 %v1627, 0.0
    %v1726 = vmax.f32 %v1628, 0.0
    %s1727 = scalar_lea.vmem [#allocation8], 1568
    %1728 = vst [vmem:[%s1727] sm:$0xff] %v1629
    %1729 = vst [vmem:[%s1727 + $0x8] sm:$0xff] %v1630
    %1730 = vst [vmem:[%s1727 + $0x10] sm:$0xff] %v1631
    %1731 = vst [vmem:[%s1727 + $0x18] sm:$0xff] %v1632
    %1732 = vst [vmem:[%s1727 + $0x20] sm:$0xff] %v1633
    %1733 = vst [vmem:[%s1727 + $0x28] sm:$0xff] %v1634
    %1734 = vst [vmem:[%s1727 + $0x30] sm:$0xff] %v1635
    %1735 = vst [vmem:[%s1727 + $0x38] sm:$0xff] %v1636
    %1736 = vst [vmem:[%s1727 + $0x40] sm:$0xff] %v1637
    %1737 = vst [vmem:[%s1727 + $0x48] sm:$0xff] %v1638
    %1738 = vst [vmem:[%s1727 + $0x50] sm:$0xff] %v1639
    %1739 = vst [vmem:[%s1727 + $0x58] sm:$0xff] %v1640
    %1740 = vst [vmem:[%s1727 + $0x60] sm:$0xff] %v1641
    %1741 = vst [vmem:[%s1727 + $0x68] sm:$0xff] %v1642
    %1742 = vst [vmem:[%s1727 + $0x70] sm:$0xff] %v1643
    %1743 = vst [vmem:[%s1727 + $0x78] sm:$0xff] %v1644
    %1744 = vst [vmem:[%s1727 + $0x80] sm:$0xff] %v1645
    %1745 = vst [vmem:[%s1727 + $0x88] sm:$0xff] %v1646
    %1746 = vst [vmem:[%s1727 + $0x90] sm:$0xff] %v1647
    %1747 = vst [vmem:[%s1727 + $0x98] sm:$0xff] %v1648
    %1748 = vst [vmem:[%s1727 + $0xa0] sm:$0xff] %v1649
    %1749 = vst [vmem:[%s1727 + $0xa8] sm:$0xff] %v1650
    %1750 = vst [vmem:[%s1727 + $0xb0] sm:$0xff] %v1651
    %1751 = vst [vmem:[%s1727 + $0xb8] sm:$0xff] %v1652
    %1752 = vst [vmem:[%s1727 + $0xc0] sm:$0xff] %v1653
    %1753 = vst [vmem:[%s1727 + $0xc8] sm:$0xff] %v1654
    %1754 = vst [vmem:[%s1727 + $0xd0] sm:$0xff] %v1655
    %1755 = vst [vmem:[%s1727 + $0xd8] sm:$0xff] %v1656
    %1756 = vst [vmem:[%s1727 + $0xe0] sm:$0xff] %v1657
    %1757 = vst [vmem:[%s1727 + $0xe8] sm:$0xff] %v1658
    %1758 = vst [vmem:[%s1727 + $0xf0] sm:$0xff] %v1659
    %1759 = vst [vmem:[%s1727 + $0xf8] sm:$0xff] %v1660
    %1760 = vst [vmem:[%s1727 + $0x100] sm:$0xff] %v1661
    %1761 = vst [vmem:[%s1727 + $0x108] sm:$0xff] %v1662
    %1762 = vst [vmem:[%s1727 + $0x110] sm:$0xff] %v1663
    %1763 = vst [vmem:[%s1727 + $0x118] sm:$0xff] %v1664
    %1764 = vst [vmem:[%s1727 + $0x120] sm:$0xff] %v1665
    %1765 = vst [vmem:[%s1727 + $0x128] sm:$0xff] %v1666
    %1766 = vst [vmem:[%s1727 + $0x130] sm:$0xff] %v1667
    %1767 = vst [vmem:[%s1727 + $0x138] sm:$0xff] %v1668
    %1768 = vst [vmem:[%s1727 + $0x140] sm:$0xff] %v1669
    %1769 = vst [vmem:[%s1727 + $0x148] sm:$0xff] %v1670
    %1770 = vst [vmem:[%s1727 + $0x150] sm:$0xff] %v1671
    %1771 = vst [vmem:[%s1727 + $0x158] sm:$0xff] %v1672
    %1772 = vst [vmem:[%s1727 + $0x160] sm:$0xff] %v1673
    %1773 = vst [vmem:[%s1727 + $0x168] sm:$0xff] %v1674
    %1774 = vst [vmem:[%s1727 + $0x170] sm:$0xff] %v1675
    %1775 = vst [vmem:[%s1727 + $0x178] sm:$0xff] %v1676
    %1776 = vst [vmem:[%s1727 + $0x180] sm:$0xff] %v1677
    %1777 = vst [vmem:[%s1727 + $0x188] sm:$0xff] %v1678
    %1778 = vst [vmem:[%s1727 + $0x190] sm:$0xff] %v1679
    %1779 = vst [vmem:[%s1727 + $0x198] sm:$0xff] %v1680
    %1780 = vst [vmem:[%s1727 + $0x1a0] sm:$0xff] %v1681
    %1781 = vst [vmem:[%s1727 + $0x1a8] sm:$0xff] %v1682
    %1782 = vst [vmem:[%s1727 + $0x1b0] sm:$0xff] %v1683
    %1783 = vst [vmem:[%s1727 + $0x1b8] sm:$0xff] %v1684
    %1784 = vst [vmem:[%s1727 + $0x1c0] sm:$0xff] %v1685
    %1785 = vst [vmem:[%s1727 + $0x1c8] sm:$0xff] %v1686
    %1786 = vst [vmem:[%s1727 + $0x1d0] sm:$0xff] %v1687
    %1787 = vst [vmem:[%s1727 + $0x1d8] sm:$0xff] %v1688
    %1788 = vst [vmem:[%s1727 + $0x1e0] sm:$0xff] %v1689
    %1789 = vst [vmem:[%s1727 + $0x1e8] sm:$0xff] %v1690
    %1790 = vst [vmem:[%s1727 + $0x1f0] sm:$0xff] %v1691
    %1791 = vst [vmem:[%s1727 + $0x1f8] sm:$0xff] %v1692
    %1792 = vst [vmem:[%s1727 + $0x200] sm:$0xff] %v1693
    %1793 = vst [vmem:[%s1727 + $0x208] sm:$0xff] %v1694
    %1794 = vst [vmem:[%s1727 + $0x210] sm:$0xff] %v1695
    %1795 = vst [vmem:[%s1727 + $0x218] sm:$0xff] %v1696
    %1796 = vst [vmem:[%s1727 + $0x220] sm:$0xff] %v1697
    %1797 = vst [vmem:[%s1727 + $0x228] sm:$0xff] %v1698
    %1798 = vst [vmem:[%s1727 + $0x230] sm:$0xff] %v1699
    %1799 = vst [vmem:[%s1727 + $0x238] sm:$0xff] %v1700
    %1800 = vst [vmem:[%s1727 + $0x240] sm:$0xff] %v1701
    %1801 = vst [vmem:[%s1727 + $0x248] sm:$0xff] %v1702
    %1802 = vst [vmem:[%s1727 + $0x250] sm:$0xff] %v1703
    %1803 = vst [vmem:[%s1727 + $0x258] sm:$0xff] %v1704
    %1804 = vst [vmem:[%s1727 + $0x260] sm:$0xff] %v1705
    %1805 = vst [vmem:[%s1727 + $0x268] sm:$0xff] %v1706
    %1806 = vst [vmem:[%s1727 + $0x270] sm:$0xff] %v1707
    %1807 = vst [vmem:[%s1727 + $0x278] sm:$0xff] %v1708
    %1808 = vst [vmem:[%s1727 + $0x280] sm:$0xff] %v1709
    %1809 = vst [vmem:[%s1727 + $0x288] sm:$0xff] %v1710
    %1810 = vst [vmem:[%s1727 + $0x290] sm:$0xff] %v1711
    %1811 = vst [vmem:[%s1727 + $0x298] sm:$0xff] %v1712
    %1812 = vst [vmem:[%s1727 + $0x2a0] sm:$0xff] %v1713
    %1813 = vst [vmem:[%s1727 + $0x2a8] sm:$0xff] %v1714
    %1814 = vst [vmem:[%s1727 + $0x2b0] sm:$0xff] %v1715
    %1815 = vst [vmem:[%s1727 + $0x2b8] sm:$0xff] %v1716
    %1816 = vst [vmem:[%s1727 + $0x2c0] sm:$0xff] %v1717
    %1817 = vst [vmem:[%s1727 + $0x2c8] sm:$0xff] %v1718
    %1818 = vst [vmem:[%s1727 + $0x2d0] sm:$0xff] %v1719
    %1819 = vst [vmem:[%s1727 + $0x2d8] sm:$0xff] %v1720
    %1820 = vst [vmem:[%s1727 + $0x2e0] sm:$0xff] %v1721
    %1821 = vst [vmem:[%s1727 + $0x2e8] sm:$0xff] %v1722
    %1822 = vst [vmem:[%s1727 + $0x2f0] sm:$0xff] %v1723
    %1823 = vst [vmem:[%s1727 + $0x2f8] sm:$0xff] %v1724
    %1824 = vst [vmem:[%s1727 + $0x300] sm:$0xff] %v1725
    %1825 = vst [vmem:[%s1727 + $0x308] sm:$0xff] %v1726
    %s1826 = scalar_lea.vmem [#allocation2], 3
    %v1827 = vld [vmem:[%s1826] ss:$8 sm:$0xf]
    %v1828 = vld [vmem:[%s1826] ss:$8 sm:$0xf0]
    %v1829 = vor.u32 %v1827, %v1828
    %s1830 = scalar_lea.vmem [#allocation2], 67
    %v1831 = vld [vmem:[%s1830] ss:$8 sm:$0xf]
    %v1832 = vld [vmem:[%s1830] ss:$8 sm:$0xf0]
    %v1833 = vor.u32 %v1831, %v1832
    %s1834 = scalar_lea.vmem [#allocation2], 131
    %v1835 = vld [vmem:[%s1834] ss:$8 sm:$0xf]
    %v1836 = vld [vmem:[%s1834] ss:$8 sm:$0xf0]
    %v1837 = vor.u32 %v1835, %v1836
    %s1838 = scalar_lea.vmem [#allocation2], 195
    %v1839 = vld [vmem:[%s1838] ss:$8 sm:$0xf]
    %v1840 = vld [vmem:[%s1838] ss:$8 sm:$0xf0]
    %v1841 = vor.u32 %v1839, %v1840
    %s1842 = scalar_lea.vmem [#allocation2], 259
    %v1843 = vld [vmem:[%s1842] ss:$8 sm:$0xf]
    %v1844 = vld [vmem:[%s1842] ss:$8 sm:$0xf0]
    %v1845 = vor.u32 %v1843, %v1844
    %s1846 = scalar_lea.vmem [#allocation2], 323
    %v1847 = vld [vmem:[%s1846] ss:$8 sm:$0xf]
    %v1848 = vld [vmem:[%s1846] ss:$8 sm:$0xf0]
    %v1849 = vor.u32 %v1847, %v1848
    %s1850 = scalar_lea.vmem [#allocation2], 387
    %v1851 = vld [vmem:[%s1850] ss:$8 sm:$0x1]
    %v1859 = vperm.slane %v1829, 0
    %v1860 = vperm.slane %v1829, 1
    %v1861 = vperm.slane %v1829, 2
    %v1862 = vperm.slane %v1829, 3
    %v1863 = vperm.slane %v1829, 4
    %v1864 = vperm.slane %v1829, 5
    %v1865 = vperm.slane %v1829, 6
    %v1866 = vperm.slane %v1829, 7
    %v1867 = vperm.slane %v1833, 0
    %v1868 = vperm.slane %v1833, 1
    %v1869 = vperm.slane %v1833, 2
    %v1870 = vperm.slane %v1833, 3
    %v1871 = vperm.slane %v1833, 4
    %v1872 = vperm.slane %v1833, 5
    %v1873 = vperm.slane %v1833, 6
    %v1874 = vperm.slane %v1833, 7
    %v1875 = vperm.slane %v1837, 0
    %v1876 = vperm.slane %v1837, 1
    %v1877 = vperm.slane %v1837, 2
    %v1878 = vperm.slane %v1837, 3
    %v1879 = vperm.slane %v1837, 4
    %v1880 = vperm.slane %v1837, 5
    %v1881 = vperm.slane %v1837, 6
    %v1882 = vperm.slane %v1837, 7
    %v1883 = vperm.slane %v1841, 0
    %v1884 = vperm.slane %v1841, 1
    %v1885 = vperm.slane %v1841, 2
    %v1886 = vperm.slane %v1841, 3
    %v1887 = vperm.slane %v1841, 4
    %v1888 = vperm.slane %v1841, 5
    %v1889 = vperm.slane %v1841, 6
    %v1890 = vperm.slane %v1841, 7
    %v1891 = vperm.slane %v1845, 0
    %v1892 = vperm.slane %v1845, 1
    %v1893 = vperm.slane %v1845, 2
    %v1894 = vperm.slane %v1845, 3
    %v1895 = vperm.slane %v1845, 4
    %v1896 = vperm.slane %v1845, 5
    %v1897 = vperm.slane %v1845, 6
    %v1898 = vperm.slane %v1845, 7
    %v1899 = vperm.slane %v1849, 0
    %v1900 = vperm.slane %v1849, 1
    %v1901 = vperm.slane %v1849, 2
    %v1902 = vperm.slane %v1849, 3
    %v1903 = vperm.slane %v1849, 4
    %v1904 = vperm.slane %v1849, 5
    %v1905 = vperm.slane %v1849, 6
    %v1906 = vperm.slane %v1849, 7
    %v1907 = vperm.slane %v1851, 0
    %v1957 = vmul.f32 %v1859, %v60
    %v1958 = vmul.f32 %v1860, %v61
    %v1959 = vmul.f32 %v1861, %v62
    %v1960 = vmul.f32 %v1862, %v63
    %v1961 = vmul.f32 %v1863, %v64
    %v1962 = vmul.f32 %v1864, %v65
    %v1963 = vmul.f32 %v1865, %v66
    %v1964 = vmul.f32 %v1866, %v67
    %v1965 = vmul.f32 %v1867, %v68
    %v1966 = vmul.f32 %v1868, %v69
    %v1967 = vmul.f32 %v1869, %v70
    %v1968 = vmul.f32 %v1870, %v71
    %v1969 = vmul.f32 %v1871, %v72
    %v1970 = vmul.f32 %v1872, %v73
    %v1971 = vmul.f32 %v1873, %v74
    %v1972 = vmul.f32 %v1874, %v75
    %v1973 = vmul.f32 %v1875, %v76
    %v1974 = vmul.f32 %v1876, %v77
    %v1975 = vmul.f32 %v1877, %v78
    %v1976 = vmul.f32 %v1878, %v79
    %v1977 = vmul.f32 %v1879, %v80
    %v1978 = vmul.f32 %v1880, %v81
    %v1979 = vmul.f32 %v1881, %v82
    %v1980 = vmul.f32 %v1882, %v83
    %v1981 = vmul.f32 %v1883, %v84
    %v1982 = vmul.f32 %v1884, %v85
    %v1983 = vmul.f32 %v1885, %v86
    %v1984 = vmul.f32 %v1886, %v87
    %v1985 = vmul.f32 %v1887, %v88
    %v1986 = vmul.f32 %v1888, %v89
    %v1987 = vmul.f32 %v1889, %v90
    %v1988 = vmul.f32 %v1890, %v91
    %v1989 = vmul.f32 %v1891, %v92
    %v1990 = vmul.f32 %v1892, %v93
    %v1991 = vmul.f32 %v1893, %v94
    %v1992 = vmul.f32 %v1894, %v95
    %v1993 = vmul.f32 %v1895, %v96
    %v1994 = vmul.f32 %v1896, %v97
    %v1995 = vmul.f32 %v1897, %v98
    %v1996 = vmul.f32 %v1898, %v99
    %v1997 = vmul.f32 %v1899, %v100
    %v1998 = vmul.f32 %v1900, %v101
    %v1999 = vmul.f32 %v1901, %v102
    %v2000 = vmul.f32 %v1902, %v103
    %v2001 = vmul.f32 %v1903, %v104
    %v2002 = vmul.f32 %v1904, %v105
    %v2003 = vmul.f32 %v1905, %v106
    %v2004 = vmul.f32 %v1906, %v107
    %v2005 = vmul.f32 %v1907, %v108
    %v2006 = vmul.f32 %v1859, %v109
    %v2007 = vmul.f32 %v1860, %v110
    %v2008 = vmul.f32 %v1861, %v111
    %v2009 = vmul.f32 %v1862, %v112
    %v2010 = vmul.f32 %v1863, %v113
    %v2011 = vmul.f32 %v1864, %v114
    %v2012 = vmul.f32 %v1865, %v115
    %v2013 = vmul.f32 %v1866, %v116
    %v2014 = vmul.f32 %v1867, %v117
    %v2015 = vmul.f32 %v1868, %v118
    %v2016 = vmul.f32 %v1869, %v119
    %v2017 = vmul.f32 %v1870, %v120
    %v2018 = vmul.f32 %v1871, %v121
    %v2019 = vmul.f32 %v1872, %v122
    %v2020 = vmul.f32 %v1873, %v123
    %v2021 = vmul.f32 %v1874, %v124
    %v2022 = vmul.f32 %v1875, %v125
    %v2023 = vmul.f32 %v1876, %v126
    %v2024 = vmul.f32 %v1877, %v127
    %v2025 = vmul.f32 %v1878, %v128
    %v2026 = vmul.f32 %v1879, %v129
    %v2027 = vmul.f32 %v1880, %v130
    %v2028 = vmul.f32 %v1881, %v131
    %v2029 = vmul.f32 %v1882, %v132
    %v2030 = vmul.f32 %v1883, %v133
    %v2031 = vmul.f32 %v1884, %v134
    %v2032 = vmul.f32 %v1885, %v135
    %v2033 = vmul.f32 %v1886, %v136
    %v2034 = vmul.f32 %v1887, %v137
    %v2035 = vmul.f32 %v1888, %v138
    %v2036 = vmul.f32 %v1889, %v139
    %v2037 = vmul.f32 %v1890, %v140
    %v2038 = vmul.f32 %v1891, %v141
    %v2039 = vmul.f32 %v1892, %v142
    %v2040 = vmul.f32 %v1893, %v143
    %v2041 = vmul.f32 %v1894, %v144
    %v2042 = vmul.f32 %v1895, %v145
    %v2043 = vmul.f32 %v1896, %v146
    %v2044 = vmul.f32 %v1897, %v147
    %v2045 = vmul.f32 %v1898, %v148
    %v2046 = vmul.f32 %v1899, %v149
    %v2047 = vmul.f32 %v1900, %v150
    %v2048 = vmul.f32 %v1901, %v151
    %v2049 = vmul.f32 %v1902, %v152
    %v2050 = vmul.f32 %v1903, %v153
    %v2051 = vmul.f32 %v1904, %v154
    %v2052 = vmul.f32 %v1905, %v155
    %v2053 = vmul.f32 %v1906, %v156
    %v2054 = vmul.f32 %v1907, %v157
    %v2055 = vadd.f32 %v1957, %v158
    %v2056 = vadd.f32 %v1958, %v159
    %v2057 = vadd.f32 %v1959, %v160
    %v2058 = vadd.f32 %v1960, %v161
    %v2059 = vadd.f32 %v1961, %v162
    %v2060 = vadd.f32 %v1962, %v163
    %v2061 = vadd.f32 %v1963, %v164
    %v2062 = vadd.f32 %v1964, %v165
    %v2063 = vadd.f32 %v1965, %v166
    %v2064 = vadd.f32 %v1966, %v167
    %v2065 = vadd.f32 %v1967, %v168
    %v2066 = vadd.f32 %v1968, %v169
    %v2067 = vadd.f32 %v1969, %v170
    %v2068 = vadd.f32 %v1970, %v171
    %v2069 = vadd.f32 %v1971, %v172
    %v2070 = vadd.f32 %v1972, %v173
    %v2071 = vadd.f32 %v1973, %v174
    %v2072 = vadd.f32 %v1974, %v175
    %v2073 = vadd.f32 %v1975, %v176
    %v2074 = vadd.f32 %v1976, %v177
    %v2075 = vadd.f32 %v1977, %v178
    %v2076 = vadd.f32 %v1978, %v179
    %v2077 = vadd.f32 %v1979, %v180
    %v2078 = vadd.f32 %v1980, %v181
    %v2079 = vadd.f32 %v1981, %v182
    %v2080 = vadd.f32 %v1982, %v183
    %v2081 = vadd.f32 %v1983, %v184
    %v2082 = vadd.f32 %v1984, %v185
    %v2083 = vadd.f32 %v1985, %v186
    %v2084 = vadd.f32 %v1986, %v187
    %v2085 = vadd.f32 %v1987, %v188
    %v2086 = vadd.f32 %v1988, %v189
    %v2087 = vadd.f32 %v1989, %v190
    %v2088 = vadd.f32 %v1990, %v191
    %v2089 = vadd.f32 %v1991, %v192
    %v2090 = vadd.f32 %v1992, %v193
    %v2091 = vadd.f32 %v1993, %v194
    %v2092 = vadd.f32 %v1994, %v195
    %v2093 = vadd.f32 %v1995, %v196
    %v2094 = vadd.f32 %v1996, %v197
    %v2095 = vadd.f32 %v1997, %v198
    %v2096 = vadd.f32 %v1998, %v199
    %v2097 = vadd.f32 %v1999, %v200
    %v2098 = vadd.f32 %v2000, %v201
    %v2099 = vadd.f32 %v2001, %v202
    %v2100 = vadd.f32 %v2002, %v203
    %v2101 = vadd.f32 %v2003, %v204
    %v2102 = vadd.f32 %v2004, %v205
    %v2103 = vadd.f32 %v2005, %v206
    %v2104 = vadd.f32 %v2006, %v207
    %v2105 = vadd.f32 %v2007, %v208
    %v2106 = vadd.f32 %v2008, %v209
    %v2107 = vadd.f32 %v2009, %v210
    %v2108 = vadd.f32 %v2010, %v211
    %v2109 = vadd.f32 %v2011, %v212
    %v2110 = vadd.f32 %v2012, %v213
    %v2111 = vadd.f32 %v2013, %v214
    %v2112 = vadd.f32 %v2014, %v215
    %v2113 = vadd.f32 %v2015, %v216
    %v2114 = vadd.f32 %v2016, %v217
    %v2115 = vadd.f32 %v2017, %v218
    %v2116 = vadd.f32 %v2018, %v219
    %v2117 = vadd.f32 %v2019, %v220
    %v2118 = vadd.f32 %v2020, %v221
    %v2119 = vadd.f32 %v2021, %v222
    %v2120 = vadd.f32 %v2022, %v223
    %v2121 = vadd.f32 %v2023, %v224
    %v2122 = vadd.f32 %v2024, %v225
    %v2123 = vadd.f32 %v2025, %v226
    %v2124 = vadd.f32 %v2026, %v227
    %v2125 = vadd.f32 %v2027, %v228
    %v2126 = vadd.f32 %v2028, %v229
    %v2127 = vadd.f32 %v2029, %v230
    %v2128 = vadd.f32 %v2030, %v231
    %v2129 = vadd.f32 %v2031, %v232
    %v2130 = vadd.f32 %v2032, %v233
    %v2131 = vadd.f32 %v2033, %v234
    %v2132 = vadd.f32 %v2034, %v235
    %v2133 = vadd.f32 %v2035, %v236
    %v2134 = vadd.f32 %v2036, %v237
    %v2135 = vadd.f32 %v2037, %v238
    %v2136 = vadd.f32 %v2038, %v239
    %v2137 = vadd.f32 %v2039, %v240
    %v2138 = vadd.f32 %v2040, %v241
    %v2139 = vadd.f32 %v2041, %v242
    %v2140 = vadd.f32 %v2042, %v243
    %v2141 = vadd.f32 %v2043, %v244
    %v2142 = vadd.f32 %v2044, %v245
    %v2143 = vadd.f32 %v2045, %v246
    %v2144 = vadd.f32 %v2046, %v247
    %v2145 = vadd.f32 %v2047, %v248
    %v2146 = vadd.f32 %v2048, %v249
    %v2147 = vadd.f32 %v2049, %v250
    %v2148 = vadd.f32 %v2050, %v251
    %v2149 = vadd.f32 %v2051, %v252
    %v2150 = vadd.f32 %v2052, %v253
    %v2151 = vadd.f32 %v2053, %v254
    %v2152 = vadd.f32 %v2054, %v255
    %v2153 = vmax.f32 %v2055, 0.0
    %v2154 = vmax.f32 %v2056, 0.0
    %v2155 = vmax.f32 %v2057, 0.0
    %v2156 = vmax.f32 %v2058, 0.0
    %v2157 = vmax.f32 %v2059, 0.0
    %v2158 = vmax.f32 %v2060, 0.0
    %v2159 = vmax.f32 %v2061, 0.0
    %v2160 = vmax.f32 %v2062, 0.0
    %v2161 = vmax.f32 %v2063, 0.0
    %v2162 = vmax.f32 %v2064, 0.0
    %v2163 = vmax.f32 %v2065, 0.0
    %v2164 = vmax.f32 %v2066, 0.0
    %v2165 = vmax.f32 %v2067, 0.0
    %v2166 = vmax.f32 %v2068, 0.0
    %v2167 = vmax.f32 %v2069, 0.0
    %v2168 = vmax.f32 %v2070, 0.0
    %v2169 = vmax.f32 %v2071, 0.0
    %v2170 = vmax.f32 %v2072, 0.0
    %v2171 = vmax.f32 %v2073, 0.0
    %v2172 = vmax.f32 %v2074, 0.0
    %v2173 = vmax.f32 %v2075, 0.0
    %v2174 = vmax.f32 %v2076, 0.0
    %v2175 = vmax.f32 %v2077, 0.0
    %v2176 = vmax.f32 %v2078, 0.0
    %v2177 = vmax.f32 %v2079, 0.0
    %v2178 = vmax.f32 %v2080, 0.0
    %v2179 = vmax.f32 %v2081, 0.0
    %v2180 = vmax.f32 %v2082, 0.0
    %v2181 = vmax.f32 %v2083, 0.0
    %v2182 = vmax.f32 %v2084, 0.0
    %v2183 = vmax.f32 %v2085, 0.0
    %v2184 = vmax.f32 %v2086, 0.0
    %v2185 = vmax.f32 %v2087, 0.0
    %v2186 = vmax.f32 %v2088, 0.0
    %v2187 = vmax.f32 %v2089, 0.0
    %v2188 = vmax.f32 %v2090, 0.0
    %v2189 = vmax.f32 %v2091, 0.0
    %v2190 = vmax.f32 %v2092, 0.0
    %v2191 = vmax.f32 %v2093, 0.0
    %v2192 = vmax.f32 %v2094, 0.0
    %v2193 = vmax.f32 %v2095, 0.0
    %v2194 = vmax.f32 %v2096, 0.0
    %v2195 = vmax.f32 %v2097, 0.0
    %v2196 = vmax.f32 %v2098, 0.0
    %v2197 = vmax.f32 %v2099, 0.0
    %v2198 = vmax.f32 %v2100, 0.0
    %v2199 = vmax.f32 %v2101, 0.0
    %v2200 = vmax.f32 %v2102, 0.0
    %v2201 = vmax.f32 %v2103, 0.0
    %v2202 = vmax.f32 %v2104, 0.0
    %v2203 = vmax.f32 %v2105, 0.0
    %v2204 = vmax.f32 %v2106, 0.0
    %v2205 = vmax.f32 %v2107, 0.0
    %v2206 = vmax.f32 %v2108, 0.0
    %v2207 = vmax.f32 %v2109, 0.0
    %v2208 = vmax.f32 %v2110, 0.0
    %v2209 = vmax.f32 %v2111, 0.0
    %v2210 = vmax.f32 %v2112, 0.0
    %v2211 = vmax.f32 %v2113, 0.0
    %v2212 = vmax.f32 %v2114, 0.0
    %v2213 = vmax.f32 %v2115, 0.0
    %v2214 = vmax.f32 %v2116, 0.0
    %v2215 = vmax.f32 %v2117, 0.0
    %v2216 = vmax.f32 %v2118, 0.0
    %v2217 = vmax.f32 %v2119, 0.0
    %v2218 = vmax.f32 %v2120, 0.0
    %v2219 = vmax.f32 %v2121, 0.0
    %v2220 = vmax.f32 %v2122, 0.0
    %v2221 = vmax.f32 %v2123, 0.0
    %v2222 = vmax.f32 %v2124, 0.0
    %v2223 = vmax.f32 %v2125, 0.0
    %v2224 = vmax.f32 %v2126, 0.0
    %v2225 = vmax.f32 %v2127, 0.0
    %v2226 = vmax.f32 %v2128, 0.0
    %v2227 = vmax.f32 %v2129, 0.0
    %v2228 = vmax.f32 %v2130, 0.0
    %v2229 = vmax.f32 %v2131, 0.0
    %v2230 = vmax.f32 %v2132, 0.0
    %v2231 = vmax.f32 %v2133, 0.0
    %v2232 = vmax.f32 %v2134, 0.0
    %v2233 = vmax.f32 %v2135, 0.0
    %v2234 = vmax.f32 %v2136, 0.0
    %v2235 = vmax.f32 %v2137, 0.0
    %v2236 = vmax.f32 %v2138, 0.0
    %v2237 = vmax.f32 %v2139, 0.0
    %v2238 = vmax.f32 %v2140, 0.0
    %v2239 = vmax.f32 %v2141, 0.0
    %v2240 = vmax.f32 %v2142, 0.0
    %v2241 = vmax.f32 %v2143, 0.0
    %v2242 = vmax.f32 %v2144, 0.0
    %v2243 = vmax.f32 %v2145, 0.0
    %v2244 = vmax.f32 %v2146, 0.0
    %v2245 = vmax.f32 %v2147, 0.0
    %v2246 = vmax.f32 %v2148, 0.0
    %v2247 = vmax.f32 %v2149, 0.0
    %v2248 = vmax.f32 %v2150, 0.0
    %v2249 = vmax.f32 %v2151, 0.0
    %v2250 = vmax.f32 %v2152, 0.0
    %s2251 = scalar_lea.vmem [#allocation8], 2352
    %2252 = vst [vmem:[%s2251] sm:$0xff] %v2153
    %2253 = vst [vmem:[%s2251 + $0x8] sm:$0xff] %v2154
    %2254 = vst [vmem:[%s2251 + $0x10] sm:$0xff] %v2155
    %2255 = vst [vmem:[%s2251 + $0x18] sm:$0xff] %v2156
    %2256 = vst [vmem:[%s2251 + $0x20] sm:$0xff] %v2157
    %2257 = vst [vmem:[%s2251 + $0x28] sm:$0xff] %v2158
    %2258 = vst [vmem:[%s2251 + $0x30] sm:$0xff] %v2159
    %2259 = vst [vmem:[%s2251 + $0x38] sm:$0xff] %v2160
    %2260 = vst [vmem:[%s2251 + $0x40] sm:$0xff] %v2161
    %2261 = vst [vmem:[%s2251 + $0x48] sm:$0xff] %v2162
    %2262 = vst [vmem:[%s2251 + $0x50] sm:$0xff] %v2163
    %2263 = vst [vmem:[%s2251 + $0x58] sm:$0xff] %v2164
    %2264 = vst [vmem:[%s2251 + $0x60] sm:$0xff] %v2165
    %2265 = vst [vmem:[%s2251 + $0x68] sm:$0xff] %v2166
    %2266 = vst [vmem:[%s2251 + $0x70] sm:$0xff] %v2167
    %2267 = vst [vmem:[%s2251 + $0x78] sm:$0xff] %v2168
    %2268 = vst [vmem:[%s2251 + $0x80] sm:$0xff] %v2169
    %2269 = vst [vmem:[%s2251 + $0x88] sm:$0xff] %v2170
    %2270 = vst [vmem:[%s2251 + $0x90] sm:$0xff] %v2171
    %2271 = vst [vmem:[%s2251 + $0x98] sm:$0xff] %v2172
    %2272 = vst [vmem:[%s2251 + $0xa0] sm:$0xff] %v2173
    %2273 = vst [vmem:[%s2251 + $0xa8] sm:$0xff] %v2174
    %2274 = vst [vmem:[%s2251 + $0xb0] sm:$0xff] %v2175
    %2275 = vst [vmem:[%s2251 + $0xb8] sm:$0xff] %v2176
    %2276 = vst [vmem:[%s2251 + $0xc0] sm:$0xff] %v2177
    %2277 = vst [vmem:[%s2251 + $0xc8] sm:$0xff] %v2178
    %2278 = vst [vmem:[%s2251 + $0xd0] sm:$0xff] %v2179
    %2279 = vst [vmem:[%s2251 + $0xd8] sm:$0xff] %v2180
    %2280 = vst [vmem:[%s2251 + $0xe0] sm:$0xff] %v2181
    %2281 = vst [vmem:[%s2251 + $0xe8] sm:$0xff] %v2182
    %2282 = vst [vmem:[%s2251 + $0xf0] sm:$0xff] %v2183
    %2283 = vst [vmem:[%s2251 + $0xf8] sm:$0xff] %v2184
    %2284 = vst [vmem:[%s2251 + $0x100] sm:$0xff] %v2185
    %2285 = vst [vmem:[%s2251 + $0x108] sm:$0xff] %v2186
    %2286 = vst [vmem:[%s2251 + $0x110] sm:$0xff] %v2187
    %2287 = vst [vmem:[%s2251 + $0x118] sm:$0xff] %v2188
    %2288 = vst [vmem:[%s2251 + $0x120] sm:$0xff] %v2189
    %2289 = vst [vmem:[%s2251 + $0x128] sm:$0xff] %v2190
    %2290 = vst [vmem:[%s2251 + $0x130] sm:$0xff] %v2191
    %2291 = vst [vmem:[%s2251 + $0x138] sm:$0xff] %v2192
    %2292 = vst [vmem:[%s2251 + $0x140] sm:$0xff] %v2193
    %2293 = vst [vmem:[%s2251 + $0x148] sm:$0xff] %v2194
    %2294 = vst [vmem:[%s2251 + $0x150] sm:$0xff] %v2195
    %2295 = vst [vmem:[%s2251 + $0x158] sm:$0xff] %v2196
    %2296 = vst [vmem:[%s2251 + $0x160] sm:$0xff] %v2197
    %2297 = vst [vmem:[%s2251 + $0x168] sm:$0xff] %v2198
    %2298 = vst [vmem:[%s2251 + $0x170] sm:$0xff] %v2199
    %2299 = vst [vmem:[%s2251 + $0x178] sm:$0xff] %v2200
    %2300 = vst [vmem:[%s2251 + $0x180] sm:$0xff] %v2201
    %2301 = vst [vmem:[%s2251 + $0x188] sm:$0xff] %v2202
    %2302 = vst [vmem:[%s2251 + $0x190] sm:$0xff] %v2203
    %2303 = vst [vmem:[%s2251 + $0x198] sm:$0xff] %v2204
    %2304 = vst [vmem:[%s2251 + $0x1a0] sm:$0xff] %v2205
    %2305 = vst [vmem:[%s2251 + $0x1a8] sm:$0xff] %v2206
    %2306 = vst [vmem:[%s2251 + $0x1b0] sm:$0xff] %v2207
    %2307 = vst [vmem:[%s2251 + $0x1b8] sm:$0xff] %v2208
    %2308 = vst [vmem:[%s2251 + $0x1c0] sm:$0xff] %v2209
    %2309 = vst [vmem:[%s2251 + $0x1c8] sm:$0xff] %v2210
    %2310 = vst [vmem:[%s2251 + $0x1d0] sm:$0xff] %v2211
    %2311 = vst [vmem:[%s2251 + $0x1d8] sm:$0xff] %v2212
    %2312 = vst [vmem:[%s2251 + $0x1e0] sm:$0xff] %v2213
    %2313 = vst [vmem:[%s2251 + $0x1e8] sm:$0xff] %v2214
    %2314 = vst [vmem:[%s2251 + $0x1f0] sm:$0xff] %v2215
    %2315 = vst [vmem:[%s2251 + $0x1f8] sm:$0xff] %v2216
    %2316 = vst [vmem:[%s2251 + $0x200] sm:$0xff] %v2217
    %2317 = vst [vmem:[%s2251 + $0x208] sm:$0xff] %v2218
    %2318 = vst [vmem:[%s2251 + $0x210] sm:$0xff] %v2219
    %2319 = vst [vmem:[%s2251 + $0x218] sm:$0xff] %v2220
    %2320 = vst [vmem:[%s2251 + $0x220] sm:$0xff] %v2221
    %2321 = vst [vmem:[%s2251 + $0x228] sm:$0xff] %v2222
    %2322 = vst [vmem:[%s2251 + $0x230] sm:$0xff] %v2223
    %2323 = vst [vmem:[%s2251 + $0x238] sm:$0xff] %v2224
    %2324 = vst [vmem:[%s2251 + $0x240] sm:$0xff] %v2225
    %2325 = vst [vmem:[%s2251 + $0x248] sm:$0xff] %v2226
    %2326 = vst [vmem:[%s2251 + $0x250] sm:$0xff] %v2227
    %2327 = vst [vmem:[%s2251 + $0x258] sm:$0xff] %v2228
    %2328 = vst [vmem:[%s2251 + $0x260] sm:$0xff] %v2229
    %2329 = vst [vmem:[%s2251 + $0x268] sm:$0xff] %v2230
    %2330 = vst [vmem:[%s2251 + $0x270] sm:$0xff] %v2231
    %2331 = vst [vmem:[%s2251 + $0x278] sm:$0xff] %v2232
    %2332 = vst [vmem:[%s2251 + $0x280] sm:$0xff] %v2233
    %2333 = vst [vmem:[%s2251 + $0x288] sm:$0xff] %v2234
    %2334 = vst [vmem:[%s2251 + $0x290] sm:$0xff] %v2235
    %2335 = vst [vmem:[%s2251 + $0x298] sm:$0xff] %v2236
    %2336 = vst [vmem:[%s2251 + $0x2a0] sm:$0xff] %v2237
    %2337 = vst [vmem:[%s2251 + $0x2a8] sm:$0xff] %v2238
    %2338 = vst [vmem:[%s2251 + $0x2b0] sm:$0xff] %v2239
    %2339 = vst [vmem:[%s2251 + $0x2b8] sm:$0xff] %v2240
    %2340 = vst [vmem:[%s2251 + $0x2c0] sm:$0xff] %v2241
    %2341 = vst [vmem:[%s2251 + $0x2c8] sm:$0xff] %v2242
    %2342 = vst [vmem:[%s2251 + $0x2d0] sm:$0xff] %v2243
    %2343 = vst [vmem:[%s2251 + $0x2d8] sm:$0xff] %v2244
    %2344 = vst [vmem:[%s2251 + $0x2e0] sm:$0xff] %v2245
    %2345 = vst [vmem:[%s2251 + $0x2e8] sm:$0xff] %v2246
    %2346 = vst [vmem:[%s2251 + $0x2f0] sm:$0xff] %v2247
    %2347 = vst [vmem:[%s2251 + $0x2f8] sm:$0xff] %v2248
    %2348 = vst [vmem:[%s2251 + $0x300] sm:$0xff] %v2249
    %2349 = vst [vmem:[%s2251 + $0x308] sm:$0xff] %v2250
    %s2350 = scalar_lea.vmem [#allocation2], 4
    %v2351 = vld [vmem:[%s2350] ss:$8 sm:$0xf]
    %v2352 = vld [vmem:[%s2350] ss:$8 sm:$0xf0]
    %v2353 = vor.u32 %v2351, %v2352
    %s2354 = scalar_lea.vmem [#allocation2], 68
    %v2355 = vld [vmem:[%s2354] ss:$8 sm:$0xf]
    %v2356 = vld [vmem:[%s2354] ss:$8 sm:$0xf0]
    %v2357 = vor.u32 %v2355, %v2356
    %s2358 = scalar_lea.vmem [#allocation2], 132
    %v2359 = vld [vmem:[%s2358] ss:$8 sm:$0xf]
    %v2360 = vld [vmem:[%s2358] ss:$8 sm:$0xf0]
    %v2361 = vor.u32 %v2359, %v2360
    %s2362 = scalar_lea.vmem [#allocation2], 196
    %v2363 = vld [vmem:[%s2362] ss:$8 sm:$0xf]
    %v2364 = vld [vmem:[%s2362] ss:$8 sm:$0xf0]
    %v2365 = vor.u32 %v2363, %v2364
    %s2366 = scalar_lea.vmem [#allocation2], 260
    %v2367 = vld [vmem:[%s2366] ss:$8 sm:$0xf]
    %v2368 = vld [vmem:[%s2366] ss:$8 sm:$0xf0]
    %v2369 = vor.u32 %v2367, %v2368
    %s2370 = scalar_lea.vmem [#allocation2], 324
    %v2371 = vld [vmem:[%s2370] ss:$8 sm:$0xf]
    %v2372 = vld [vmem:[%s2370] ss:$8 sm:$0xf0]
    %v2373 = vor.u32 %v2371, %v2372
    %s2374 = scalar_lea.vmem [#allocation2], 388
    %v2375 = vld [vmem:[%s2374] ss:$8 sm:$0x1]
    %v2383 = vperm.slane %v2353, 0
    %v2384 = vperm.slane %v2353, 1
    %v2385 = vperm.slane %v2353, 2
    %v2386 = vperm.slane %v2353, 3
    %v2387 = vperm.slane %v2353, 4
    %v2388 = vperm.slane %v2353, 5
    %v2389 = vperm.slane %v2353, 6
    %v2390 = vperm.slane %v2353, 7
    %v2391 = vperm.slane %v2357, 0
    %v2392 = vperm.slane %v2357, 1
    %v2393 = vperm.slane %v2357, 2
    %v2394 = vperm.slane %v2357, 3
    %v2395 = vperm.slane %v2357, 4
    %v2396 = vperm.slane %v2357, 5
    %v2397 = vperm.slane %v2357, 6
    %v2398 = vperm.slane %v2357, 7
    %v2399 = vperm.slane %v2361, 0
    %v2400 = vperm.slane %v2361, 1
    %v2401 = vperm.slane %v2361, 2
    %v2402 = vperm.slane %v2361, 3
    %v2403 = vperm.slane %v2361, 4
    %v2404 = vperm.slane %v2361, 5
    %v2405 = vperm.slane %v2361, 6
    %v2406 = vperm.slane %v2361, 7
    %v2407 = vperm.slane %v2365, 0
    %v2408 = vperm.slane %v2365, 1
    %v2409 = vperm.slane %v2365, 2
    %v2410 = vperm.slane %v2365, 3
    %v2411 = vperm.slane %v2365, 4
    %v2412 = vperm.slane %v2365, 5
    %v2413 = vperm.slane %v2365, 6
    %v2414 = vperm.slane %v2365, 7
    %v2415 = vperm.slane %v2369, 0
    %v2416 = vperm.slane %v2369, 1
    %v2417 = vperm.slane %v2369, 2
    %v2418 = vperm.slane %v2369, 3
    %v2419 = vperm.slane %v2369, 4
    %v2420 = vperm.slane %v2369, 5
    %v2421 = vperm.slane %v2369, 6
    %v2422 = vperm.slane %v2369, 7
    %v2423 = vperm.slane %v2373, 0
    %v2424 = vperm.slane %v2373, 1
    %v2425 = vperm.slane %v2373, 2
    %v2426 = vperm.slane %v2373, 3
    %v2427 = vperm.slane %v2373, 4
    %v2428 = vperm.slane %v2373, 5
    %v2429 = vperm.slane %v2373, 6
    %v2430 = vperm.slane %v2373, 7
    %v2431 = vperm.slane %v2375, 0
    %v2481 = vmul.f32 %v2383, %v60
    %v2482 = vmul.f32 %v2384, %v61
    %v2483 = vmul.f32 %v2385, %v62
    %v2484 = vmul.f32 %v2386, %v63
    %v2485 = vmul.f32 %v2387, %v64
    %v2486 = vmul.f32 %v2388, %v65
    %v2487 = vmul.f32 %v2389, %v66
    %v2488 = vmul.f32 %v2390, %v67
    %v2489 = vmul.f32 %v2391, %v68
    %v2490 = vmul.f32 %v2392, %v69
    %v2491 = vmul.f32 %v2393, %v70
    %v2492 = vmul.f32 %v2394, %v71
    %v2493 = vmul.f32 %v2395, %v72
    %v2494 = vmul.f32 %v2396, %v73
    %v2495 = vmul.f32 %v2397, %v74
    %v2496 = vmul.f32 %v2398, %v75
    %v2497 = vmul.f32 %v2399, %v76
    %v2498 = vmul.f32 %v2400, %v77
    %v2499 = vmul.f32 %v2401, %v78
    %v2500 = vmul.f32 %v2402, %v79
    %v2501 = vmul.f32 %v2403, %v80
    %v2502 = vmul.f32 %v2404, %v81
    %v2503 = vmul.f32 %v2405, %v82
    %v2504 = vmul.f32 %v2406, %v83
    %v2505 = vmul.f32 %v2407, %v84
    %v2506 = vmul.f32 %v2408, %v85
    %v2507 = vmul.f32 %v2409, %v86
    %v2508 = vmul.f32 %v2410, %v87
    %v2509 = vmul.f32 %v2411, %v88
    %v2510 = vmul.f32 %v2412, %v89
    %v2511 = vmul.f32 %v2413, %v90
    %v2512 = vmul.f32 %v2414, %v91
    %v2513 = vmul.f32 %v2415, %v92
    %v2514 = vmul.f32 %v2416, %v93
    %v2515 = vmul.f32 %v2417, %v94
    %v2516 = vmul.f32 %v2418, %v95
    %v2517 = vmul.f32 %v2419, %v96
    %v2518 = vmul.f32 %v2420, %v97
    %v2519 = vmul.f32 %v2421, %v98
    %v2520 = vmul.f32 %v2422, %v99
    %v2521 = vmul.f32 %v2423, %v100
    %v2522 = vmul.f32 %v2424, %v101
    %v2523 = vmul.f32 %v2425, %v102
    %v2524 = vmul.f32 %v2426, %v103
    %v2525 = vmul.f32 %v2427, %v104
    %v2526 = vmul.f32 %v2428, %v105
    %v2527 = vmul.f32 %v2429, %v106
    %v2528 = vmul.f32 %v2430, %v107
    %v2529 = vmul.f32 %v2431, %v108
    %v2530 = vmul.f32 %v2383, %v109
    %v2531 = vmul.f32 %v2384, %v110
    %v2532 = vmul.f32 %v2385, %v111
    %v2533 = vmul.f32 %v2386, %v112
    %v2534 = vmul.f32 %v2387, %v113
    %v2535 = vmul.f32 %v2388, %v114
    %v2536 = vmul.f32 %v2389, %v115
    %v2537 = vmul.f32 %v2390, %v116
    %v2538 = vmul.f32 %v2391, %v117
    %v2539 = vmul.f32 %v2392, %v118
    %v2540 = vmul.f32 %v2393, %v119
    %v2541 = vmul.f32 %v2394, %v120
    %v2542 = vmul.f32 %v2395, %v121
    %v2543 = vmul.f32 %v2396, %v122
    %v2544 = vmul.f32 %v2397, %v123
    %v2545 = vmul.f32 %v2398, %v124
    %v2546 = vmul.f32 %v2399, %v125
    %v2547 = vmul.f32 %v2400, %v126
    %v2548 = vmul.f32 %v2401, %v127
    %v2549 = vmul.f32 %v2402, %v128
    %v2550 = vmul.f32 %v2403, %v129
    %v2551 = vmul.f32 %v2404, %v130
    %v2552 = vmul.f32 %v2405, %v131
    %v2553 = vmul.f32 %v2406, %v132
    %v2554 = vmul.f32 %v2407, %v133
    %v2555 = vmul.f32 %v2408, %v134
    %v2556 = vmul.f32 %v2409, %v135
    %v2557 = vmul.f32 %v2410, %v136
    %v2558 = vmul.f32 %v2411, %v137
    %v2559 = vmul.f32 %v2412, %v138
    %v2560 = vmul.f32 %v2413, %v139
    %v2561 = vmul.f32 %v2414, %v140
    %v2562 = vmul.f32 %v2415, %v141
    %v2563 = vmul.f32 %v2416, %v142
    %v2564 = vmul.f32 %v2417, %v143
    %v2565 = vmul.f32 %v2418, %v144
    %v2566 = vmul.f32 %v2419, %v145
    %v2567 = vmul.f32 %v2420, %v146
    %v2568 = vmul.f32 %v2421, %v147
    %v2569 = vmul.f32 %v2422, %v148
    %v2570 = vmul.f32 %v2423, %v149
    %v2571 = vmul.f32 %v2424, %v150
    %v2572 = vmul.f32 %v2425, %v151
    %v2573 = vmul.f32 %v2426, %v152
    %v2574 = vmul.f32 %v2427, %v153
    %v2575 = vmul.f32 %v2428, %v154
    %v2576 = vmul.f32 %v2429, %v155
    %v2577 = vmul.f32 %v2430, %v156
    %v2578 = vmul.f32 %v2431, %v157
    %v2579 = vadd.f32 %v2481, %v158
    %v2580 = vadd.f32 %v2482, %v159
    %v2581 = vadd.f32 %v2483, %v160
    %v2582 = vadd.f32 %v2484, %v161
    %v2583 = vadd.f32 %v2485, %v162
    %v2584 = vadd.f32 %v2486, %v163
    %v2585 = vadd.f32 %v2487, %v164
    %v2586 = vadd.f32 %v2488, %v165
    %v2587 = vadd.f32 %v2489, %v166
    %v2588 = vadd.f32 %v2490, %v167
    %v2589 = vadd.f32 %v2491, %v168
    %v2590 = vadd.f32 %v2492, %v169
    %v2591 = vadd.f32 %v2493, %v170
    %v2592 = vadd.f32 %v2494, %v171
    %v2593 = vadd.f32 %v2495, %v172
    %v2594 = vadd.f32 %v2496, %v173
    %v2595 = vadd.f32 %v2497, %v174
    %v2596 = vadd.f32 %v2498, %v175
    %v2597 = vadd.f32 %v2499, %v176
    %v2598 = vadd.f32 %v2500, %v177
    %v2599 = vadd.f32 %v2501, %v178
    %v2600 = vadd.f32 %v2502, %v179
    %v2601 = vadd.f32 %v2503, %v180
    %v2602 = vadd.f32 %v2504, %v181
    %v2603 = vadd.f32 %v2505, %v182
    %v2604 = vadd.f32 %v2506, %v183
    %v2605 = vadd.f32 %v2507, %v184
    %v2606 = vadd.f32 %v2508, %v185
    %v2607 = vadd.f32 %v2509, %v186
    %v2608 = vadd.f32 %v2510, %v187
    %v2609 = vadd.f32 %v2511, %v188
    %v2610 = vadd.f32 %v2512, %v189
    %v2611 = vadd.f32 %v2513, %v190
    %v2612 = vadd.f32 %v2514, %v191
    %v2613 = vadd.f32 %v2515, %v192
    %v2614 = vadd.f32 %v2516, %v193
    %v2615 = vadd.f32 %v2517, %v194
    %v2616 = vadd.f32 %v2518, %v195
    %v2617 = vadd.f32 %v2519, %v196
    %v2618 = vadd.f32 %v2520, %v197
    %v2619 = vadd.f32 %v2521, %v198
    %v2620 = vadd.f32 %v2522, %v199
    %v2621 = vadd.f32 %v2523, %v200
    %v2622 = vadd.f32 %v2524, %v201
    %v2623 = vadd.f32 %v2525, %v202
    %v2624 = vadd.f32 %v2526, %v203
    %v2625 = vadd.f32 %v2527, %v204
    %v2626 = vadd.f32 %v2528, %v205
    %v2627 = vadd.f32 %v2529, %v206
    %v2628 = vadd.f32 %v2530, %v207
    %v2629 = vadd.f32 %v2531, %v208
    %v2630 = vadd.f32 %v2532, %v209
    %v2631 = vadd.f32 %v2533, %v210
    %v2632 = vadd.f32 %v2534, %v211
    %v2633 = vadd.f32 %v2535, %v212
    %v2634 = vadd.f32 %v2536, %v213
    %v2635 = vadd.f32 %v2537, %v214
    %v2636 = vadd.f32 %v2538, %v215
    %v2637 = vadd.f32 %v2539, %v216
    %v2638 = vadd.f32 %v2540, %v217
    %v2639 = vadd.f32 %v2541, %v218
    %v2640 = vadd.f32 %v2542, %v219
    %v2641 = vadd.f32 %v2543, %v220
    %v2642 = vadd.f32 %v2544, %v221
    %v2643 = vadd.f32 %v2545, %v222
    %v2644 = vadd.f32 %v2546, %v223
    %v2645 = vadd.f32 %v2547, %v224
    %v2646 = vadd.f32 %v2548, %v225
    %v2647 = vadd.f32 %v2549, %v226
    %v2648 = vadd.f32 %v2550, %v227
    %v2649 = vadd.f32 %v2551, %v228
    %v2650 = vadd.f32 %v2552, %v229
    %v2651 = vadd.f32 %v2553, %v230
    %v2652 = vadd.f32 %v2554, %v231
    %v2653 = vadd.f32 %v2555, %v232
    %v2654 = vadd.f32 %v2556, %v233
    %v2655 = vadd.f32 %v2557, %v234
    %v2656 = vadd.f32 %v2558, %v235
    %v2657 = vadd.f32 %v2559, %v236
    %v2658 = vadd.f32 %v2560, %v237
    %v2659 = vadd.f32 %v2561, %v238
    %v2660 = vadd.f32 %v2562, %v239
    %v2661 = vadd.f32 %v2563, %v240
    %v2662 = vadd.f32 %v2564, %v241
    %v2663 = vadd.f32 %v2565, %v242
    %v2664 = vadd.f32 %v2566, %v243
    %v2665 = vadd.f32 %v2567, %v244
    %v2666 = vadd.f32 %v2568, %v245
    %v2667 = vadd.f32 %v2569, %v246
    %v2668 = vadd.f32 %v2570, %v247
    %v2669 = vadd.f32 %v2571, %v248
    %v2670 = vadd.f32 %v2572, %v249
    %v2671 = vadd.f32 %v2573, %v250
    %v2672 = vadd.f32 %v2574, %v251
    %v2673 = vadd.f32 %v2575, %v252
    %v2674 = vadd.f32 %v2576, %v253
    %v2675 = vadd.f32 %v2577, %v254
    %v2676 = vadd.f32 %v2578, %v255
    %v2677 = vmax.f32 %v2579, 0.0
    %v2678 = vmax.f32 %v2580, 0.0
    %v2679 = vmax.f32 %v2581, 0.0
    %v2680 = vmax.f32 %v2582, 0.0
    %v2681 = vmax.f32 %v2583, 0.0
    %v2682 = vmax.f32 %v2584, 0.0
    %v2683 = vmax.f32 %v2585, 0.0
    %v2684 = vmax.f32 %v2586, 0.0
    %v2685 = vmax.f32 %v2587, 0.0
    %v2686 = vmax.f32 %v2588, 0.0
    %v2687 = vmax.f32 %v2589, 0.0
    %v2688 = vmax.f32 %v2590, 0.0
    %v2689 = vmax.f32 %v2591, 0.0
    %v2690 = vmax.f32 %v2592, 0.0
    %v2691 = vmax.f32 %v2593, 0.0
    %v2692 = vmax.f32 %v2594, 0.0
    %v2693 = vmax.f32 %v2595, 0.0
    %v2694 = vmax.f32 %v2596, 0.0
    %v2695 = vmax.f32 %v2597, 0.0
    %v2696 = vmax.f32 %v2598, 0.0
    %v2697 = vmax.f32 %v2599, 0.0
    %v2698 = vmax.f32 %v2600, 0.0
    %v2699 = vmax.f32 %v2601, 0.0
    %v2700 = vmax.f32 %v2602, 0.0
    %v2701 = vmax.f32 %v2603, 0.0
    %v2702 = vmax.f32 %v2604, 0.0
    %v2703 = vmax.f32 %v2605, 0.0
    %v2704 = vmax.f32 %v2606, 0.0
    %v2705 = vmax.f32 %v2607, 0.0
    %v2706 = vmax.f32 %v2608, 0.0
    %v2707 = vmax.f32 %v2609, 0.0
    %v2708 = vmax.f32 %v2610, 0.0
    %v2709 = vmax.f32 %v2611, 0.0
    %v2710 = vmax.f32 %v2612, 0.0
    %v2711 = vmax.f32 %v2613, 0.0
    %v2712 = vmax.f32 %v2614, 0.0
    %v2713 = vmax.f32 %v2615, 0.0
    %v2714 = vmax.f32 %v2616, 0.0
    %v2715 = vmax.f32 %v2617, 0.0
    %v2716 = vmax.f32 %v2618, 0.0
    %v2717 = vmax.f32 %v2619, 0.0
    %v2718 = vmax.f32 %v2620, 0.0
    %v2719 = vmax.f32 %v2621, 0.0
    %v2720 = vmax.f32 %v2622, 0.0
    %v2721 = vmax.f32 %v2623, 0.0
    %v2722 = vmax.f32 %v2624, 0.0
    %v2723 = vmax.f32 %v2625, 0.0
    %v2724 = vmax.f32 %v2626, 0.0
    %v2725 = vmax.f32 %v2627, 0.0
    %v2726 = vmax.f32 %v2628, 0.0
    %v2727 = vmax.f32 %v2629, 0.0
    %v2728 = vmax.f32 %v2630, 0.0
    %v2729 = vmax.f32 %v2631, 0.0
    %v2730 = vmax.f32 %v2632, 0.0
    %v2731 = vmax.f32 %v2633, 0.0
    %v2732 = vmax.f32 %v2634, 0.0
    %v2733 = vmax.f32 %v2635, 0.0
    %v2734 = vmax.f32 %v2636, 0.0
    %v2735 = vmax.f32 %v2637, 0.0
    %v2736 = vmax.f32 %v2638, 0.0
    %v2737 = vmax.f32 %v2639, 0.0
    %v2738 = vmax.f32 %v2640, 0.0
    %v2739 = vmax.f32 %v2641, 0.0
    %v2740 = vmax.f32 %v2642, 0.0
    %v2741 = vmax.f32 %v2643, 0.0
    %v2742 = vmax.f32 %v2644, 0.0
    %v2743 = vmax.f32 %v2645, 0.0
    %v2744 = vmax.f32 %v2646, 0.0
    %v2745 = vmax.f32 %v2647, 0.0
    %v2746 = vmax.f32 %v2648, 0.0
    %v2747 = vmax.f32 %v2649, 0.0
    %v2748 = vmax.f32 %v2650, 0.0
    %v2749 = vmax.f32 %v2651, 0.0
    %v2750 = vmax.f32 %v2652, 0.0
    %v2751 = vmax.f32 %v2653, 0.0
    %v2752 = vmax.f32 %v2654, 0.0
    %v2753 = vmax.f32 %v2655, 0.0
    %v2754 = vmax.f32 %v2656, 0.0
    %v2755 = vmax.f32 %v2657, 0.0
    %v2756 = vmax.f32 %v2658, 0.0
    %v2757 = vmax.f32 %v2659, 0.0
    %v2758 = vmax.f32 %v2660, 0.0
    %v2759 = vmax.f32 %v2661, 0.0
    %v2760 = vmax.f32 %v2662, 0.0
    %v2761 = vmax.f32 %v2663, 0.0
    %v2762 = vmax.f32 %v2664, 0.0
    %v2763 = vmax.f32 %v2665, 0.0
    %v2764 = vmax.f32 %v2666, 0.0
    %v2765 = vmax.f32 %v2667, 0.0
    %v2766 = vmax.f32 %v2668, 0.0
    %v2767 = vmax.f32 %v2669, 0.0
    %v2768 = vmax.f32 %v2670, 0.0
    %v2769 = vmax.f32 %v2671, 0.0
    %v2770 = vmax.f32 %v2672, 0.0
    %v2771 = vmax.f32 %v2673, 0.0
    %v2772 = vmax.f32 %v2674, 0.0
    %v2773 = vmax.f32 %v2675, 0.0
    %v2774 = vmax.f32 %v2676, 0.0
    %s2775 = scalar_lea.vmem [#allocation8], 3136
    %2776 = vst [vmem:[%s2775] sm:$0xff] %v2677
    %2777 = vst [vmem:[%s2775 + $0x8] sm:$0xff] %v2678
    %2778 = vst [vmem:[%s2775 + $0x10] sm:$0xff] %v2679
    %2779 = vst [vmem:[%s2775 + $0x18] sm:$0xff] %v2680
    %2780 = vst [vmem:[%s2775 + $0x20] sm:$0xff] %v2681
    %2781 = vst [vmem:[%s2775 + $0x28] sm:$0xff] %v2682
    %2782 = vst [vmem:[%s2775 + $0x30] sm:$0xff] %v2683
    %2783 = vst [vmem:[%s2775 + $0x38] sm:$0xff] %v2684
    %2784 = vst [vmem:[%s2775 + $0x40] sm:$0xff] %v2685
    %2785 = vst [vmem:[%s2775 + $0x48] sm:$0xff] %v2686
    %2786 = vst [vmem:[%s2775 + $0x50] sm:$0xff] %v2687
    %2787 = vst [vmem:[%s2775 + $0x58] sm:$0xff] %v2688
    %2788 = vst [vmem:[%s2775 + $0x60] sm:$0xff] %v2689
    %2789 = vst [vmem:[%s2775 + $0x68] sm:$0xff] %v2690
    %2790 = vst [vmem:[%s2775 + $0x70] sm:$0xff] %v2691
    %2791 = vst [vmem:[%s2775 + $0x78] sm:$0xff] %v2692
    %2792 = vst [vmem:[%s2775 + $0x80] sm:$0xff] %v2693
    %2793 = vst [vmem:[%s2775 + $0x88] sm:$0xff] %v2694
    %2794 = vst [vmem:[%s2775 + $0x90] sm:$0xff] %v2695
    %2795 = vst [vmem:[%s2775 + $0x98] sm:$0xff] %v2696
    %2796 = vst [vmem:[%s2775 + $0xa0] sm:$0xff] %v2697
    %2797 = vst [vmem:[%s2775 + $0xa8] sm:$0xff] %v2698
    %2798 = vst [vmem:[%s2775 + $0xb0] sm:$0xff] %v2699
    %2799 = vst [vmem:[%s2775 + $0xb8] sm:$0xff] %v2700
    %2800 = vst [vmem:[%s2775 + $0xc0] sm:$0xff] %v2701
    %2801 = vst [vmem:[%s2775 + $0xc8] sm:$0xff] %v2702
    %2802 = vst [vmem:[%s2775 + $0xd0] sm:$0xff] %v2703
    %2803 = vst [vmem:[%s2775 + $0xd8] sm:$0xff] %v2704
    %2804 = vst [vmem:[%s2775 + $0xe0] sm:$0xff] %v2705
    %2805 = vst [vmem:[%s2775 + $0xe8] sm:$0xff] %v2706
    %2806 = vst [vmem:[%s2775 + $0xf0] sm:$0xff] %v2707
    %2807 = vst [vmem:[%s2775 + $0xf8] sm:$0xff] %v2708
    %2808 = vst [vmem:[%s2775 + $0x100] sm:$0xff] %v2709
    %2809 = vst [vmem:[%s2775 + $0x108] sm:$0xff] %v2710
    %2810 = vst [vmem:[%s2775 + $0x110] sm:$0xff] %v2711
    %2811 = vst [vmem:[%s2775 + $0x118] sm:$0xff] %v2712
    %2812 = vst [vmem:[%s2775 + $0x120] sm:$0xff] %v2713
    %2813 = vst [vmem:[%s2775 + $0x128] sm:$0xff] %v2714
    %2814 = vst [vmem:[%s2775 + $0x130] sm:$0xff] %v2715
    %2815 = vst [vmem:[%s2775 + $0x138] sm:$0xff] %v2716
    %2816 = vst [vmem:[%s2775 + $0x140] sm:$0xff] %v2717
    %2817 = vst [vmem:[%s2775 + $0x148] sm:$0xff] %v2718
    %2818 = vst [vmem:[%s2775 + $0x150] sm:$0xff] %v2719
    %2819 = vst [vmem:[%s2775 + $0x158] sm:$0xff] %v2720
    %2820 = vst [vmem:[%s2775 + $0x160] sm:$0xff] %v2721
    %2821 = vst [vmem:[%s2775 + $0x168] sm:$0xff] %v2722
    %2822 = vst [vmem:[%s2775 + $0x170] sm:$0xff] %v2723
    %2823 = vst [vmem:[%s2775 + $0x178] sm:$0xff] %v2724
    %2824 = vst [vmem:[%s2775 + $0x180] sm:$0xff] %v2725
    %2825 = vst [vmem:[%s2775 + $0x188] sm:$0xff] %v2726
    %2826 = vst [vmem:[%s2775 + $0x190] sm:$0xff] %v2727
    %2827 = vst [vmem:[%s2775 + $0x198] sm:$0xff] %v2728
    %2828 = vst [vmem:[%s2775 + $0x1a0] sm:$0xff] %v2729
    %2829 = vst [vmem:[%s2775 + $0x1a8] sm:$0xff] %v2730
    %2830 = vst [vmem:[%s2775 + $0x1b0] sm:$0xff] %v2731
    %2831 = vst [vmem:[%s2775 + $0x1b8] sm:$0xff] %v2732
    %2832 = vst [vmem:[%s2775 + $0x1c0] sm:$0xff] %v2733
    %2833 = vst [vmem:[%s2775 + $0x1c8] sm:$0xff] %v2734
    %2834 = vst [vmem:[%s2775 + $0x1d0] sm:$0xff] %v2735
    %2835 = vst [vmem:[%s2775 + $0x1d8] sm:$0xff] %v2736
    %2836 = vst [vmem:[%s2775 + $0x1e0] sm:$0xff] %v2737
    %2837 = vst [vmem:[%s2775 + $0x1e8] sm:$0xff] %v2738
    %2838 = vst [vmem:[%s2775 + $0x1f0] sm:$0xff] %v2739
    %2839 = vst [vmem:[%s2775 + $0x1f8] sm:$0xff] %v2740
    %2840 = vst [vmem:[%s2775 + $0x200] sm:$0xff] %v2741
    %2841 = vst [vmem:[%s2775 + $0x208] sm:$0xff] %v2742
    %2842 = vst [vmem:[%s2775 + $0x210] sm:$0xff] %v2743
    %2843 = vst [vmem:[%s2775 + $0x218] sm:$0xff] %v2744
    %2844 = vst [vmem:[%s2775 + $0x220] sm:$0xff] %v2745
    %2845 = vst [vmem:[%s2775 + $0x228] sm:$0xff] %v2746
    %2846 = vst [vmem:[%s2775 + $0x230] sm:$0xff] %v2747
    %2847 = vst [vmem:[%s2775 + $0x238] sm:$0xff] %v2748
    %2848 = vst [vmem:[%s2775 + $0x240] sm:$0xff] %v2749
    %2849 = vst [vmem:[%s2775 + $0x248] sm:$0xff] %v2750
    %2850 = vst [vmem:[%s2775 + $0x250] sm:$0xff] %v2751
    %2851 = vst [vmem:[%s2775 + $0x258] sm:$0xff] %v2752
    %2852 = vst [vmem:[%s2775 + $0x260] sm:$0xff] %v2753
    %2853 = vst [vmem:[%s2775 + $0x268] sm:$0xff] %v2754
    %2854 = vst [vmem:[%s2775 + $0x270] sm:$0xff] %v2755
    %2855 = vst [vmem:[%s2775 + $0x278] sm:$0xff] %v2756
    %2856 = vst [vmem:[%s2775 + $0x280] sm:$0xff] %v2757
    %2857 = vst [vmem:[%s2775 + $0x288] sm:$0xff] %v2758
    %2858 = vst [vmem:[%s2775 + $0x290] sm:$0xff] %v2759
    %2859 = vst [vmem:[%s2775 + $0x298] sm:$0xff] %v2760
    %2860 = vst [vmem:[%s2775 + $0x2a0] sm:$0xff] %v2761
    %2861 = vst [vmem:[%s2775 + $0x2a8] sm:$0xff] %v2762
    %2862 = vst [vmem:[%s2775 + $0x2b0] sm:$0xff] %v2763
    %2863 = vst [vmem:[%s2775 + $0x2b8] sm:$0xff] %v2764
    %2864 = vst [vmem:[%s2775 + $0x2c0] sm:$0xff] %v2765
    %2865 = vst [vmem:[%s2775 + $0x2c8] sm:$0xff] %v2766
    %2866 = vst [vmem:[%s2775 + $0x2d0] sm:$0xff] %v2767
    %2867 = vst [vmem:[%s2775 + $0x2d8] sm:$0xff] %v2768
    %2868 = vst [vmem:[%s2775 + $0x2e0] sm:$0xff] %v2769
    %2869 = vst [vmem:[%s2775 + $0x2e8] sm:$0xff] %v2770
    %2870 = vst [vmem:[%s2775 + $0x2f0] sm:$0xff] %v2771
    %2871 = vst [vmem:[%s2775 + $0x2f8] sm:$0xff] %v2772
    %2872 = vst [vmem:[%s2775 + $0x300] sm:$0xff] %v2773
    %2873 = vst [vmem:[%s2775 + $0x308] sm:$0xff] %v2774
    %s2874 = scalar_lea.vmem [#allocation2], 5
    %v2875 = vld [vmem:[%s2874] ss:$8 sm:$0xf]
    %v2876 = vld [vmem:[%s2874] ss:$8 sm:$0xf0]
    %v2877 = vor.u32 %v2875, %v2876
    %s2878 = scalar_lea.vmem [#allocation2], 69
    %v2879 = vld [vmem:[%s2878] ss:$8 sm:$0xf]
    %v2880 = vld [vmem:[%s2878] ss:$8 sm:$0xf0]
    %v2881 = vor.u32 %v2879, %v2880
    %s2882 = scalar_lea.vmem [#allocation2], 133
    %v2883 = vld [vmem:[%s2882] ss:$8 sm:$0xf]
    %v2884 = vld [vmem:[%s2882] ss:$8 sm:$0xf0]
    %v2885 = vor.u32 %v2883, %v2884
    %s2886 = scalar_lea.vmem [#allocation2], 197
    %v2887 = vld [vmem:[%s2886] ss:$8 sm:$0xf]
    %v2888 = vld [vmem:[%s2886] ss:$8 sm:$0xf0]
    %v2889 = vor.u32 %v2887, %v2888
    %s2890 = scalar_lea.vmem [#allocation2], 261
    %v2891 = vld [vmem:[%s2890] ss:$8 sm:$0xf]
    %v2892 = vld [vmem:[%s2890] ss:$8 sm:$0xf0]
    %v2893 = vor.u32 %v2891, %v2892
    %s2894 = scalar_lea.vmem [#allocation2], 325
    %v2895 = vld [vmem:[%s2894] ss:$8 sm:$0xf]
    %v2896 = vld [vmem:[%s2894] ss:$8 sm:$0xf0]
    %v2897 = vor.u32 %v2895, %v2896
    %s2898 = scalar_lea.vmem [#allocation2], 389
    %v2899 = vld [vmem:[%s2898] ss:$8 sm:$0x1]
    %v2907 = vperm.slane %v2877, 0
    %v2908 = vperm.slane %v2877, 1
    %v2909 = vperm.slane %v2877, 2
    %v2910 = vperm.slane %v2877, 3
    %v2911 = vperm.slane %v2877, 4
    %v2912 = vperm.slane %v2877, 5
    %v2913 = vperm.slane %v2877, 6
    %v2914 = vperm.slane %v2877, 7
    %v2915 = vperm.slane %v2881, 0
    %v2916 = vperm.slane %v2881, 1
    %v2917 = vperm.slane %v2881, 2
    %v2918 = vperm.slane %v2881, 3
    %v2919 = vperm.slane %v2881, 4
    %v2920 = vperm.slane %v2881, 5
    %v2921 = vperm.slane %v2881, 6
    %v2922 = vperm.slane %v2881, 7
    %v2923 = vperm.slane %v2885, 0
    %v2924 = vperm.slane %v2885, 1
    %v2925 = vperm.slane %v2885, 2
    %v2926 = vperm.slane %v2885, 3
    %v2927 = vperm.slane %v2885, 4
    %v2928 = vperm.slane %v2885, 5
    %v2929 = vperm.slane %v2885, 6
    %v2930 = vperm.slane %v2885, 7
    %v2931 = vperm.slane %v2889, 0
    %v2932 = vperm.slane %v2889, 1
    %v2933 = vperm.slane %v2889, 2
    %v2934 = vperm.slane %v2889, 3
    %v2935 = vperm.slane %v2889, 4
    %v2936 = vperm.slane %v2889, 5
    %v2937 = vperm.slane %v2889, 6
    %v2938 = vperm.slane %v2889, 7
    %v2939 = vperm.slane %v2893, 0
    %v2940 = vperm.slane %v2893, 1
    %v2941 = vperm.slane %v2893, 2
    %v2942 = vperm.slane %v2893, 3
    %v2943 = vperm.slane %v2893, 4
    %v2944 = vperm.slane %v2893, 5
    %v2945 = vperm.slane %v2893, 6
    %v2946 = vperm.slane %v2893, 7
    %v2947 = vperm.slane %v2897, 0
    %v2948 = vperm.slane %v2897, 1
    %v2949 = vperm.slane %v2897, 2
    %v2950 = vperm.slane %v2897, 3
    %v2951 = vperm.slane %v2897, 4
    %v2952 = vperm.slane %v2897, 5
    %v2953 = vperm.slane %v2897, 6
    %v2954 = vperm.slane %v2897, 7
    %v2955 = vperm.slane %v2899, 0
    %v3005 = vmul.f32 %v2907, %v60
    %v3006 = vmul.f32 %v2908, %v61
    %v3007 = vmul.f32 %v2909, %v62
    %v3008 = vmul.f32 %v2910, %v63
    %v3009 = vmul.f32 %v2911, %v64
    %v3010 = vmul.f32 %v2912, %v65
    %v3011 = vmul.f32 %v2913, %v66
    %v3012 = vmul.f32 %v2914, %v67
    %v3013 = vmul.f32 %v2915, %v68
    %v3014 = vmul.f32 %v2916, %v69
    %v3015 = vmul.f32 %v2917, %v70
    %v3016 = vmul.f32 %v2918, %v71
    %v3017 = vmul.f32 %v2919, %v72
    %v3018 = vmul.f32 %v2920, %v73
    %v3019 = vmul.f32 %v2921, %v74
    %v3020 = vmul.f32 %v2922, %v75
    %v3021 = vmul.f32 %v2923, %v76
    %v3022 = vmul.f32 %v2924, %v77
    %v3023 = vmul.f32 %v2925, %v78
    %v3024 = vmul.f32 %v2926, %v79
    %v3025 = vmul.f32 %v2927, %v80
    %v3026 = vmul.f32 %v2928, %v81
    %v3027 = vmul.f32 %v2929, %v82
    %v3028 = vmul.f32 %v2930, %v83
    %v3029 = vmul.f32 %v2931, %v84
    %v3030 = vmul.f32 %v2932, %v85
    %v3031 = vmul.f32 %v2933, %v86
    %v3032 = vmul.f32 %v2934, %v87
    %v3033 = vmul.f32 %v2935, %v88
    %v3034 = vmul.f32 %v2936, %v89
    %v3035 = vmul.f32 %v2937, %v90
    %v3036 = vmul.f32 %v2938, %v91
    %v3037 = vmul.f32 %v2939, %v92
    %v3038 = vmul.f32 %v2940, %v93
    %v3039 = vmul.f32 %v2941, %v94
    %v3040 = vmul.f32 %v2942, %v95
    %v3041 = vmul.f32 %v2943, %v96
    %v3042 = vmul.f32 %v2944, %v97
    %v3043 = vmul.f32 %v2945, %v98
    %v3044 = vmul.f32 %v2946, %v99
    %v3045 = vmul.f32 %v2947, %v100
    %v3046 = vmul.f32 %v2948, %v101
    %v3047 = vmul.f32 %v2949, %v102
    %v3048 = vmul.f32 %v2950, %v103
    %v3049 = vmul.f32 %v2951, %v104
    %v3050 = vmul.f32 %v2952, %v105
    %v3051 = vmul.f32 %v2953, %v106
    %v3052 = vmul.f32 %v2954, %v107
    %v3053 = vmul.f32 %v2955, %v108
    %v3054 = vmul.f32 %v2907, %v109
    %v3055 = vmul.f32 %v2908, %v110
    %v3056 = vmul.f32 %v2909, %v111
    %v3057 = vmul.f32 %v2910, %v112
    %v3058 = vmul.f32 %v2911, %v113
    %v3059 = vmul.f32 %v2912, %v114
    %v3060 = vmul.f32 %v2913, %v115
    %v3061 = vmul.f32 %v2914, %v116
    %v3062 = vmul.f32 %v2915, %v117
    %v3063 = vmul.f32 %v2916, %v118
    %v3064 = vmul.f32 %v2917, %v119
    %v3065 = vmul.f32 %v2918, %v120
    %v3066 = vmul.f32 %v2919, %v121
    %v3067 = vmul.f32 %v2920, %v122
    %v3068 = vmul.f32 %v2921, %v123
    %v3069 = vmul.f32 %v2922, %v124
    %v3070 = vmul.f32 %v2923, %v125
    %v3071 = vmul.f32 %v2924, %v126
    %v3072 = vmul.f32 %v2925, %v127
    %v3073 = vmul.f32 %v2926, %v128
    %v3074 = vmul.f32 %v2927, %v129
    %v3075 = vmul.f32 %v2928, %v130
    %v3076 = vmul.f32 %v2929, %v131
    %v3077 = vmul.f32 %v2930, %v132
    %v3078 = vmul.f32 %v2931, %v133
    %v3079 = vmul.f32 %v2932, %v134
    %v3080 = vmul.f32 %v2933, %v135
    %v3081 = vmul.f32 %v2934, %v136
    %v3082 = vmul.f32 %v2935, %v137
    %v3083 = vmul.f32 %v2936, %v138
    %v3084 = vmul.f32 %v2937, %v139
    %v3085 = vmul.f32 %v2938, %v140
    %v3086 = vmul.f32 %v2939, %v141
    %v3087 = vmul.f32 %v2940, %v142
    %v3088 = vmul.f32 %v2941, %v143
    %v3089 = vmul.f32 %v2942, %v144
    %v3090 = vmul.f32 %v2943, %v145
    %v3091 = vmul.f32 %v2944, %v146
    %v3092 = vmul.f32 %v2945, %v147
    %v3093 = vmul.f32 %v2946, %v148
    %v3094 = vmul.f32 %v2947, %v149
    %v3095 = vmul.f32 %v2948, %v150
    %v3096 = vmul.f32 %v2949, %v151
    %v3097 = vmul.f32 %v2950, %v152
    %v3098 = vmul.f32 %v2951, %v153
    %v3099 = vmul.f32 %v2952, %v154
    %v3100 = vmul.f32 %v2953, %v155
    %v3101 = vmul.f32 %v2954, %v156
    %v3102 = vmul.f32 %v2955, %v157
    %v3103 = vadd.f32 %v3005, %v158
    %v3104 = vadd.f32 %v3006, %v159
    %v3105 = vadd.f32 %v3007, %v160
    %v3106 = vadd.f32 %v3008, %v161
    %v3107 = vadd.f32 %v3009, %v162
    %v3108 = vadd.f32 %v3010, %v163
    %v3109 = vadd.f32 %v3011, %v164
    %v3110 = vadd.f32 %v3012, %v165
    %v3111 = vadd.f32 %v3013, %v166
    %v3112 = vadd.f32 %v3014, %v167
    %v3113 = vadd.f32 %v3015, %v168
    %v3114 = vadd.f32 %v3016, %v169
    %v3115 = vadd.f32 %v3017, %v170
    %v3116 = vadd.f32 %v3018, %v171
    %v3117 = vadd.f32 %v3019, %v172
    %v3118 = vadd.f32 %v3020, %v173
    %v3119 = vadd.f32 %v3021, %v174
    %v3120 = vadd.f32 %v3022, %v175
    %v3121 = vadd.f32 %v3023, %v176
    %v3122 = vadd.f32 %v3024, %v177
    %v3123 = vadd.f32 %v3025, %v178
    %v3124 = vadd.f32 %v3026, %v179
    %v3125 = vadd.f32 %v3027, %v180
    %v3126 = vadd.f32 %v3028, %v181
    %v3127 = vadd.f32 %v3029, %v182
    %v3128 = vadd.f32 %v3030, %v183
    %v3129 = vadd.f32 %v3031, %v184
    %v3130 = vadd.f32 %v3032, %v185
    %v3131 = vadd.f32 %v3033, %v186
    %v3132 = vadd.f32 %v3034, %v187
    %v3133 = vadd.f32 %v3035, %v188
    %v3134 = vadd.f32 %v3036, %v189
    %v3135 = vadd.f32 %v3037, %v190
    %v3136 = vadd.f32 %v3038, %v191
    %v3137 = vadd.f32 %v3039, %v192
    %v3138 = vadd.f32 %v3040, %v193
    %v3139 = vadd.f32 %v3041, %v194
    %v3140 = vadd.f32 %v3042, %v195
    %v3141 = vadd.f32 %v3043, %v196
    %v3142 = vadd.f32 %v3044, %v197
    %v3143 = vadd.f32 %v3045, %v198
    %v3144 = vadd.f32 %v3046, %v199
    %v3145 = vadd.f32 %v3047, %v200
    %v3146 = vadd.f32 %v3048, %v201
    %v3147 = vadd.f32 %v3049, %v202
    %v3148 = vadd.f32 %v3050, %v203
    %v3149 = vadd.f32 %v3051, %v204
    %v3150 = vadd.f32 %v3052, %v205
    %v3151 = vadd.f32 %v3053, %v206
    %v3152 = vadd.f32 %v3054, %v207
    %v3153 = vadd.f32 %v3055, %v208
    %v3154 = vadd.f32 %v3056, %v209
    %v3155 = vadd.f32 %v3057, %v210
    %v3156 = vadd.f32 %v3058, %v211
    %v3157 = vadd.f32 %v3059, %v212
    %v3158 = vadd.f32 %v3060, %v213
    %v3159 = vadd.f32 %v3061, %v214
    %v3160 = vadd.f32 %v3062, %v215
    %v3161 = vadd.f32 %v3063, %v216
    %v3162 = vadd.f32 %v3064, %v217
    %v3163 = vadd.f32 %v3065, %v218
    %v3164 = vadd.f32 %v3066, %v219
    %v3165 = vadd.f32 %v3067, %v220
    %v3166 = vadd.f32 %v3068, %v221
    %v3167 = vadd.f32 %v3069, %v222
    %v3168 = vadd.f32 %v3070, %v223
    %v3169 = vadd.f32 %v3071, %v224
    %v3170 = vadd.f32 %v3072, %v225
    %v3171 = vadd.f32 %v3073, %v226
    %v3172 = vadd.f32 %v3074, %v227
    %v3173 = vadd.f32 %v3075, %v228
    %v3174 = vadd.f32 %v3076, %v229
    %v3175 = vadd.f32 %v3077, %v230
    %v3176 = vadd.f32 %v3078, %v231
    %v3177 = vadd.f32 %v3079, %v232
    %v3178 = vadd.f32 %v3080, %v233
    %v3179 = vadd.f32 %v3081, %v234
    %v3180 = vadd.f32 %v3082, %v235
    %v3181 = vadd.f32 %v3083, %v236
    %v3182 = vadd.f32 %v3084, %v237
    %v3183 = vadd.f32 %v3085, %v238
    %v3184 = vadd.f32 %v3086, %v239
    %v3185 = vadd.f32 %v3087, %v240
    %v3186 = vadd.f32 %v3088, %v241
    %v3187 = vadd.f32 %v3089, %v242
    %v3188 = vadd.f32 %v3090, %v243
    %v3189 = vadd.f32 %v3091, %v244
    %v3190 = vadd.f32 %v3092, %v245
    %v3191 = vadd.f32 %v3093, %v246
    %v3192 = vadd.f32 %v3094, %v247
    %v3193 = vadd.f32 %v3095, %v248
    %v3194 = vadd.f32 %v3096, %v249
    %v3195 = vadd.f32 %v3097, %v250
    %v3196 = vadd.f32 %v3098, %v251
    %v3197 = vadd.f32 %v3099, %v252
    %v3198 = vadd.f32 %v3100, %v253
    %v3199 = vadd.f32 %v3101, %v254
    %v3200 = vadd.f32 %v3102, %v255
    %v3201 = vmax.f32 %v3103, 0.0
    %v3202 = vmax.f32 %v3104, 0.0
    %v3203 = vmax.f32 %v3105, 0.0
    %v3204 = vmax.f32 %v3106, 0.0
    %v3205 = vmax.f32 %v3107, 0.0
    %v3206 = vmax.f32 %v3108, 0.0
    %v3207 = vmax.f32 %v3109, 0.0
    %v3208 = vmax.f32 %v3110, 0.0
    %v3209 = vmax.f32 %v3111, 0.0
    %v3210 = vmax.f32 %v3112, 0.0
    %v3211 = vmax.f32 %v3113, 0.0
    %v3212 = vmax.f32 %v3114, 0.0
    %v3213 = vmax.f32 %v3115, 0.0
    %v3214 = vmax.f32 %v3116, 0.0
    %v3215 = vmax.f32 %v3117, 0.0
    %v3216 = vmax.f32 %v3118, 0.0
    %v3217 = vmax.f32 %v3119, 0.0
    %v3218 = vmax.f32 %v3120, 0.0
    %v3219 = vmax.f32 %v3121, 0.0
    %v3220 = vmax.f32 %v3122, 0.0
    %v3221 = vmax.f32 %v3123, 0.0
    %v3222 = vmax.f32 %v3124, 0.0
    %v3223 = vmax.f32 %v3125, 0.0
    %v3224 = vmax.f32 %v3126, 0.0
    %v3225 = vmax.f32 %v3127, 0.0
    %v3226 = vmax.f32 %v3128, 0.0
    %v3227 = vmax.f32 %v3129, 0.0
    %v3228 = vmax.f32 %v3130, 0.0
    %v3229 = vmax.f32 %v3131, 0.0
    %v3230 = vmax.f32 %v3132, 0.0
    %v3231 = vmax.f32 %v3133, 0.0
    %v3232 = vmax.f32 %v3134, 0.0
    %v3233 = vmax.f32 %v3135, 0.0
    %v3234 = vmax.f32 %v3136, 0.0
    %v3235 = vmax.f32 %v3137, 0.0
    %v3236 = vmax.f32 %v3138, 0.0
    %v3237 = vmax.f32 %v3139, 0.0
    %v3238 = vmax.f32 %v3140, 0.0
    %v3239 = vmax.f32 %v3141, 0.0
    %v3240 = vmax.f32 %v3142, 0.0
    %v3241 = vmax.f32 %v3143, 0.0
    %v3242 = vmax.f32 %v3144, 0.0
    %v3243 = vmax.f32 %v3145, 0.0
    %v3244 = vmax.f32 %v3146, 0.0
    %v3245 = vmax.f32 %v3147, 0.0
    %v3246 = vmax.f32 %v3148, 0.0
    %v3247 = vmax.f32 %v3149, 0.0
    %v3248 = vmax.f32 %v3150, 0.0
    %v3249 = vmax.f32 %v3151, 0.0
    %v3250 = vmax.f32 %v3152, 0.0
    %v3251 = vmax.f32 %v3153, 0.0
    %v3252 = vmax.f32 %v3154, 0.0
    %v3253 = vmax.f32 %v3155, 0.0
    %v3254 = vmax.f32 %v3156, 0.0
    %v3255 = vmax.f32 %v3157, 0.0
    %v3256 = vmax.f32 %v3158, 0.0
    %v3257 = vmax.f32 %v3159, 0.0
    %v3258 = vmax.f32 %v3160, 0.0
    %v3259 = vmax.f32 %v3161, 0.0
    %v3260 = vmax.f32 %v3162, 0.0
    %v3261 = vmax.f32 %v3163, 0.0
    %v3262 = vmax.f32 %v3164, 0.0
    %v3263 = vmax.f32 %v3165, 0.0
    %v3264 = vmax.f32 %v3166, 0.0
    %v3265 = vmax.f32 %v3167, 0.0
    %v3266 = vmax.f32 %v3168, 0.0
    %v3267 = vmax.f32 %v3169, 0.0
    %v3268 = vmax.f32 %v3170, 0.0
    %v3269 = vmax.f32 %v3171, 0.0
    %v3270 = vmax.f32 %v3172, 0.0
    %v3271 = vmax.f32 %v3173, 0.0
    %v3272 = vmax.f32 %v3174, 0.0
    %v3273 = vmax.f32 %v3175, 0.0
    %v3274 = vmax.f32 %v3176, 0.0
    %v3275 = vmax.f32 %v3177, 0.0
    %v3276 = vmax.f32 %v3178, 0.0
    %v3277 = vmax.f32 %v3179, 0.0
    %v3278 = vmax.f32 %v3180, 0.0
    %v3279 = vmax.f32 %v3181, 0.0
    %v3280 = vmax.f32 %v3182, 0.0
    %v3281 = vmax.f32 %v3183, 0.0
    %v3282 = vmax.f32 %v3184, 0.0
    %v3283 = vmax.f32 %v3185, 0.0
    %v3284 = vmax.f32 %v3186, 0.0
    %v3285 = vmax.f32 %v3187, 0.0
    %v3286 = vmax.f32 %v3188, 0.0
    %v3287 = vmax.f32 %v3189, 0.0
    %v3288 = vmax.f32 %v3190, 0.0
    %v3289 = vmax.f32 %v3191, 0.0
    %v3290 = vmax.f32 %v3192, 0.0
    %v3291 = vmax.f32 %v3193, 0.0
    %v3292 = vmax.f32 %v3194, 0.0
    %v3293 = vmax.f32 %v3195, 0.0
    %v3294 = vmax.f32 %v3196, 0.0
    %v3295 = vmax.f32 %v3197, 0.0
    %v3296 = vmax.f32 %v3198, 0.0
    %v3297 = vmax.f32 %v3199, 0.0
    %v3298 = vmax.f32 %v3200, 0.0
    %s3299 = scalar_lea.vmem [#allocation8], 3920
    %3300 = vst [vmem:[%s3299] sm:$0xff] %v3201
    %3301 = vst [vmem:[%s3299 + $0x8] sm:$0xff] %v3202
    %3302 = vst [vmem:[%s3299 + $0x10] sm:$0xff] %v3203
    %3303 = vst [vmem:[%s3299 + $0x18] sm:$0xff] %v3204
    %3304 = vst [vmem:[%s3299 + $0x20] sm:$0xff] %v3205
    %3305 = vst [vmem:[%s3299 + $0x28] sm:$0xff] %v3206
    %3306 = vst [vmem:[%s3299 + $0x30] sm:$0xff] %v3207
    %3307 = vst [vmem:[%s3299 + $0x38] sm:$0xff] %v3208
    %3308 = vst [vmem:[%s3299 + $0x40] sm:$0xff] %v3209
    %3309 = vst [vmem:[%s3299 + $0x48] sm:$0xff] %v3210
    %3310 = vst [vmem:[%s3299 + $0x50] sm:$0xff] %v3211
    %3311 = vst [vmem:[%s3299 + $0x58] sm:$0xff] %v3212
    %3312 = vst [vmem:[%s3299 + $0x60] sm:$0xff] %v3213
    %3313 = vst [vmem:[%s3299 + $0x68] sm:$0xff] %v3214
    %3314 = vst [vmem:[%s3299 + $0x70] sm:$0xff] %v3215
    %3315 = vst [vmem:[%s3299 + $0x78] sm:$0xff] %v3216
    %3316 = vst [vmem:[%s3299 + $0x80] sm:$0xff] %v3217
    %3317 = vst [vmem:[%s3299 + $0x88] sm:$0xff] %v3218
    %3318 = vst [vmem:[%s3299 + $0x90] sm:$0xff] %v3219
    %3319 = vst [vmem:[%s3299 + $0x98] sm:$0xff] %v3220
    %3320 = vst [vmem:[%s3299 + $0xa0] sm:$0xff] %v3221
    %3321 = vst [vmem:[%s3299 + $0xa8] sm:$0xff] %v3222
    %3322 = vst [vmem:[%s3299 + $0xb0] sm:$0xff] %v3223
    %3323 = vst [vmem:[%s3299 + $0xb8] sm:$0xff] %v3224
    %3324 = vst [vmem:[%s3299 + $0xc0] sm:$0xff] %v3225
    %3325 = vst [vmem:[%s3299 + $0xc8] sm:$0xff] %v3226
    %3326 = vst [vmem:[%s3299 + $0xd0] sm:$0xff] %v3227
    %3327 = vst [vmem:[%s3299 + $0xd8] sm:$0xff] %v3228
    %3328 = vst [vmem:[%s3299 + $0xe0] sm:$0xff] %v3229
    %3329 = vst [vmem:[%s3299 + $0xe8] sm:$0xff] %v3230
    %3330 = vst [vmem:[%s3299 + $0xf0] sm:$0xff] %v3231
    %3331 = vst [vmem:[%s3299 + $0xf8] sm:$0xff] %v3232
    %3332 = vst [vmem:[%s3299 + $0x100] sm:$0xff] %v3233
    %3333 = vst [vmem:[%s3299 + $0x108] sm:$0xff] %v3234
    %3334 = vst [vmem:[%s3299 + $0x110] sm:$0xff] %v3235
    %3335 = vst [vmem:[%s3299 + $0x118] sm:$0xff] %v3236
    %3336 = vst [vmem:[%s3299 + $0x120] sm:$0xff] %v3237
    %3337 = vst [vmem:[%s3299 + $0x128] sm:$0xff] %v3238
    %3338 = vst [vmem:[%s3299 + $0x130] sm:$0xff] %v3239
    %3339 = vst [vmem:[%s3299 + $0x138] sm:$0xff] %v3240
    %3340 = vst [vmem:[%s3299 + $0x140] sm:$0xff] %v3241
    %3341 = vst [vmem:[%s3299 + $0x148] sm:$0xff] %v3242
    %3342 = vst [vmem:[%s3299 + $0x150] sm:$0xff] %v3243
    %3343 = vst [vmem:[%s3299 + $0x158] sm:$0xff] %v3244
    %3344 = vst [vmem:[%s3299 + $0x160] sm:$0xff] %v3245
    %3345 = vst [vmem:[%s3299 + $0x168] sm:$0xff] %v3246
    %3346 = vst [vmem:[%s3299 + $0x170] sm:$0xff] %v3247
    %3347 = vst [vmem:[%s3299 + $0x178] sm:$0xff] %v3248
    %3348 = vst [vmem:[%s3299 + $0x180] sm:$0xff] %v3249
    %3349 = vst [vmem:[%s3299 + $0x188] sm:$0xff] %v3250
    %3350 = vst [vmem:[%s3299 + $0x190] sm:$0xff] %v3251
    %3351 = vst [vmem:[%s3299 + $0x198] sm:$0xff] %v3252
    %3352 = vst [vmem:[%s3299 + $0x1a0] sm:$0xff] %v3253
    %3353 = vst [vmem:[%s3299 + $0x1a8] sm:$0xff] %v3254
    %3354 = vst [vmem:[%s3299 + $0x1b0] sm:$0xff] %v3255
    %3355 = vst [vmem:[%s3299 + $0x1b8] sm:$0xff] %v3256
    %3356 = vst [vmem:[%s3299 + $0x1c0] sm:$0xff] %v3257
    %3357 = vst [vmem:[%s3299 + $0x1c8] sm:$0xff] %v3258
    %3358 = vst [vmem:[%s3299 + $0x1d0] sm:$0xff] %v3259
    %3359 = vst [vmem:[%s3299 + $0x1d8] sm:$0xff] %v3260
    %3360 = vst [vmem:[%s3299 + $0x1e0] sm:$0xff] %v3261
    %3361 = vst [vmem:[%s3299 + $0x1e8] sm:$0xff] %v3262
    %3362 = vst [vmem:[%s3299 + $0x1f0] sm:$0xff] %v3263
    %3363 = vst [vmem:[%s3299 + $0x1f8] sm:$0xff] %v3264
    %3364 = vst [vmem:[%s3299 + $0x200] sm:$0xff] %v3265
    %3365 = vst [vmem:[%s3299 + $0x208] sm:$0xff] %v3266
    %3366 = vst [vmem:[%s3299 + $0x210] sm:$0xff] %v3267
    %3367 = vst [vmem:[%s3299 + $0x218] sm:$0xff] %v3268
    %3368 = vst [vmem:[%s3299 + $0x220] sm:$0xff] %v3269
    %3369 = vst [vmem:[%s3299 + $0x228] sm:$0xff] %v3270
    %3370 = vst [vmem:[%s3299 + $0x230] sm:$0xff] %v3271
    %3371 = vst [vmem:[%s3299 + $0x238] sm:$0xff] %v3272
    %3372 = vst [vmem:[%s3299 + $0x240] sm:$0xff] %v3273
    %3373 = vst [vmem:[%s3299 + $0x248] sm:$0xff] %v3274
    %3374 = vst [vmem:[%s3299 + $0x250] sm:$0xff] %v3275
    %3375 = vst [vmem:[%s3299 + $0x258] sm:$0xff] %v3276
    %3376 = vst [vmem:[%s3299 + $0x260] sm:$0xff] %v3277
    %3377 = vst [vmem:[%s3299 + $0x268] sm:$0xff] %v3278
    %3378 = vst [vmem:[%s3299 + $0x270] sm:$0xff] %v3279
    %3379 = vst [vmem:[%s3299 + $0x278] sm:$0xff] %v3280
    %3380 = vst [vmem:[%s3299 + $0x280] sm:$0xff] %v3281
    %3381 = vst [vmem:[%s3299 + $0x288] sm:$0xff] %v3282
    %3382 = vst [vmem:[%s3299 + $0x290] sm:$0xff] %v3283
    %3383 = vst [vmem:[%s3299 + $0x298] sm:$0xff] %v3284
    %3384 = vst [vmem:[%s3299 + $0x2a0] sm:$0xff] %v3285
    %3385 = vst [vmem:[%s3299 + $0x2a8] sm:$0xff] %v3286
    %3386 = vst [vmem:[%s3299 + $0x2b0] sm:$0xff] %v3287
    %3387 = vst [vmem:[%s3299 + $0x2b8] sm:$0xff] %v3288
    %3388 = vst [vmem:[%s3299 + $0x2c0] sm:$0xff] %v3289
    %3389 = vst [vmem:[%s3299 + $0x2c8] sm:$0xff] %v3290
    %3390 = vst [vmem:[%s3299 + $0x2d0] sm:$0xff] %v3291
    %3391 = vst [vmem:[%s3299 + $0x2d8] sm:$0xff] %v3292
    %3392 = vst [vmem:[%s3299 + $0x2e0] sm:$0xff] %v3293
    %3393 = vst [vmem:[%s3299 + $0x2e8] sm:$0xff] %v3294
    %3394 = vst [vmem:[%s3299 + $0x2f0] sm:$0xff] %v3295
    %3395 = vst [vmem:[%s3299 + $0x2f8] sm:$0xff] %v3296
    %3396 = vst [vmem:[%s3299 + $0x300] sm:$0xff] %v3297
    %3397 = vst [vmem:[%s3299 + $0x308] sm:$0xff] %v3298
    %s3398 = scalar_lea.vmem [#allocation2], 6
    %v3399 = vld [vmem:[%s3398] ss:$8 sm:$0xf]
    %v3400 = vld [vmem:[%s3398] ss:$8 sm:$0xf0]
    %v3401 = vor.u32 %v3399, %v3400
    %s3402 = scalar_lea.vmem [#allocation2], 70
    %v3403 = vld [vmem:[%s3402] ss:$8 sm:$0xf]
    %v3404 = vld [vmem:[%s3402] ss:$8 sm:$0xf0]
    %v3405 = vor.u32 %v3403, %v3404
    %s3406 = scalar_lea.vmem [#allocation2], 134
    %v3407 = vld [vmem:[%s3406] ss:$8 sm:$0xf]
    %v3408 = vld [vmem:[%s3406] ss:$8 sm:$0xf0]
    %v3409 = vor.u32 %v3407, %v3408
    %s3410 = scalar_lea.vmem [#allocation2], 198
    %v3411 = vld [vmem:[%s3410] ss:$8 sm:$0xf]
    %v3412 = vld [vmem:[%s3410] ss:$8 sm:$0xf0]
    %v3413 = vor.u32 %v3411, %v3412
    %s3414 = scalar_lea.vmem [#allocation2], 262
    %v3415 = vld [vmem:[%s3414] ss:$8 sm:$0xf]
    %v3416 = vld [vmem:[%s3414] ss:$8 sm:$0xf0]
    %v3417 = vor.u32 %v3415, %v3416
    %s3418 = scalar_lea.vmem [#allocation2], 326
    %v3419 = vld [vmem:[%s3418] ss:$8 sm:$0xf]
    %v3420 = vld [vmem:[%s3418] ss:$8 sm:$0xf0]
    %v3421 = vor.u32 %v3419, %v3420
    %s3422 = scalar_lea.vmem [#allocation2], 390
    %v3423 = vld [vmem:[%s3422] ss:$8 sm:$0x1]
    %v3431 = vperm.slane %v3401, 0
    %v3432 = vperm.slane %v3401, 1
    %v3433 = vperm.slane %v3401, 2
    %v3434 = vperm.slane %v3401, 3
    %v3435 = vperm.slane %v3401, 4
    %v3436 = vperm.slane %v3401, 5
    %v3437 = vperm.slane %v3401, 6
    %v3438 = vperm.slane %v3401, 7
    %v3439 = vperm.slane %v3405, 0
    %v3440 = vperm.slane %v3405, 1
    %v3441 = vperm.slane %v3405, 2
    %v3442 = vperm.slane %v3405, 3
    %v3443 = vperm.slane %v3405, 4
    %v3444 = vperm.slane %v3405, 5
    %v3445 = vperm.slane %v3405, 6
    %v3446 = vperm.slane %v3405, 7
    %v3447 = vperm.slane %v3409, 0
    %v3448 = vperm.slane %v3409, 1
    %v3449 = vperm.slane %v3409, 2
    %v3450 = vperm.slane %v3409, 3
    %v3451 = vperm.slane %v3409, 4
    %v3452 = vperm.slane %v3409, 5
    %v3453 = vperm.slane %v3409, 6
    %v3454 = vperm.slane %v3409, 7
    %v3455 = vperm.slane %v3413, 0
    %v3456 = vperm.slane %v3413, 1
    %v3457 = vperm.slane %v3413, 2
    %v3458 = vperm.slane %v3413, 3
    %v3459 = vperm.slane %v3413, 4
    %v3460 = vperm.slane %v3413, 5
    %v3461 = vperm.slane %v3413, 6
    %v3462 = vperm.slane %v3413, 7
    %v3463 = vperm.slane %v3417, 0
    %v3464 = vperm.slane %v3417, 1
    %v3465 = vperm.slane %v3417, 2
    %v3466 = vperm.slane %v3417, 3
    %v3467 = vperm.slane %v3417, 4
    %v3468 = vperm.slane %v3417, 5
    %v3469 = vperm.slane %v3417, 6
    %v3470 = vperm.slane %v3417, 7
    %v3471 = vperm.slane %v3421, 0
    %v3472 = vperm.slane %v3421, 1
    %v3473 = vperm.slane %v3421, 2
    %v3474 = vperm.slane %v3421, 3
    %v3475 = vperm.slane %v3421, 4
    %v3476 = vperm.slane %v3421, 5
    %v3477 = vperm.slane %v3421, 6
    %v3478 = vperm.slane %v3421, 7
    %v3479 = vperm.slane %v3423, 0
    %v3529 = vmul.f32 %v3431, %v60
    %v3530 = vmul.f32 %v3432, %v61
    %v3531 = vmul.f32 %v3433, %v62
    %v3532 = vmul.f32 %v3434, %v63
    %v3533 = vmul.f32 %v3435, %v64
    %v3534 = vmul.f32 %v3436, %v65
    %v3535 = vmul.f32 %v3437, %v66
    %v3536 = vmul.f32 %v3438, %v67
    %v3537 = vmul.f32 %v3439, %v68
    %v3538 = vmul.f32 %v3440, %v69
    %v3539 = vmul.f32 %v3441, %v70
    %v3540 = vmul.f32 %v3442, %v71
    %v3541 = vmul.f32 %v3443, %v72
    %v3542 = vmul.f32 %v3444, %v73
    %v3543 = vmul.f32 %v3445, %v74
    %v3544 = vmul.f32 %v3446, %v75
    %v3545 = vmul.f32 %v3447, %v76
    %v3546 = vmul.f32 %v3448, %v77
    %v3547 = vmul.f32 %v3449, %v78
    %v3548 = vmul.f32 %v3450, %v79
    %v3549 = vmul.f32 %v3451, %v80
    %v3550 = vmul.f32 %v3452, %v81
    %v3551 = vmul.f32 %v3453, %v82
    %v3552 = vmul.f32 %v3454, %v83
    %v3553 = vmul.f32 %v3455, %v84
    %v3554 = vmul.f32 %v3456, %v85
    %v3555 = vmul.f32 %v3457, %v86
    %v3556 = vmul.f32 %v3458, %v87
    %v3557 = vmul.f32 %v3459, %v88
    %v3558 = vmul.f32 %v3460, %v89
    %v3559 = vmul.f32 %v3461, %v90
    %v3560 = vmul.f32 %v3462, %v91
    %v3561 = vmul.f32 %v3463, %v92
    %v3562 = vmul.f32 %v3464, %v93
    %v3563 = vmul.f32 %v3465, %v94
    %v3564 = vmul.f32 %v3466, %v95
    %v3565 = vmul.f32 %v3467, %v96
    %v3566 = vmul.f32 %v3468, %v97
    %v3567 = vmul.f32 %v3469, %v98
    %v3568 = vmul.f32 %v3470, %v99
    %v3569 = vmul.f32 %v3471, %v100
    %v3570 = vmul.f32 %v3472, %v101
    %v3571 = vmul.f32 %v3473, %v102
    %v3572 = vmul.f32 %v3474, %v103
    %v3573 = vmul.f32 %v3475, %v104
    %v3574 = vmul.f32 %v3476, %v105
    %v3575 = vmul.f32 %v3477, %v106
    %v3576 = vmul.f32 %v3478, %v107
    %v3577 = vmul.f32 %v3479, %v108
    %v3578 = vmul.f32 %v3431, %v109
    %v3579 = vmul.f32 %v3432, %v110
    %v3580 = vmul.f32 %v3433, %v111
    %v3581 = vmul.f32 %v3434, %v112
    %v3582 = vmul.f32 %v3435, %v113
    %v3583 = vmul.f32 %v3436, %v114
    %v3584 = vmul.f32 %v3437, %v115
    %v3585 = vmul.f32 %v3438, %v116
    %v3586 = vmul.f32 %v3439, %v117
    %v3587 = vmul.f32 %v3440, %v118
    %v3588 = vmul.f32 %v3441, %v119
    %v3589 = vmul.f32 %v3442, %v120
    %v3590 = vmul.f32 %v3443, %v121
    %v3591 = vmul.f32 %v3444, %v122
    %v3592 = vmul.f32 %v3445, %v123
    %v3593 = vmul.f32 %v3446, %v124
    %v3594 = vmul.f32 %v3447, %v125
    %v3595 = vmul.f32 %v3448, %v126
    %v3596 = vmul.f32 %v3449, %v127
    %v3597 = vmul.f32 %v3450, %v128
    %v3598 = vmul.f32 %v3451, %v129
    %v3599 = vmul.f32 %v3452, %v130
    %v3600 = vmul.f32 %v3453, %v131
    %v3601 = vmul.f32 %v3454, %v132
    %v3602 = vmul.f32 %v3455, %v133
    %v3603 = vmul.f32 %v3456, %v134
    %v3604 = vmul.f32 %v3457, %v135
    %v3605 = vmul.f32 %v3458, %v136
    %v3606 = vmul.f32 %v3459, %v137
    %v3607 = vmul.f32 %v3460, %v138
    %v3608 = vmul.f32 %v3461, %v139
    %v3609 = vmul.f32 %v3462, %v140
    %v3610 = vmul.f32 %v3463, %v141
    %v3611 = vmul.f32 %v3464, %v142
    %v3612 = vmul.f32 %v3465, %v143
    %v3613 = vmul.f32 %v3466, %v144
    %v3614 = vmul.f32 %v3467, %v145
    %v3615 = vmul.f32 %v3468, %v146
    %v3616 = vmul.f32 %v3469, %v147
    %v3617 = vmul.f32 %v3470, %v148
    %v3618 = vmul.f32 %v3471, %v149
    %v3619 = vmul.f32 %v3472, %v150
    %v3620 = vmul.f32 %v3473, %v151
    %v3621 = vmul.f32 %v3474, %v152
    %v3622 = vmul.f32 %v3475, %v153
    %v3623 = vmul.f32 %v3476, %v154
    %v3624 = vmul.f32 %v3477, %v155
    %v3625 = vmul.f32 %v3478, %v156
    %v3626 = vmul.f32 %v3479, %v157
    %v3627 = vadd.f32 %v3529, %v158
    %v3628 = vadd.f32 %v3530, %v159
    %v3629 = vadd.f32 %v3531, %v160
    %v3630 = vadd.f32 %v3532, %v161
    %v3631 = vadd.f32 %v3533, %v162
    %v3632 = vadd.f32 %v3534, %v163
    %v3633 = vadd.f32 %v3535, %v164
    %v3634 = vadd.f32 %v3536, %v165
    %v3635 = vadd.f32 %v3537, %v166
    %v3636 = vadd.f32 %v3538, %v167
    %v3637 = vadd.f32 %v3539, %v168
    %v3638 = vadd.f32 %v3540, %v169
    %v3639 = vadd.f32 %v3541, %v170
    %v3640 = vadd.f32 %v3542, %v171
    %v3641 = vadd.f32 %v3543, %v172
    %v3642 = vadd.f32 %v3544, %v173
    %v3643 = vadd.f32 %v3545, %v174
    %v3644 = vadd.f32 %v3546, %v175
    %v3645 = vadd.f32 %v3547, %v176
    %v3646 = vadd.f32 %v3548, %v177
    %v3647 = vadd.f32 %v3549, %v178
    %v3648 = vadd.f32 %v3550, %v179
    %v3649 = vadd.f32 %v3551, %v180
    %v3650 = vadd.f32 %v3552, %v181
    %v3651 = vadd.f32 %v3553, %v182
    %v3652 = vadd.f32 %v3554, %v183
    %v3653 = vadd.f32 %v3555, %v184
    %v3654 = vadd.f32 %v3556, %v185
    %v3655 = vadd.f32 %v3557, %v186
    %v3656 = vadd.f32 %v3558, %v187
    %v3657 = vadd.f32 %v3559, %v188
    %v3658 = vadd.f32 %v3560, %v189
    %v3659 = vadd.f32 %v3561, %v190
    %v3660 = vadd.f32 %v3562, %v191
    %v3661 = vadd.f32 %v3563, %v192
    %v3662 = vadd.f32 %v3564, %v193
    %v3663 = vadd.f32 %v3565, %v194
    %v3664 = vadd.f32 %v3566, %v195
    %v3665 = vadd.f32 %v3567, %v196
    %v3666 = vadd.f32 %v3568, %v197
    %v3667 = vadd.f32 %v3569, %v198
    %v3668 = vadd.f32 %v3570, %v199
    %v3669 = vadd.f32 %v3571, %v200
    %v3670 = vadd.f32 %v3572, %v201
    %v3671 = vadd.f32 %v3573, %v202
    %v3672 = vadd.f32 %v3574, %v203
    %v3673 = vadd.f32 %v3575, %v204
    %v3674 = vadd.f32 %v3576, %v205
    %v3675 = vadd.f32 %v3577, %v206
    %v3676 = vadd.f32 %v3578, %v207
    %v3677 = vadd.f32 %v3579, %v208
    %v3678 = vadd.f32 %v3580, %v209
    %v3679 = vadd.f32 %v3581, %v210
    %v3680 = vadd.f32 %v3582, %v211
    %v3681 = vadd.f32 %v3583, %v212
    %v3682 = vadd.f32 %v3584, %v213
    %v3683 = vadd.f32 %v3585, %v214
    %v3684 = vadd.f32 %v3586, %v215
    %v3685 = vadd.f32 %v3587, %v216
    %v3686 = vadd.f32 %v3588, %v217
    %v3687 = vadd.f32 %v3589, %v218
    %v3688 = vadd.f32 %v3590, %v219
    %v3689 = vadd.f32 %v3591, %v220
    %v3690 = vadd.f32 %v3592, %v221
    %v3691 = vadd.f32 %v3593, %v222
    %v3692 = vadd.f32 %v3594, %v223
    %v3693 = vadd.f32 %v3595, %v224
    %v3694 = vadd.f32 %v3596, %v225
    %v3695 = vadd.f32 %v3597, %v226
    %v3696 = vadd.f32 %v3598, %v227
    %v3697 = vadd.f32 %v3599, %v228
    %v3698 = vadd.f32 %v3600, %v229
    %v3699 = vadd.f32 %v3601, %v230
    %v3700 = vadd.f32 %v3602, %v231
    %v3701 = vadd.f32 %v3603, %v232
    %v3702 = vadd.f32 %v3604, %v233
    %v3703 = vadd.f32 %v3605, %v234
    %v3704 = vadd.f32 %v3606, %v235
    %v3705 = vadd.f32 %v3607, %v236
    %v3706 = vadd.f32 %v3608, %v237
    %v3707 = vadd.f32 %v3609, %v238
    %v3708 = vadd.f32 %v3610, %v239
    %v3709 = vadd.f32 %v3611, %v240
    %v3710 = vadd.f32 %v3612, %v241
    %v3711 = vadd.f32 %v3613, %v242
    %v3712 = vadd.f32 %v3614, %v243
    %v3713 = vadd.f32 %v3615, %v244
    %v3714 = vadd.f32 %v3616, %v245
    %v3715 = vadd.f32 %v3617, %v246
    %v3716 = vadd.f32 %v3618, %v247
    %v3717 = vadd.f32 %v3619, %v248
    %v3718 = vadd.f32 %v3620, %v249
    %v3719 = vadd.f32 %v3621, %v250
    %v3720 = vadd.f32 %v3622, %v251
    %v3721 = vadd.f32 %v3623, %v252
    %v3722 = vadd.f32 %v3624, %v253
    %v3723 = vadd.f32 %v3625, %v254
    %v3724 = vadd.f32 %v3626, %v255
    %v3725 = vmax.f32 %v3627, 0.0
    %v3726 = vmax.f32 %v3628, 0.0
    %v3727 = vmax.f32 %v3629, 0.0
    %v3728 = vmax.f32 %v3630, 0.0
    %v3729 = vmax.f32 %v3631, 0.0
    %v3730 = vmax.f32 %v3632, 0.0
    %v3731 = vmax.f32 %v3633, 0.0
    %v3732 = vmax.f32 %v3634, 0.0
    %v3733 = vmax.f32 %v3635, 0.0
    %v3734 = vmax.f32 %v3636, 0.0
    %v3735 = vmax.f32 %v3637, 0.0
    %v3736 = vmax.f32 %v3638, 0.0
    %v3737 = vmax.f32 %v3639, 0.0
    %v3738 = vmax.f32 %v3640, 0.0
    %v3739 = vmax.f32 %v3641, 0.0
    %v3740 = vmax.f32 %v3642, 0.0
    %v3741 = vmax.f32 %v3643, 0.0
    %v3742 = vmax.f32 %v3644, 0.0
    %v3743 = vmax.f32 %v3645, 0.0
    %v3744 = vmax.f32 %v3646, 0.0
    %v3745 = vmax.f32 %v3647, 0.0
    %v3746 = vmax.f32 %v3648, 0.0
    %v3747 = vmax.f32 %v3649, 0.0
    %v3748 = vmax.f32 %v3650, 0.0
    %v3749 = vmax.f32 %v3651, 0.0
    %v3750 = vmax.f32 %v3652, 0.0
    %v3751 = vmax.f32 %v3653, 0.0
    %v3752 = vmax.f32 %v3654, 0.0
    %v3753 = vmax.f32 %v3655, 0.0
    %v3754 = vmax.f32 %v3656, 0.0
    %v3755 = vmax.f32 %v3657, 0.0
    %v3756 = vmax.f32 %v3658, 0.0
    %v3757 = vmax.f32 %v3659, 0.0
    %v3758 = vmax.f32 %v3660, 0.0
    %v3759 = vmax.f32 %v3661, 0.0
    %v3760 = vmax.f32 %v3662, 0.0
    %v3761 = vmax.f32 %v3663, 0.0
    %v3762 = vmax.f32 %v3664, 0.0
    %v3763 = vmax.f32 %v3665, 0.0
    %v3764 = vmax.f32 %v3666, 0.0
    %v3765 = vmax.f32 %v3667, 0.0
    %v3766 = vmax.f32 %v3668, 0.0
    %v3767 = vmax.f32 %v3669, 0.0
    %v3768 = vmax.f32 %v3670, 0.0
    %v3769 = vmax.f32 %v3671, 0.0
    %v3770 = vmax.f32 %v3672, 0.0
    %v3771 = vmax.f32 %v3673, 0.0
    %v3772 = vmax.f32 %v3674, 0.0
    %v3773 = vmax.f32 %v3675, 0.0
    %v3774 = vmax.f32 %v3676, 0.0
    %v3775 = vmax.f32 %v3677, 0.0
    %v3776 = vmax.f32 %v3678, 0.0
    %v3777 = vmax.f32 %v3679, 0.0
    %v3778 = vmax.f32 %v3680, 0.0
    %v3779 = vmax.f32 %v3681, 0.0
    %v3780 = vmax.f32 %v3682, 0.0
    %v3781 = vmax.f32 %v3683, 0.0
    %v3782 = vmax.f32 %v3684, 0.0
    %v3783 = vmax.f32 %v3685, 0.0
    %v3784 = vmax.f32 %v3686, 0.0
    %v3785 = vmax.f32 %v3687, 0.0
    %v3786 = vmax.f32 %v3688, 0.0
    %v3787 = vmax.f32 %v3689, 0.0
    %v3788 = vmax.f32 %v3690, 0.0
    %v3789 = vmax.f32 %v3691, 0.0
    %v3790 = vmax.f32 %v3692, 0.0
    %v3791 = vmax.f32 %v3693, 0.0
    %v3792 = vmax.f32 %v3694, 0.0
    %v3793 = vmax.f32 %v3695, 0.0
    %v3794 = vmax.f32 %v3696, 0.0
    %v3795 = vmax.f32 %v3697, 0.0
    %v3796 = vmax.f32 %v3698, 0.0
    %v3797 = vmax.f32 %v3699, 0.0
    %v3798 = vmax.f32 %v3700, 0.0
    %v3799 = vmax.f32 %v3701, 0.0
    %v3800 = vmax.f32 %v3702, 0.0
    %v3801 = vmax.f32 %v3703, 0.0
    %v3802 = vmax.f32 %v3704, 0.0
    %v3803 = vmax.f32 %v3705, 0.0
    %v3804 = vmax.f32 %v3706, 0.0
    %v3805 = vmax.f32 %v3707, 0.0
    %v3806 = vmax.f32 %v3708, 0.0
    %v3807 = vmax.f32 %v3709, 0.0
    %v3808 = vmax.f32 %v3710, 0.0
    %v3809 = vmax.f32 %v3711, 0.0
    %v3810 = vmax.f32 %v3712, 0.0
    %v3811 = vmax.f32 %v3713, 0.0
    %v3812 = vmax.f32 %v3714, 0.0
    %v3813 = vmax.f32 %v3715, 0.0
    %v3814 = vmax.f32 %v3716, 0.0
    %v3815 = vmax.f32 %v3717, 0.0
    %v3816 = vmax.f32 %v3718, 0.0
    %v3817 = vmax.f32 %v3719, 0.0
    %v3818 = vmax.f32 %v3720, 0.0
    %v3819 = vmax.f32 %v3721, 0.0
    %v3820 = vmax.f32 %v3722, 0.0
    %v3821 = vmax.f32 %v3723, 0.0
    %v3822 = vmax.f32 %v3724, 0.0
    %s3823 = scalar_lea.vmem [#allocation8], 4704
    %3824 = vst [vmem:[%s3823] sm:$0xff] %v3725
    %3825 = vst [vmem:[%s3823 + $0x8] sm:$0xff] %v3726
    %3826 = vst [vmem:[%s3823 + $0x10] sm:$0xff] %v3727
    %3827 = vst [vmem:[%s3823 + $0x18] sm:$0xff] %v3728
    %3828 = vst [vmem:[%s3823 + $0x20] sm:$0xff] %v3729
    %3829 = vst [vmem:[%s3823 + $0x28] sm:$0xff] %v3730
    %3830 = vst [vmem:[%s3823 + $0x30] sm:$0xff] %v3731
    %3831 = vst [vmem:[%s3823 + $0x38] sm:$0xff] %v3732
    %3832 = vst [vmem:[%s3823 + $0x40] sm:$0xff] %v3733
    %3833 = vst [vmem:[%s3823 + $0x48] sm:$0xff] %v3734
    %3834 = vst [vmem:[%s3823 + $0x50] sm:$0xff] %v3735
    %3835 = vst [vmem:[%s3823 + $0x58] sm:$0xff] %v3736
    %3836 = vst [vmem:[%s3823 + $0x60] sm:$0xff] %v3737
    %3837 = vst [vmem:[%s3823 + $0x68] sm:$0xff] %v3738
    %3838 = vst [vmem:[%s3823 + $0x70] sm:$0xff] %v3739
    %3839 = vst [vmem:[%s3823 + $0x78] sm:$0xff] %v3740
    %3840 = vst [vmem:[%s3823 + $0x80] sm:$0xff] %v3741
    %3841 = vst [vmem:[%s3823 + $0x88] sm:$0xff] %v3742
    %3842 = vst [vmem:[%s3823 + $0x90] sm:$0xff] %v3743
    %3843 = vst [vmem:[%s3823 + $0x98] sm:$0xff] %v3744
    %3844 = vst [vmem:[%s3823 + $0xa0] sm:$0xff] %v3745
    %3845 = vst [vmem:[%s3823 + $0xa8] sm:$0xff] %v3746
    %3846 = vst [vmem:[%s3823 + $0xb0] sm:$0xff] %v3747
    %3847 = vst [vmem:[%s3823 + $0xb8] sm:$0xff] %v3748
    %3848 = vst [vmem:[%s3823 + $0xc0] sm:$0xff] %v3749
    %3849 = vst [vmem:[%s3823 + $0xc8] sm:$0xff] %v3750
    %3850 = vst [vmem:[%s3823 + $0xd0] sm:$0xff] %v3751
    %3851 = vst [vmem:[%s3823 + $0xd8] sm:$0xff] %v3752
    %3852 = vst [vmem:[%s3823 + $0xe0] sm:$0xff] %v3753
    %3853 = vst [vmem:[%s3823 + $0xe8] sm:$0xff] %v3754
    %3854 = vst [vmem:[%s3823 + $0xf0] sm:$0xff] %v3755
    %3855 = vst [vmem:[%s3823 + $0xf8] sm:$0xff] %v3756
    %3856 = vst [vmem:[%s3823 + $0x100] sm:$0xff] %v3757
    %3857 = vst [vmem:[%s3823 + $0x108] sm:$0xff] %v3758
    %3858 = vst [vmem:[%s3823 + $0x110] sm:$0xff] %v3759
    %3859 = vst [vmem:[%s3823 + $0x118] sm:$0xff] %v3760
    %3860 = vst [vmem:[%s3823 + $0x120] sm:$0xff] %v3761
    %3861 = vst [vmem:[%s3823 + $0x128] sm:$0xff] %v3762
    %3862 = vst [vmem:[%s3823 + $0x130] sm:$0xff] %v3763
    %3863 = vst [vmem:[%s3823 + $0x138] sm:$0xff] %v3764
    %3864 = vst [vmem:[%s3823 + $0x140] sm:$0xff] %v3765
    %3865 = vst [vmem:[%s3823 + $0x148] sm:$0xff] %v3766
    %3866 = vst [vmem:[%s3823 + $0x150] sm:$0xff] %v3767
    %3867 = vst [vmem:[%s3823 + $0x158] sm:$0xff] %v3768
    %3868 = vst [vmem:[%s3823 + $0x160] sm:$0xff] %v3769
    %3869 = vst [vmem:[%s3823 + $0x168] sm:$0xff] %v3770
    %3870 = vst [vmem:[%s3823 + $0x170] sm:$0xff] %v3771
    %3871 = vst [vmem:[%s3823 + $0x178] sm:$0xff] %v3772
    %3872 = vst [vmem:[%s3823 + $0x180] sm:$0xff] %v3773
    %3873 = vst [vmem:[%s3823 + $0x188] sm:$0xff] %v3774
    %3874 = vst [vmem:[%s3823 + $0x190] sm:$0xff] %v3775
    %3875 = vst [vmem:[%s3823 + $0x198] sm:$0xff] %v3776
    %3876 = vst [vmem:[%s3823 + $0x1a0] sm:$0xff] %v3777
    %3877 = vst [vmem:[%s3823 + $0x1a8] sm:$0xff] %v3778
    %3878 = vst [vmem:[%s3823 + $0x1b0] sm:$0xff] %v3779
    %3879 = vst [vmem:[%s3823 + $0x1b8] sm:$0xff] %v3780
    %3880 = vst [vmem:[%s3823 + $0x1c0] sm:$0xff] %v3781
    %3881 = vst [vmem:[%s3823 + $0x1c8] sm:$0xff] %v3782
    %3882 = vst [vmem:[%s3823 + $0x1d0] sm:$0xff] %v3783
    %3883 = vst [vmem:[%s3823 + $0x1d8] sm:$0xff] %v3784
    %3884 = vst [vmem:[%s3823 + $0x1e0] sm:$0xff] %v3785
    %3885 = vst [vmem:[%s3823 + $0x1e8] sm:$0xff] %v3786
    %3886 = vst [vmem:[%s3823 + $0x1f0] sm:$0xff] %v3787
    %3887 = vst [vmem:[%s3823 + $0x1f8] sm:$0xff] %v3788
    %3888 = vst [vmem:[%s3823 + $0x200] sm:$0xff] %v3789
    %3889 = vst [vmem:[%s3823 + $0x208] sm:$0xff] %v3790
    %3890 = vst [vmem:[%s3823 + $0x210] sm:$0xff] %v3791
    %3891 = vst [vmem:[%s3823 + $0x218] sm:$0xff] %v3792
    %3892 = vst [vmem:[%s3823 + $0x220] sm:$0xff] %v3793
    %3893 = vst [vmem:[%s3823 + $0x228] sm:$0xff] %v3794
    %3894 = vst [vmem:[%s3823 + $0x230] sm:$0xff] %v3795
    %3895 = vst [vmem:[%s3823 + $0x238] sm:$0xff] %v3796
    %3896 = vst [vmem:[%s3823 + $0x240] sm:$0xff] %v3797
    %3897 = vst [vmem:[%s3823 + $0x248] sm:$0xff] %v3798
    %3898 = vst [vmem:[%s3823 + $0x250] sm:$0xff] %v3799
    %3899 = vst [vmem:[%s3823 + $0x258] sm:$0xff] %v3800
    %3900 = vst [vmem:[%s3823 + $0x260] sm:$0xff] %v3801
    %3901 = vst [vmem:[%s3823 + $0x268] sm:$0xff] %v3802
    %3902 = vst [vmem:[%s3823 + $0x270] sm:$0xff] %v3803
    %3903 = vst [vmem:[%s3823 + $0x278] sm:$0xff] %v3804
    %3904 = vst [vmem:[%s3823 + $0x280] sm:$0xff] %v3805
    %3905 = vst [vmem:[%s3823 + $0x288] sm:$0xff] %v3806
    %3906 = vst [vmem:[%s3823 + $0x290] sm:$0xff] %v3807
    %3907 = vst [vmem:[%s3823 + $0x298] sm:$0xff] %v3808
    %3908 = vst [vmem:[%s3823 + $0x2a0] sm:$0xff] %v3809
    %3909 = vst [vmem:[%s3823 + $0x2a8] sm:$0xff] %v3810
    %3910 = vst [vmem:[%s3823 + $0x2b0] sm:$0xff] %v3811
    %3911 = vst [vmem:[%s3823 + $0x2b8] sm:$0xff] %v3812
    %3912 = vst [vmem:[%s3823 + $0x2c0] sm:$0xff] %v3813
    %3913 = vst [vmem:[%s3823 + $0x2c8] sm:$0xff] %v3814
    %3914 = vst [vmem:[%s3823 + $0x2d0] sm:$0xff] %v3815
    %3915 = vst [vmem:[%s3823 + $0x2d8] sm:$0xff] %v3816
    %3916 = vst [vmem:[%s3823 + $0x2e0] sm:$0xff] %v3817
    %3917 = vst [vmem:[%s3823 + $0x2e8] sm:$0xff] %v3818
    %3918 = vst [vmem:[%s3823 + $0x2f0] sm:$0xff] %v3819
    %3919 = vst [vmem:[%s3823 + $0x2f8] sm:$0xff] %v3820
    %3920 = vst [vmem:[%s3823 + $0x300] sm:$0xff] %v3821
    %3921 = vst [vmem:[%s3823 + $0x308] sm:$0xff] %v3822
    %s3922 = scalar_lea.vmem [#allocation2], 7
    %v3923 = vld [vmem:[%s3922] ss:$8 sm:$0xf]
    %v3924 = vld [vmem:[%s3922] ss:$8 sm:$0xf0]
    %v3925 = vor.u32 %v3923, %v3924
    %s3926 = scalar_lea.vmem [#allocation2], 71
    %v3927 = vld [vmem:[%s3926] ss:$8 sm:$0xf]
    %v3928 = vld [vmem:[%s3926] ss:$8 sm:$0xf0]
    %v3929 = vor.u32 %v3927, %v3928
    %s3930 = scalar_lea.vmem [#allocation2], 135
    %v3931 = vld [vmem:[%s3930] ss:$8 sm:$0xf]
    %v3932 = vld [vmem:[%s3930] ss:$8 sm:$0xf0]
    %v3933 = vor.u32 %v3931, %v3932
    %s3934 = scalar_lea.vmem [#allocation2], 199
    %v3935 = vld [vmem:[%s3934] ss:$8 sm:$0xf]
    %v3936 = vld [vmem:[%s3934] ss:$8 sm:$0xf0]
    %v3937 = vor.u32 %v3935, %v3936
    %s3938 = scalar_lea.vmem [#allocation2], 263
    %v3939 = vld [vmem:[%s3938] ss:$8 sm:$0xf]
    %v3940 = vld [vmem:[%s3938] ss:$8 sm:$0xf0]
    %v3941 = vor.u32 %v3939, %v3940
    %s3942 = scalar_lea.vmem [#allocation2], 327
    %v3943 = vld [vmem:[%s3942] ss:$8 sm:$0xf]
    %v3944 = vld [vmem:[%s3942] ss:$8 sm:$0xf0]
    %v3945 = vor.u32 %v3943, %v3944
    %s3946 = scalar_lea.vmem [#allocation2], 391
    %v3947 = vld [vmem:[%s3946] ss:$8 sm:$0x1]
    %v3955 = vperm.slane %v3925, 0
    %v3956 = vperm.slane %v3925, 1
    %v3957 = vperm.slane %v3925, 2
    %v3958 = vperm.slane %v3925, 3
    %v3959 = vperm.slane %v3925, 4
    %v3960 = vperm.slane %v3925, 5
    %v3961 = vperm.slane %v3925, 6
    %v3962 = vperm.slane %v3925, 7
    %v3963 = vperm.slane %v3929, 0
    %v3964 = vperm.slane %v3929, 1
    %v3965 = vperm.slane %v3929, 2
    %v3966 = vperm.slane %v3929, 3
    %v3967 = vperm.slane %v3929, 4
    %v3968 = vperm.slane %v3929, 5
    %v3969 = vperm.slane %v3929, 6
    %v3970 = vperm.slane %v3929, 7
    %v3971 = vperm.slane %v3933, 0
    %v3972 = vperm.slane %v3933, 1
    %v3973 = vperm.slane %v3933, 2
    %v3974 = vperm.slane %v3933, 3
    %v3975 = vperm.slane %v3933, 4
    %v3976 = vperm.slane %v3933, 5
    %v3977 = vperm.slane %v3933, 6
    %v3978 = vperm.slane %v3933, 7
    %v3979 = vperm.slane %v3937, 0
    %v3980 = vperm.slane %v3937, 1
    %v3981 = vperm.slane %v3937, 2
    %v3982 = vperm.slane %v3937, 3
    %v3983 = vperm.slane %v3937, 4
    %v3984 = vperm.slane %v3937, 5
    %v3985 = vperm.slane %v3937, 6
    %v3986 = vperm.slane %v3937, 7
    %v3987 = vperm.slane %v3941, 0
    %v3988 = vperm.slane %v3941, 1
    %v3989 = vperm.slane %v3941, 2
    %v3990 = vperm.slane %v3941, 3
    %v3991 = vperm.slane %v3941, 4
    %v3992 = vperm.slane %v3941, 5
    %v3993 = vperm.slane %v3941, 6
    %v3994 = vperm.slane %v3941, 7
    %v3995 = vperm.slane %v3945, 0
    %v3996 = vperm.slane %v3945, 1
    %v3997 = vperm.slane %v3945, 2
    %v3998 = vperm.slane %v3945, 3
    %v3999 = vperm.slane %v3945, 4
    %v4000 = vperm.slane %v3945, 5
    %v4001 = vperm.slane %v3945, 6
    %v4002 = vperm.slane %v3945, 7
    %v4003 = vperm.slane %v3947, 0
    %v4053 = vmul.f32 %v3955, %v60
    %v4054 = vmul.f32 %v3956, %v61
    %v4055 = vmul.f32 %v3957, %v62
    %v4056 = vmul.f32 %v3958, %v63
    %v4057 = vmul.f32 %v3959, %v64
    %v4058 = vmul.f32 %v3960, %v65
    %v4059 = vmul.f32 %v3961, %v66
    %v4060 = vmul.f32 %v3962, %v67
    %v4061 = vmul.f32 %v3963, %v68
    %v4062 = vmul.f32 %v3964, %v69
    %v4063 = vmul.f32 %v3965, %v70
    %v4064 = vmul.f32 %v3966, %v71
    %v4065 = vmul.f32 %v3967, %v72
    %v4066 = vmul.f32 %v3968, %v73
    %v4067 = vmul.f32 %v3969, %v74
    %v4068 = vmul.f32 %v3970, %v75
    %v4069 = vmul.f32 %v3971, %v76
    %v4070 = vmul.f32 %v3972, %v77
    %v4071 = vmul.f32 %v3973, %v78
    %v4072 = vmul.f32 %v3974, %v79
    %v4073 = vmul.f32 %v3975, %v80
    %v4074 = vmul.f32 %v3976, %v81
    %v4075 = vmul.f32 %v3977, %v82
    %v4076 = vmul.f32 %v3978, %v83
    %v4077 = vmul.f32 %v3979, %v84
    %v4078 = vmul.f32 %v3980, %v85
    %v4079 = vmul.f32 %v3981, %v86
    %v4080 = vmul.f32 %v3982, %v87
    %v4081 = vmul.f32 %v3983, %v88
    %v4082 = vmul.f32 %v3984, %v89
    %v4083 = vmul.f32 %v3985, %v90
    %v4084 = vmul.f32 %v3986, %v91
    %v4085 = vmul.f32 %v3987, %v92
    %v4086 = vmul.f32 %v3988, %v93
    %v4087 = vmul.f32 %v3989, %v94
    %v4088 = vmul.f32 %v3990, %v95
    %v4089 = vmul.f32 %v3991, %v96
    %v4090 = vmul.f32 %v3992, %v97
    %v4091 = vmul.f32 %v3993, %v98
    %v4092 = vmul.f32 %v3994, %v99
    %v4093 = vmul.f32 %v3995, %v100
    %v4094 = vmul.f32 %v3996, %v101
    %v4095 = vmul.f32 %v3997, %v102
    %v4096 = vmul.f32 %v3998, %v103
    %v4097 = vmul.f32 %v3999, %v104
    %v4098 = vmul.f32 %v4000, %v105
    %v4099 = vmul.f32 %v4001, %v106
    %v4100 = vmul.f32 %v4002, %v107
    %v4101 = vmul.f32 %v4003, %v108
    %v4102 = vmul.f32 %v3955, %v109
    %v4103 = vmul.f32 %v3956, %v110
    %v4104 = vmul.f32 %v3957, %v111
    %v4105 = vmul.f32 %v3958, %v112
    %v4106 = vmul.f32 %v3959, %v113
    %v4107 = vmul.f32 %v3960, %v114
    %v4108 = vmul.f32 %v3961, %v115
    %v4109 = vmul.f32 %v3962, %v116
    %v4110 = vmul.f32 %v3963, %v117
    %v4111 = vmul.f32 %v3964, %v118
    %v4112 = vmul.f32 %v3965, %v119
    %v4113 = vmul.f32 %v3966, %v120
    %v4114 = vmul.f32 %v3967, %v121
    %v4115 = vmul.f32 %v3968, %v122
    %v4116 = vmul.f32 %v3969, %v123
    %v4117 = vmul.f32 %v3970, %v124
    %v4118 = vmul.f32 %v3971, %v125
    %v4119 = vmul.f32 %v3972, %v126
    %v4120 = vmul.f32 %v3973, %v127
    %v4121 = vmul.f32 %v3974, %v128
    %v4122 = vmul.f32 %v3975, %v129
    %v4123 = vmul.f32 %v3976, %v130
    %v4124 = vmul.f32 %v3977, %v131
    %v4125 = vmul.f32 %v3978, %v132
    %v4126 = vmul.f32 %v3979, %v133
    %v4127 = vmul.f32 %v3980, %v134
    %v4128 = vmul.f32 %v3981, %v135
    %v4129 = vmul.f32 %v3982, %v136
    %v4130 = vmul.f32 %v3983, %v137
    %v4131 = vmul.f32 %v3984, %v138
    %v4132 = vmul.f32 %v3985, %v139
    %v4133 = vmul.f32 %v3986, %v140
    %v4134 = vmul.f32 %v3987, %v141
    %v4135 = vmul.f32 %v3988, %v142
    %v4136 = vmul.f32 %v3989, %v143
    %v4137 = vmul.f32 %v3990, %v144
    %v4138 = vmul.f32 %v3991, %v145
    %v4139 = vmul.f32 %v3992, %v146
    %v4140 = vmul.f32 %v3993, %v147
    %v4141 = vmul.f32 %v3994, %v148
    %v4142 = vmul.f32 %v3995, %v149
    %v4143 = vmul.f32 %v3996, %v150
    %v4144 = vmul.f32 %v3997, %v151
    %v4145 = vmul.f32 %v3998, %v152
    %v4146 = vmul.f32 %v3999, %v153
    %v4147 = vmul.f32 %v4000, %v154
    %v4148 = vmul.f32 %v4001, %v155
    %v4149 = vmul.f32 %v4002, %v156
    %v4150 = vmul.f32 %v4003, %v157
    %v4151 = vadd.f32 %v4053, %v158
    %v4152 = vadd.f32 %v4054, %v159
    %v4153 = vadd.f32 %v4055, %v160
    %v4154 = vadd.f32 %v4056, %v161
    %v4155 = vadd.f32 %v4057, %v162
    %v4156 = vadd.f32 %v4058, %v163
    %v4157 = vadd.f32 %v4059, %v164
    %v4158 = vadd.f32 %v4060, %v165
    %v4159 = vadd.f32 %v4061, %v166
    %v4160 = vadd.f32 %v4062, %v167
    %v4161 = vadd.f32 %v4063, %v168
    %v4162 = vadd.f32 %v4064, %v169
    %v4163 = vadd.f32 %v4065, %v170
    %v4164 = vadd.f32 %v4066, %v171
    %v4165 = vadd.f32 %v4067, %v172
    %v4166 = vadd.f32 %v4068, %v173
    %v4167 = vadd.f32 %v4069, %v174
    %v4168 = vadd.f32 %v4070, %v175
    %v4169 = vadd.f32 %v4071, %v176
    %v4170 = vadd.f32 %v4072, %v177
    %v4171 = vadd.f32 %v4073, %v178
    %v4172 = vadd.f32 %v4074, %v179
    %v4173 = vadd.f32 %v4075, %v180
    %v4174 = vadd.f32 %v4076, %v181
    %v4175 = vadd.f32 %v4077, %v182
    %v4176 = vadd.f32 %v4078, %v183
    %v4177 = vadd.f32 %v4079, %v184
    %v4178 = vadd.f32 %v4080, %v185
    %v4179 = vadd.f32 %v4081, %v186
    %v4180 = vadd.f32 %v4082, %v187
    %v4181 = vadd.f32 %v4083, %v188
    %v4182 = vadd.f32 %v4084, %v189
    %v4183 = vadd.f32 %v4085, %v190
    %v4184 = vadd.f32 %v4086, %v191
    %v4185 = vadd.f32 %v4087, %v192
    %v4186 = vadd.f32 %v4088, %v193
    %v4187 = vadd.f32 %v4089, %v194
    %v4188 = vadd.f32 %v4090, %v195
    %v4189 = vadd.f32 %v4091, %v196
    %v4190 = vadd.f32 %v4092, %v197
    %v4191 = vadd.f32 %v4093, %v198
    %v4192 = vadd.f32 %v4094, %v199
    %v4193 = vadd.f32 %v4095, %v200
    %v4194 = vadd.f32 %v4096, %v201
    %v4195 = vadd.f32 %v4097, %v202
    %v4196 = vadd.f32 %v4098, %v203
    %v4197 = vadd.f32 %v4099, %v204
    %v4198 = vadd.f32 %v4100, %v205
    %v4199 = vadd.f32 %v4101, %v206
    %v4200 = vadd.f32 %v4102, %v207
    %v4201 = vadd.f32 %v4103, %v208
    %v4202 = vadd.f32 %v4104, %v209
    %v4203 = vadd.f32 %v4105, %v210
    %v4204 = vadd.f32 %v4106, %v211
    %v4205 = vadd.f32 %v4107, %v212
    %v4206 = vadd.f32 %v4108, %v213
    %v4207 = vadd.f32 %v4109, %v214
    %v4208 = vadd.f32 %v4110, %v215
    %v4209 = vadd.f32 %v4111, %v216
    %v4210 = vadd.f32 %v4112, %v217
    %v4211 = vadd.f32 %v4113, %v218
    %v4212 = vadd.f32 %v4114, %v219
    %v4213 = vadd.f32 %v4115, %v220
    %v4214 = vadd.f32 %v4116, %v221
    %v4215 = vadd.f32 %v4117, %v222
    %v4216 = vadd.f32 %v4118, %v223
    %v4217 = vadd.f32 %v4119, %v224
    %v4218 = vadd.f32 %v4120, %v225
    %v4219 = vadd.f32 %v4121, %v226
    %v4220 = vadd.f32 %v4122, %v227
    %v4221 = vadd.f32 %v4123, %v228
    %v4222 = vadd.f32 %v4124, %v229
    %v4223 = vadd.f32 %v4125, %v230
    %v4224 = vadd.f32 %v4126, %v231
    %v4225 = vadd.f32 %v4127, %v232
    %v4226 = vadd.f32 %v4128, %v233
    %v4227 = vadd.f32 %v4129, %v234
    %v4228 = vadd.f32 %v4130, %v235
    %v4229 = vadd.f32 %v4131, %v236
    %v4230 = vadd.f32 %v4132, %v237
    %v4231 = vadd.f32 %v4133, %v238
    %v4232 = vadd.f32 %v4134, %v239
    %v4233 = vadd.f32 %v4135, %v240
    %v4234 = vadd.f32 %v4136, %v241
    %v4235 = vadd.f32 %v4137, %v242
    %v4236 = vadd.f32 %v4138, %v243
    %v4237 = vadd.f32 %v4139, %v244
    %v4238 = vadd.f32 %v4140, %v245
    %v4239 = vadd.f32 %v4141, %v246
    %v4240 = vadd.f32 %v4142, %v247
    %v4241 = vadd.f32 %v4143, %v248
    %v4242 = vadd.f32 %v4144, %v249
    %v4243 = vadd.f32 %v4145, %v250
    %v4244 = vadd.f32 %v4146, %v251
    %v4245 = vadd.f32 %v4147, %v252
    %v4246 = vadd.f32 %v4148, %v253
    %v4247 = vadd.f32 %v4149, %v254
    %v4248 = vadd.f32 %v4150, %v255
    %v4249 = vmax.f32 %v4151, 0.0
    %v4250 = vmax.f32 %v4152, 0.0
    %v4251 = vmax.f32 %v4153, 0.0
    %v4252 = vmax.f32 %v4154, 0.0
    %v4253 = vmax.f32 %v4155, 0.0
    %v4254 = vmax.f32 %v4156, 0.0
    %v4255 = vmax.f32 %v4157, 0.0
    %v4256 = vmax.f32 %v4158, 0.0
    %v4257 = vmax.f32 %v4159, 0.0
    %v4258 = vmax.f32 %v4160, 0.0
    %v4259 = vmax.f32 %v4161, 0.0
    %v4260 = vmax.f32 %v4162, 0.0
    %v4261 = vmax.f32 %v4163, 0.0
    %v4262 = vmax.f32 %v4164, 0.0
    %v4263 = vmax.f32 %v4165, 0.0
    %v4264 = vmax.f32 %v4166, 0.0
    %v4265 = vmax.f32 %v4167, 0.0
    %v4266 = vmax.f32 %v4168, 0.0
    %v4267 = vmax.f32 %v4169, 0.0
    %v4268 = vmax.f32 %v4170, 0.0
    %v4269 = vmax.f32 %v4171, 0.0
    %v4270 = vmax.f32 %v4172, 0.0
    %v4271 = vmax.f32 %v4173, 0.0
    %v4272 = vmax.f32 %v4174, 0.0
    %v4273 = vmax.f32 %v4175, 0.0
    %v4274 = vmax.f32 %v4176, 0.0
    %v4275 = vmax.f32 %v4177, 0.0
    %v4276 = vmax.f32 %v4178, 0.0
    %v4277 = vmax.f32 %v4179, 0.0
    %v4278 = vmax.f32 %v4180, 0.0
    %v4279 = vmax.f32 %v4181, 0.0
    %v4280 = vmax.f32 %v4182, 0.0
    %v4281 = vmax.f32 %v4183, 0.0
    %v4282 = vmax.f32 %v4184, 0.0
    %v4283 = vmax.f32 %v4185, 0.0
    %v4284 = vmax.f32 %v4186, 0.0
    %v4285 = vmax.f32 %v4187, 0.0
    %v4286 = vmax.f32 %v4188, 0.0
    %v4287 = vmax.f32 %v4189, 0.0
    %v4288 = vmax.f32 %v4190, 0.0
    %v4289 = vmax.f32 %v4191, 0.0
    %v4290 = vmax.f32 %v4192, 0.0
    %v4291 = vmax.f32 %v4193, 0.0
    %v4292 = vmax.f32 %v4194, 0.0
    %v4293 = vmax.f32 %v4195, 0.0
    %v4294 = vmax.f32 %v4196, 0.0
    %v4295 = vmax.f32 %v4197, 0.0
    %v4296 = vmax.f32 %v4198, 0.0
    %v4297 = vmax.f32 %v4199, 0.0
    %v4298 = vmax.f32 %v4200, 0.0
    %v4299 = vmax.f32 %v4201, 0.0
    %v4300 = vmax.f32 %v4202, 0.0
    %v4301 = vmax.f32 %v4203, 0.0
    %v4302 = vmax.f32 %v4204, 0.0
    %v4303 = vmax.f32 %v4205, 0.0
    %v4304 = vmax.f32 %v4206, 0.0
    %v4305 = vmax.f32 %v4207, 0.0
    %v4306 = vmax.f32 %v4208, 0.0
    %v4307 = vmax.f32 %v4209, 0.0
    %v4308 = vmax.f32 %v4210, 0.0
    %v4309 = vmax.f32 %v4211, 0.0
    %v4310 = vmax.f32 %v4212, 0.0
    %v4311 = vmax.f32 %v4213, 0.0
    %v4312 = vmax.f32 %v4214, 0.0
    %v4313 = vmax.f32 %v4215, 0.0
    %v4314 = vmax.f32 %v4216, 0.0
    %v4315 = vmax.f32 %v4217, 0.0
    %v4316 = vmax.f32 %v4218, 0.0
    %v4317 = vmax.f32 %v4219, 0.0
    %v4318 = vmax.f32 %v4220, 0.0
    %v4319 = vmax.f32 %v4221, 0.0
    %v4320 = vmax.f32 %v4222, 0.0
    %v4321 = vmax.f32 %v4223, 0.0
    %v4322 = vmax.f32 %v4224, 0.0
    %v4323 = vmax.f32 %v4225, 0.0
    %v4324 = vmax.f32 %v4226, 0.0
    %v4325 = vmax.f32 %v4227, 0.0
    %v4326 = vmax.f32 %v4228, 0.0
    %v4327 = vmax.f32 %v4229, 0.0
    %v4328 = vmax.f32 %v4230, 0.0
    %v4329 = vmax.f32 %v4231, 0.0
    %v4330 = vmax.f32 %v4232, 0.0
    %v4331 = vmax.f32 %v4233, 0.0
    %v4332 = vmax.f32 %v4234, 0.0
    %v4333 = vmax.f32 %v4235, 0.0
    %v4334 = vmax.f32 %v4236, 0.0
    %v4335 = vmax.f32 %v4237, 0.0
    %v4336 = vmax.f32 %v4238, 0.0
    %v4337 = vmax.f32 %v4239, 0.0
    %v4338 = vmax.f32 %v4240, 0.0
    %v4339 = vmax.f32 %v4241, 0.0
    %v4340 = vmax.f32 %v4242, 0.0
    %v4341 = vmax.f32 %v4243, 0.0
    %v4342 = vmax.f32 %v4244, 0.0
    %v4343 = vmax.f32 %v4245, 0.0
    %v4344 = vmax.f32 %v4246, 0.0
    %v4345 = vmax.f32 %v4247, 0.0
    %v4346 = vmax.f32 %v4248, 0.0
    %s4347 = scalar_lea.vmem [#allocation8], 5488
    %4348 = vst [vmem:[%s4347] sm:$0xff] %v4249
    %4349 = vst [vmem:[%s4347 + $0x8] sm:$0xff] %v4250
    %4350 = vst [vmem:[%s4347 + $0x10] sm:$0xff] %v4251
    %4351 = vst [vmem:[%s4347 + $0x18] sm:$0xff] %v4252
    %4352 = vst [vmem:[%s4347 + $0x20] sm:$0xff] %v4253
    %4353 = vst [vmem:[%s4347 + $0x28] sm:$0xff] %v4254
    %4354 = vst [vmem:[%s4347 + $0x30] sm:$0xff] %v4255
    %4355 = vst [vmem:[%s4347 + $0x38] sm:$0xff] %v4256
    %4356 = vst [vmem:[%s4347 + $0x40] sm:$0xff] %v4257
    %4357 = vst [vmem:[%s4347 + $0x48] sm:$0xff] %v4258
    %4358 = vst [vmem:[%s4347 + $0x50] sm:$0xff] %v4259
    %4359 = vst [vmem:[%s4347 + $0x58] sm:$0xff] %v4260
    %4360 = vst [vmem:[%s4347 + $0x60] sm:$0xff] %v4261
    %4361 = vst [vmem:[%s4347 + $0x68] sm:$0xff] %v4262
    %4362 = vst [vmem:[%s4347 + $0x70] sm:$0xff] %v4263
    %4363 = vst [vmem:[%s4347 + $0x78] sm:$0xff] %v4264
    %4364 = vst [vmem:[%s4347 + $0x80] sm:$0xff] %v4265
    %4365 = vst [vmem:[%s4347 + $0x88] sm:$0xff] %v4266
    %4366 = vst [vmem:[%s4347 + $0x90] sm:$0xff] %v4267
    %4367 = vst [vmem:[%s4347 + $0x98] sm:$0xff] %v4268
    %4368 = vst [vmem:[%s4347 + $0xa0] sm:$0xff] %v4269
    %4369 = vst [vmem:[%s4347 + $0xa8] sm:$0xff] %v4270
    %4370 = vst [vmem:[%s4347 + $0xb0] sm:$0xff] %v4271
    %4371 = vst [vmem:[%s4347 + $0xb8] sm:$0xff] %v4272
    %4372 = vst [vmem:[%s4347 + $0xc0] sm:$0xff] %v4273
    %4373 = vst [vmem:[%s4347 + $0xc8] sm:$0xff] %v4274
    %4374 = vst [vmem:[%s4347 + $0xd0] sm:$0xff] %v4275
    %4375 = vst [vmem:[%s4347 + $0xd8] sm:$0xff] %v4276
    %4376 = vst [vmem:[%s4347 + $0xe0] sm:$0xff] %v4277
    %4377 = vst [vmem:[%s4347 + $0xe8] sm:$0xff] %v4278
    %4378 = vst [vmem:[%s4347 + $0xf0] sm:$0xff] %v4279
    %4379 = vst [vmem:[%s4347 + $0xf8] sm:$0xff] %v4280
    %4380 = vst [vmem:[%s4347 + $0x100] sm:$0xff] %v4281
    %4381 = vst [vmem:[%s4347 + $0x108] sm:$0xff] %v4282
    %4382 = vst [vmem:[%s4347 + $0x110] sm:$0xff] %v4283
    %4383 = vst [vmem:[%s4347 + $0x118] sm:$0xff] %v4284
    %4384 = vst [vmem:[%s4347 + $0x120] sm:$0xff] %v4285
    %4385 = vst [vmem:[%s4347 + $0x128] sm:$0xff] %v4286
    %4386 = vst [vmem:[%s4347 + $0x130] sm:$0xff] %v4287
    %4387 = vst [vmem:[%s4347 + $0x138] sm:$0xff] %v4288
    %4388 = vst [vmem:[%s4347 + $0x140] sm:$0xff] %v4289
    %4389 = vst [vmem:[%s4347 + $0x148] sm:$0xff] %v4290
    %4390 = vst [vmem:[%s4347 + $0x150] sm:$0xff] %v4291
    %4391 = vst [vmem:[%s4347 + $0x158] sm:$0xff] %v4292
    %4392 = vst [vmem:[%s4347 + $0x160] sm:$0xff] %v4293
    %4393 = vst [vmem:[%s4347 + $0x168] sm:$0xff] %v4294
    %4394 = vst [vmem:[%s4347 + $0x170] sm:$0xff] %v4295
    %4395 = vst [vmem:[%s4347 + $0x178] sm:$0xff] %v4296
    %4396 = vst [vmem:[%s4347 + $0x180] sm:$0xff] %v4297
    %4397 = vst [vmem:[%s4347 + $0x188] sm:$0xff] %v4298
    %4398 = vst [vmem:[%s4347 + $0x190] sm:$0xff] %v4299
    %4399 = vst [vmem:[%s4347 + $0x198] sm:$0xff] %v4300
    %4400 = vst [vmem:[%s4347 + $0x1a0] sm:$0xff] %v4301
    %4401 = vst [vmem:[%s4347 + $0x1a8] sm:$0xff] %v4302
    %4402 = vst [vmem:[%s4347 + $0x1b0] sm:$0xff] %v4303
    %4403 = vst [vmem:[%s4347 + $0x1b8] sm:$0xff] %v4304
    %4404 = vst [vmem:[%s4347 + $0x1c0] sm:$0xff] %v4305
    %4405 = vst [vmem:[%s4347 + $0x1c8] sm:$0xff] %v4306
    %4406 = vst [vmem:[%s4347 + $0x1d0] sm:$0xff] %v4307
    %4407 = vst [vmem:[%s4347 + $0x1d8] sm:$0xff] %v4308
    %4408 = vst [vmem:[%s4347 + $0x1e0] sm:$0xff] %v4309
    %4409 = vst [vmem:[%s4347 + $0x1e8] sm:$0xff] %v4310
    %4410 = vst [vmem:[%s4347 + $0x1f0] sm:$0xff] %v4311
    %4411 = vst [vmem:[%s4347 + $0x1f8] sm:$0xff] %v4312
    %4412 = vst [vmem:[%s4347 + $0x200] sm:$0xff] %v4313
    %4413 = vst [vmem:[%s4347 + $0x208] sm:$0xff] %v4314
    %4414 = vst [vmem:[%s4347 + $0x210] sm:$0xff] %v4315
    %4415 = vst [vmem:[%s4347 + $0x218] sm:$0xff] %v4316
    %4416 = vst [vmem:[%s4347 + $0x220] sm:$0xff] %v4317
    %4417 = vst [vmem:[%s4347 + $0x228] sm:$0xff] %v4318
    %4418 = vst [vmem:[%s4347 + $0x230] sm:$0xff] %v4319
    %4419 = vst [vmem:[%s4347 + $0x238] sm:$0xff] %v4320
    %4420 = vst [vmem:[%s4347 + $0x240] sm:$0xff] %v4321
    %4421 = vst [vmem:[%s4347 + $0x248] sm:$0xff] %v4322
    %4422 = vst [vmem:[%s4347 + $0x250] sm:$0xff] %v4323
    %4423 = vst [vmem:[%s4347 + $0x258] sm:$0xff] %v4324
    %4424 = vst [vmem:[%s4347 + $0x260] sm:$0xff] %v4325
    %4425 = vst [vmem:[%s4347 + $0x268] sm:$0xff] %v4326
    %4426 = vst [vmem:[%s4347 + $0x270] sm:$0xff] %v4327
    %4427 = vst [vmem:[%s4347 + $0x278] sm:$0xff] %v4328
    %4428 = vst [vmem:[%s4347 + $0x280] sm:$0xff] %v4329
    %4429 = vst [vmem:[%s4347 + $0x288] sm:$0xff] %v4330
    %4430 = vst [vmem:[%s4347 + $0x290] sm:$0xff] %v4331
    %4431 = vst [vmem:[%s4347 + $0x298] sm:$0xff] %v4332
    %4432 = vst [vmem:[%s4347 + $0x2a0] sm:$0xff] %v4333
    %4433 = vst [vmem:[%s4347 + $0x2a8] sm:$0xff] %v4334
    %4434 = vst [vmem:[%s4347 + $0x2b0] sm:$0xff] %v4335
    %4435 = vst [vmem:[%s4347 + $0x2b8] sm:$0xff] %v4336
    %4436 = vst [vmem:[%s4347 + $0x2c0] sm:$0xff] %v4337
    %4437 = vst [vmem:[%s4347 + $0x2c8] sm:$0xff] %v4338
    %4438 = vst [vmem:[%s4347 + $0x2d0] sm:$0xff] %v4339
    %4439 = vst [vmem:[%s4347 + $0x2d8] sm:$0xff] %v4340
    %4440 = vst [vmem:[%s4347 + $0x2e0] sm:$0xff] %v4341
    %4441 = vst [vmem:[%s4347 + $0x2e8] sm:$0xff] %v4342
    %4442 = vst [vmem:[%s4347 + $0x2f0] sm:$0xff] %v4343
    %4443 = vst [vmem:[%s4347 + $0x2f8] sm:$0xff] %v4344
    %4444 = vst [vmem:[%s4347 + $0x300] sm:$0xff] %v4345
    %4445 = vst [vmem:[%s4347 + $0x308] sm:$0xff] %v4346
    // Predicated region
    $region26: #{tpu_custom_call.1} parent=1 // pred_check
      _
    $region27: #{tpu_custom_call.1} parent=1 // pred_check_branch
      %4447 = sbr.rel (0) target = $region29
    $region28: #{tpu_custom_call.1} parent=1 // pred_region
      %4449 = vsyncadd [#allocation4], 0
      %s4450 = sshll.u32 [#allocation8], 4
      %s4451 = int_to_ptr.vmem [resolvable:$true] %s4450
      %s4452 = sshll.u32 %s3, 4
      %s4453 = int_to_ptr.hbm [resolvable:$true] %s4452
      %4458 = dma.vmem_to_hbm [thread:$0]  %s4451, 100352, %s4453, [#allocation4], 6272, 6272, 392
    $region29: #{tpu_custom_call.1} parent=1 // pred_fallthru
      _
    // Predicated region
    $region30: #{tpu_custom_call.1} parent=1 // pred_check
      _
    $region31: #{tpu_custom_call.1} parent=1 // pred_check_branch
      %4460 = sbr.rel (0) target = $region33
    $region32: #{tpu_custom_call.1} parent=1 // pred_region
      %4462 = dma.done [#allocation4], 100352
    $region33: #{tpu_custom_call.1} parent=1 // pred_fallthru
      _
    %4463 = vsyncpa [#allocation3], 1
    %4464 = vsyncpa [#allocation6], 1
    %4465 = vsyncpa [#allocation4], 1

</llo_original>
